<compile_context>
chip_gen: v5e
topology: v5e:2x2
jax: 0.10.0
libtpu: 0.0.40
codegen_flags: <defaults>
</compile_context>

<pallas_src>
import jax
import jax.numpy as jnp
from jax.experimental import pallas as pl
from jax.experimental.pallas import tpu as pltpu

# ----------------------------- model hyper-params -----------------------------
WIN_DIM = 16      # windowed_input_dim
LATENT  = 8       # latent_dim
ENC_HID = 32      # encoder_hidden_dim
H_HID   = 32      # hidden width of the stand-in Hamiltonian
JR_HID  = 64      # hidden width of JR_net / Bnet (fixed to 64 in the module)
CU      = 1       # actual_control_input_dim (kernel specialized for CU == 1)
BATCH   = 256     # windows processed in the example run
MAX_ROW_TILE = 1024   # default rows per grid step (clamped to batch)

DT  = 1.0         # LatentIOModel default dt
MU  = 0.1         # shnd_mu
EPS = 0.01        # shnd_eps

D2      = LATENT * LATENT     # 64
HID2    = 2 * JR_HID          # 128  fused (JR | B) hidden width
JRW     = 2 * D2              # 128  flattened [J | R] width
ZW_COLS = HID2 + H_HID        # 160  fused [W1f | hW] output width
OUT_PAD = 128                 # lane-dense output width (y lives in col 0..CU)
SLAB_COLS = 256               # weight-slab width (widest packed matrix: MG)

# ------------- packed weight-slab row layout (all offsets % 16 == 0) -----------
_R_WZ  = 0      # (8, 160)   [W1_fused | hW]
_R_HWT = 16     # (32, 8)    hW^T
_R_W2  = 48     # (128, 128) blockdiag(jW2, bW2)
_R_W3J = 176    # (128, 128) [jW3 ; 0]     -> flattened [J | R]
_R_W3B = 304    # (128, 8)   [0 ; bW3]     -> flattened B
_R_EW1 = 432    # (16, 32)   encoder layer 1
_R_EW2 = 448    # (32, 32)   encoder layer 2
_R_EW3 = 480    # (32, 8)    encoder layer 3
_R_MG  = 512    # (8, 256)   [M_tile | M_rep | M_rep | 0]
_R_SJT = 528    # (256, 16)  stacked [S_row|0 ; 0|S_col ; -S_col|0 ; 0]
_R_MT1 = 784    # (16, 128)  routes t1 -> [0 | t1_tile]
_R_SR  = 800    # (128, 8)   [0 ; S_row]
_R_SY  = 928    # (8, 128)   y padding selector
W_ROWS = 944
B_ROWS = 8      # bias slab rows (f32)


# ------------------------------ small math helpers -----------------------------
def _mm(a, w_bf16):
    # Weights/selectors already live in bf16 in the resident slab; only the
    # activation operand is cast. f32 accumulation -> single-pass MXU matmul.
    return jnp.dot(a.astype(jnp.bfloat16), w_bf16, preferred_element_type=jnp.float32)


def _unpack(w, b):
    """Carve the packed slabs with static, tile-aligned slices (works on Refs and arrays)."""
    P = {}
    P['WZ']  = w[_R_WZ:_R_WZ + LATENT, 0:ZW_COLS]            # (8, 160)
    P['hWT'] = w[_R_HWT:_R_HWT + H_HID, 0:LATENT]             # (32, 8)
    P['W2']  = w[_R_W2:_R_W2 + HID2, 0:HID2]                  # (128, 128)
    P['W3J'] = w[_R_W3J:_R_W3J + HID2, 0:JRW]                 # (128, 128)
    P['W3B'] = w[_R_W3B:_R_W3B + HID2, 0:LATENT * CU]         # (128, 8)
    P['eW1'] = w[_R_EW1:_R_EW1 + WIN_DIM, 0:ENC_HID]          # (16, 32)
    P['eW2'] = w[_R_EW2:_R_EW2 + ENC_HID, 0:ENC_HID]          # (32, 32)
    P['eW3'] = w[_R_EW3:_R_EW3 + ENC_HID, 0:LATENT]           # (32, 8)
    P['MG']  = w[_R_MG:_R_MG + LATENT, 0:4 * D2]              # (8, 256)
    P['SJT'] = w[_R_SJT:_R_SJT + 4 * D2, 0:2 * LATENT]        # (256, 16)
    P['MT1'] = w[_R_MT1:_R_MT1 + 2 * LATENT, 0:JRW]           # (16, 128)
    P['SR']  = w[_R_SR:_R_SR + JRW, 0:LATENT]                 # (128, 8)
    P['SY']  = w[_R_SY:_R_SY + LATENT * CU, 0:OUT_PAD]        # (8, 128)
    P['eb1'] = b[0:1, 0:ENC_HID]
    P['eb2'] = b[1:2, 0:ENC_HID]
    P['eb3'] = b[2:3, 0:LATENT]
    P['bZ']  = b[3:4, 0:ZW_COLS]
    P['b2']  = b[4:5, 0:HID2]
    P['b3J'] = b[5:6, 0:JRW]
    P['b3B'] = b[6:7, 0:LATENT * CU]
    P['hw2'] = b[7:8, 0:H_HID]
    return P


def _trunk(z, P):
    """Shared per-stage trunk: gH(z) (stand-in Hamiltonian grad) + fused JR|B hidden a2."""
    za = jnp.tanh(_mm(z, P['WZ']) + P['bZ'])                   # (B, 160): one push + one tanh
    a1 = za[:, 0:HID2]                                         # (B, 128) lane-tile aligned
    t  = za[:, HID2:ZW_COLS]                                   # (B, 32)  second lane tile
    gH = _mm(P['hw2'] * (1.0 - t * t), P['hWT']) + MU * z      # (B, 8) closed-form grad H
    a2 = jnp.tanh(_mm(a1, P['W2']) + P['b2'])                  # (B, 128)
    return gH, a2


def _stage_dz(z, u, P):
    """pH_SHND_Core.compute_dz_and_output: dz only (first Heun stage)."""
    gH, a2 = _trunk(z, P)
    jr  = _mm(a2, P['W3J']) + P['b3J']           # (B,128)  [J flat | R flat]
    jrB = _mm(a2, P['W3B']) + P['b3B']           # (B,8)    B flat
    G4  = _mm(gH, P['MG'])                       # (B,256)  [gH_tile | gH_rep | gH_rep | 0]
    jr2 = jnp.concatenate([jr, jr], axis=1)      # (B,256)
    # one K=256 matmul: cols 0:8 = (J_f - J_f^T) gH , cols 8:16 = R_f^T gH
    JT1 = _mm(jr2 * G4, P['SJT'])                # (B,16)
    T1E = _mm(JT1, P['MT1'])                     # (B,128)  [0 | t1_tile]
    RgH = _mm(jr * T1E, P['SR'])                 # (B,8)    R_f (R_f^T gH)
    JgH = JT1[:, 0:LATENT]
    # TODO(synk): generalize the B-branch contraction for CU > 1.
    Bu  = jrB * u                                # (B,8)    B u  (CU == 1)
    return JgH - RgH + Bu - EPS * gH


def _stage_y(z, P):
    """Second Heun stage: only y = B(z)^T gH(z) is consumed by LatentIOModel."""
    gH, a2 = _trunk(z, P)
    jrB = _mm(a2, P['W3B']) + P['b3B']           # (B,8)
    return _mm(jrB * gH, P['SY'])                # (B,128), col 0 = y, rest 0


def _forward_math(x, w, b):
    """Full LatentIOModel forward (encoder + Heun step); returns (B, OUT_PAD)."""
    P = _unpack(w, b)
    # Encoder: Linear -> ReLU -> Linear -> ReLU -> Linear
    h = jnp.maximum(_mm(x, P['eW1']) + P['eb1'], 0.0)
    h = jnp.maximum(_mm(h, P['eW2']) + P['eb2'], 0.0)
    z = _mm(h, P['eW3']) + P['eb3']              # (B, 8)
    u = x[:, WIN_DIM - CU:WIN_DIM]               # last CU columns of the window
    dz1 = _stage_dz(z, u, P)                     # stage 1: dz only
    z1 = z + DT * dz1
    return _stage_y(z1, P)                       # stage 2: y only


# ---------------------------------- kernel ------------------------------------
def latent_io_kernel(x_ref, w_ref, b_ref, y_ref):
    y_ref[...] = _forward_math(x_ref[...], w_ref, b_ref)


def latent_io_forward(x, w_slab, b_slab, row_tile=MAX_ROW_TILE):
    bsz = x.shape[0]
    row_tile = min(row_tile, bsz)                # single grid step for small batches
    assert bsz % row_tile == 0, "batch must be a multiple of row_tile"
    # On v7x pass row_tile <= bsz // 2 so the "parallel" grid axis spans both TensorCores.
    y_pad = pl.pallas_call(
        latent_io_kernel,
        out_shape=jax.ShapeDtypeStruct((bsz, OUT_PAD), jnp.float32),
        grid_spec=pltpu.PrefetchScalarGridSpec(
            num_scalar_prefetch=0,
            grid=(bsz // row_tile,),
            in_specs=[
                pl.BlockSpec((row_tile, WIN_DIM), lambda i: (i, 0)),
                pl.BlockSpec((W_ROWS, SLAB_COLS), lambda i: (0, 0)),  # resident bf16 slab
                pl.BlockSpec((B_ROWS, SLAB_COLS), lambda i: (0, 0)),  # resident f32 biases
            ],
            out_specs=pl.BlockSpec((row_tile, OUT_PAD), lambda i: (i, 0)),
        ),
        compiler_params=pltpu.CompilerParams(
            dimension_semantics=("parallel",)),
    )(x, w_slab, b_slab)
    return y_pad[:, :CU]


# ------------------------------- parameter init --------------------------------
def init_params(key):
    def lin(k, fan_in, fan_out):
        kw, kb = jax.random.split(k)
        w = jax.random.normal(kw, (fan_in, fan_out), jnp.float32) / jnp.sqrt(fan_in)
        b = 0.01 * jax.random.normal(kb, (1, fan_out), jnp.float32)
        return w, b

    ks = jax.random.split(key, 11)
    p = {}
    p['eW1'], p['eb1'] = lin(ks[0], WIN_DIM, ENC_HID)
    p['eW2'], p['eb2'] = lin(ks[1], ENC_HID, ENC_HID)
    p['eW3'], p['eb3'] = lin(ks[2], ENC_HID, LATENT)
    # stand-in Hamiltonian (no bias, mirroring PLNet(use_bias=False))
    p['hW']  = jax.random.normal(ks[3], (LATENT, H_HID), jnp.float32) / jnp.sqrt(LATENT)
    p['hw2'] = jax.random.normal(ks[4], (1, H_HID), jnp.float32) / jnp.sqrt(H_HID)
    # JR_net
    p['jW1'], p['jb1'] = lin(ks[5], LATENT, JR_HID)
    p['jW2'], p['jb2'] = lin(ks[6], JR_HID, JR_HID)
    p['jW3'], p['jb3'] = lin(ks[7], JR_HID, 2 * LATENT * LATENT)
    # Bnet
    p['bW1'], p['bb1'] = lin(ks[8], LATENT, JR_HID)
    p['bW2'], p['bb2'] = lin(ks[9], JR_HID, JR_HID)
    p['bW3'], p['bb3'] = lin(ks[10], JR_HID, LATENT * CU)
    return p


def _sel(shape, fn):
    r = jax.lax.broadcasted_iota(jnp.int32, shape, 0)
    c = jax.lax.broadcasted_iota(jnp.int32, shape, 1)
    return fn(r, c).astype(jnp.float32)


def pack_params(p):
    f32 = jnp.float32
    d = LATENT
    z64 = jnp.zeros((JR_HID, JR_HID), f32)

    # layer-wise fusion of JR_net and Bnet (+ hW for the combined first push)
    W1f = jnp.concatenate([p['jW1'], p['bW1']], axis=1)                         # (8, 128)
    W2f = jnp.block([[p['jW2'], z64], [z64, p['bW2']]])                         # (128, 128)
    W3J = jnp.concatenate([p['jW3'], jnp.zeros((JR_HID, JRW), f32)], axis=0)    # (128, 128)
    W3B = jnp.concatenate([jnp.zeros((JR_HID, d * CU), f32), p['bW3']], axis=0)  # (128, 8)
    WZ  = jnp.concatenate([W1f, p['hW']], axis=1)                               # (8, 160)

    b1f = jnp.concatenate([p['jb1'], p['bb1']], axis=1)                         # (1, 128)
    b2f = jnp.concatenate([p['jb2'], p['bb2']], axis=1)                         # (1, 128)
    bZ  = jnp.concatenate([b1f, jnp.zeros((1, H_HID), f32)], axis=1)            # (1, 160)

    # host-precomputed 0/1 selector matrices (go into the resident bf16 slab)
    S_row  = _sel((d * d, d), lambda k, i: (k // d) == i)
    S_col  = _sel((d * d, d), lambda k, j: (k % d) == j)
    M_rep  = _sel((d, d * d), lambda i, k: (k // d) == i)
    M_tile = _sel((d, d * d), lambda j, k: (k % d) == j)
    S_y    = _sel((d * CU, OUT_PAD), lambda k, c: (k % CU) == c)

    MG = jnp.concatenate([M_tile, M_rep, M_rep, jnp.zeros((d, d * d), f32)], axis=1)  # (8, 256)
    SJT = jnp.zeros((4 * d * d, 2 * d), f32)
    SJT = SJT.at[0:d * d, 0:d].set(S_row)                 # P1 @ S_row   ->  J_f gH
    SJT = SJT.at[d * d:2 * d * d, d:2 * d].set(S_col)     # P3 @ S_col   ->  R_f^T gH
    SJT = SJT.at[2 * d * d:3 * d * d, 0:d].set(-S_col)    # -P2 @ S_col  -> -J_f^T gH
    MT1 = jnp.zeros((2 * d, JRW), f32)
    MT1 = MT1.at[d:2 * d, d * d:2 * d * d].set(M_tile)    # t1 -> [0 | t1_tile]
    SR  = jnp.concatenate([jnp.zeros((d * d, d), f32), S_row], axis=0)           # (128, 8)

    def put(slab, r, m):
        return slab.at[r:r + m.shape[0], 0:m.shape[1]].set(m.astype(slab.dtype))

    w = jnp.zeros((W_ROWS, SLAB_COLS), jnp.bfloat16)
    w = put(w, _R_WZ,  WZ)
    w = put(w, _R_HWT, p['hW'].T)
    w = put(w, _R_W2,  W2f)
    w = put(w, _R_W3J, W3J)
    w = put(w, _R_W3B, W3B)
    w = put(w, _R_EW1, p['eW1'])
    w = put(w, _R_EW2, p['eW2'])
    w = put(w, _R_EW3, p['eW3'])
    w = put(w, _R_MG,  MG)
    w = put(w, _R_SJT, SJT)
    w = put(w, _R_MT1, MT1)
    w = put(w, _R_SR,  SR)
    w = put(w, _R_SY,  S_y)

    b = jnp.zeros((B_ROWS, SLAB_COLS), jnp.float32)
    for i, vec in enumerate([p['eb1'], p['eb2'], p['eb3'], bZ, b2f,
                             p['jb3'], p['bb3'], p['hw2']]):
        b = b.at[i:i + 1, 0:vec.shape[1]].set(vec)
    return w, b


# ----------------------------------- main --------------------------------------
if __name__ == "__main__":
    key = jax.random.PRNGKey(0)
    k_x, k_p = jax.random.split(key)

    x_window = jax.random.normal(k_x, (BATCH, WIN_DIM), jnp.float32)
    w_slab, b_slab = pack_params(init_params(k_p))

    y_kernel = jax.block_until_ready(latent_io_forward(x_window, w_slab, b_slab))

    # pure-JAX reference (same packed math, no Pallas) for a sanity check
    y_ref = jax.block_until_ready(_forward_math(x_window, w_slab, b_slab)[:, :CU])

    assert y_kernel.shape == (BATCH, CU)
    assert jnp.allclose(y_kernel, y_ref, rtol=1e-2, atol=1e-2), (
        f"mismatch:\nkernel={y_kernel[:8]}\nref={y_ref[:8]}")

    print("KERNEL_OK")
</pallas_src>

<mosaic_0001>
module attributes {stable_mosaic.version = 11 : i64} {
  func.func @latent_io_kernel(%arg0: i32, %arg1: memref<256x16xf32, #tpu.memory_space<vmem>>, %arg2: memref<944x256xbf16, #tpu.memory_space<vmem>>, %arg3: memref<8x256xf32, #tpu.memory_space<vmem>>, %arg4: memref<256x128xf32, #tpu.memory_space<vmem>>) attributes {dimension_semantics = [#tpu.dimension_semantics<parallel>], iteration_bounds = array<i64: 1>, scalar_prefetch = 0 : i64, scratch_operands = 0 : i64, tpu.core_type = #tpu.core_type<tc>, window_params = [{transform_indices = @transform_0, window_bounds = array<i64: 256, 16>}, {pipeline_mode = #tpu.pipeline_mode<synchronous>, transform_indices = @transform_1, window_bounds = array<i64: 944, 256>}, {pipeline_mode = #tpu.pipeline_mode<synchronous>, transform_indices = @transform_2, window_bounds = array<i64: 8, 256>}, {transform_indices = @transform_3, window_bounds = array<i64: 256, 128>}]} {
    %c0 = arith.constant 0 : index
    %c0_0 = arith.constant 0 : index
    %0 = vector.load %arg1[%c0, %c0_0] : memref<256x16xf32, #tpu.memory_space<vmem>>, vector<256x16xf32>
    %c0_1 = arith.constant 0 : index
    %c0_2 = arith.constant 0 : index
    %1 = vector.load %arg2[%c0_1, %c0_2] : memref<944x256xbf16, #tpu.memory_space<vmem>>, vector<8x160xbf16>
    %c16 = arith.constant 16 : index
    %c0_3 = arith.constant 0 : index
    %2 = vector.load %arg2[%c16, %c0_3] : memref<944x256xbf16, #tpu.memory_space<vmem>>, vector<32x8xbf16>
    %c48 = arith.constant 48 : index
    %c0_4 = arith.constant 0 : index
    %3 = vector.load %arg2[%c48, %c0_4] : memref<944x256xbf16, #tpu.memory_space<vmem>>, vector<128x128xbf16>
    %c176 = arith.constant 176 : index
    %c0_5 = arith.constant 0 : index
    %4 = vector.load %arg2[%c176, %c0_5] : memref<944x256xbf16, #tpu.memory_space<vmem>>, vector<128x128xbf16>
    %c304 = arith.constant 304 : index
    %c0_6 = arith.constant 0 : index
    %5 = vector.load %arg2[%c304, %c0_6] : memref<944x256xbf16, #tpu.memory_space<vmem>>, vector<128x8xbf16>
    %c432 = arith.constant 432 : index
    %c0_7 = arith.constant 0 : index
    %6 = vector.load %arg2[%c432, %c0_7] : memref<944x256xbf16, #tpu.memory_space<vmem>>, vector<16x32xbf16>
    %c448 = arith.constant 448 : index
    %c0_8 = arith.constant 0 : index
    %7 = vector.load %arg2[%c448, %c0_8] : memref<944x256xbf16, #tpu.memory_space<vmem>>, vector<32x32xbf16>
    %c480 = arith.constant 480 : index
    %c0_9 = arith.constant 0 : index
    %8 = vector.load %arg2[%c480, %c0_9] : memref<944x256xbf16, #tpu.memory_space<vmem>>, vector<32x8xbf16>
    %c512 = arith.constant 512 : index
    %c0_10 = arith.constant 0 : index
    %9 = vector.load %arg2[%c512, %c0_10] : memref<944x256xbf16, #tpu.memory_space<vmem>>, vector<8x256xbf16>
    %c528 = arith.constant 528 : index
    %c0_11 = arith.constant 0 : index
    %10 = vector.load %arg2[%c528, %c0_11] : memref<944x256xbf16, #tpu.memory_space<vmem>>, vector<256x16xbf16>
    %c784 = arith.constant 784 : index
    %c0_12 = arith.constant 0 : index
    %11 = vector.load %arg2[%c784, %c0_12] : memref<944x256xbf16, #tpu.memory_space<vmem>>, vector<16x128xbf16>
    %c800 = arith.constant 800 : index
    %c0_13 = arith.constant 0 : index
    %12 = vector.load %arg2[%c800, %c0_13] : memref<944x256xbf16, #tpu.memory_space<vmem>>, vector<128x8xbf16>
    %c928 = arith.constant 928 : index
    %c0_14 = arith.constant 0 : index
    %13 = vector.load %arg2[%c928, %c0_14] : memref<944x256xbf16, #tpu.memory_space<vmem>>, vector<8x128xbf16>
    %c0_15 = arith.constant 0 : index
    %c0_16 = arith.constant 0 : index
    %14 = vector.load %arg3[%c0_15, %c0_16] : memref<8x256xf32, #tpu.memory_space<vmem>>, vector<1x32xf32>
    %c1 = arith.constant 1 : index
    %c0_17 = arith.constant 0 : index
    %15 = vector.load %arg3[%c1, %c0_17] : memref<8x256xf32, #tpu.memory_space<vmem>>, vector<1x32xf32>
    %c2 = arith.constant 2 : index
    %c0_18 = arith.constant 0 : index
    %16 = vector.load %arg3[%c2, %c0_18] : memref<8x256xf32, #tpu.memory_space<vmem>>, vector<1x8xf32>
    %c3 = arith.constant 3 : index
    %c0_19 = arith.constant 0 : index
    %17 = vector.load %arg3[%c3, %c0_19] : memref<8x256xf32, #tpu.memory_space<vmem>>, vector<1x160xf32>
    %c4 = arith.constant 4 : index
    %c0_20 = arith.constant 0 : index
    %18 = vector.load %arg3[%c4, %c0_20] : memref<8x256xf32, #tpu.memory_space<vmem>>, vector<1x128xf32>
    %c5 = arith.constant 5 : index
    %c0_21 = arith.constant 0 : index
    %19 = vector.load %arg3[%c5, %c0_21] : memref<8x256xf32, #tpu.memory_space<vmem>>, vector<1x128xf32>
    %c6 = arith.constant 6 : index
    %c0_22 = arith.constant 0 : index
    %20 = vector.load %arg3[%c6, %c0_22] : memref<8x256xf32, #tpu.memory_space<vmem>>, vector<1x8xf32>
    %c7 = arith.constant 7 : index
    %c0_23 = arith.constant 0 : index
    %21 = vector.load %arg3[%c7, %c0_23] : memref<8x256xf32, #tpu.memory_space<vmem>>, vector<1x32xf32>
    %22 = arith.truncf %0 : vector<256x16xf32> to vector<256x16xbf16>
    %cst = arith.constant dense<0.000000e+00> : vector<256x32xf32>
    %23 = tpu.matmul %22, %6, %cst {dimension_numbers = #tpu.dot_dimension_numbers<[1], [0], [0], [1], [0, 0, 1, 1], [], []>} : vector<256x16xbf16>, vector<16x32xbf16>, vector<256x32xf32> -> vector<256x32xf32>
    %24 = vector.broadcast %14 : vector<1x32xf32> to vector<256x32xf32>
    %25 = arith.addf %23, %24 : vector<256x32xf32>
    %cst_24 = arith.constant 0.000000e+00 : f32
    %26 = vector.broadcast %cst_24 : f32 to vector<256x32xf32>
    %27 = arith.maximumf %25, %26 : vector<256x32xf32>
    %28 = arith.truncf %27 : vector<256x32xf32> to vector<256x32xbf16>
    %cst_25 = arith.constant dense<0.000000e+00> : vector<256x32xf32>
    %29 = tpu.matmul %28, %7, %cst_25 {dimension_numbers = #tpu.dot_dimension_numbers<[1], [0], [0], [1], [0, 0, 1, 1], [], []>} : vector<256x32xbf16>, vector<32x32xbf16>, vector<256x32xf32> -> vector<256x32xf32>
    %30 = vector.broadcast %15 : vector<1x32xf32> to vector<256x32xf32>
    %31 = arith.addf %29, %30 : vector<256x32xf32>
    %cst_26 = arith.constant 0.000000e+00 : f32
    %32 = vector.broadcast %cst_26 : f32 to vector<256x32xf32>
    %33 = arith.maximumf %31, %32 : vector<256x32xf32>
    %34 = arith.truncf %33 : vector<256x32xf32> to vector<256x32xbf16>
    %cst_27 = arith.constant dense<0.000000e+00> : vector<256x8xf32>
    %35 = tpu.matmul %34, %8, %cst_27 {dimension_numbers = #tpu.dot_dimension_numbers<[1], [0], [0], [1], [0, 0, 1, 1], [], []>} : vector<256x32xbf16>, vector<32x8xbf16>, vector<256x8xf32> -> vector<256x8xf32>
    %36 = vector.broadcast %16 : vector<1x8xf32> to vector<256x8xf32>
    %37 = arith.addf %35, %36 : vector<256x8xf32>
    %38 = vector.extract_strided_slice %0 {offsets = [0, 15], sizes = [256, 1], strides = [1, 1]} : vector<256x16xf32> to vector<256x1xf32>
    %39 = arith.truncf %37 : vector<256x8xf32> to vector<256x8xbf16>
    %cst_28 = arith.constant dense<0.000000e+00> : vector<256x160xf32>
    %40 = tpu.matmul %39, %1, %cst_28 {dimension_numbers = #tpu.dot_dimension_numbers<[1], [0], [0], [1], [0, 0, 1, 1], [], []>} : vector<256x8xbf16>, vector<8x160xbf16>, vector<256x160xf32> -> vector<256x160xf32>
    %41 = vector.broadcast %17 : vector<1x160xf32> to vector<256x160xf32>
    %42 = arith.addf %40, %41 : vector<256x160xf32>
    %43 = math.tanh %42 : vector<256x160xf32>
    %44 = vector.extract_strided_slice %43 {offsets = [0, 0], sizes = [256, 128], strides = [1, 1]} : vector<256x160xf32> to vector<256x128xf32>
    %45 = vector.extract_strided_slice %43 {offsets = [0, 128], sizes = [256, 32], strides = [1, 1]} : vector<256x160xf32> to vector<256x32xf32>
    %46 = arith.mulf %45, %45 : vector<256x32xf32>
    %cst_29 = arith.constant 1.000000e+00 : f32
    %47 = vector.broadcast %cst_29 : f32 to vector<256x32xf32>
    %48 = arith.subf %47, %46 : vector<256x32xf32>
    %49 = vector.broadcast %21 : vector<1x32xf32> to vector<256x32xf32>
    %50 = arith.mulf %49, %48 : vector<256x32xf32>
    %51 = arith.truncf %50 : vector<256x32xf32> to vector<256x32xbf16>
    %cst_30 = arith.constant dense<0.000000e+00> : vector<256x8xf32>
    %52 = tpu.matmul %51, %2, %cst_30 {dimension_numbers = #tpu.dot_dimension_numbers<[1], [0], [0], [1], [0, 0, 1, 1], [], []>} : vector<256x32xbf16>, vector<32x8xbf16>, vector<256x8xf32> -> vector<256x8xf32>
    %cst_31 = arith.constant 1.000000e-01 : f32
    %53 = vector.broadcast %cst_31 : f32 to vector<256x8xf32>
    %54 = arith.mulf %53, %37 : vector<256x8xf32>
    %55 = arith.addf %52, %54 : vector<256x8xf32>
    %56 = arith.truncf %44 : vector<256x128xf32> to vector<256x128xbf16>
    %cst_32 = arith.constant dense<0.000000e+00> : vector<256x128xf32>
    %57 = tpu.matmul %56, %3, %cst_32 {dimension_numbers = #tpu.dot_dimension_numbers<[1], [0], [0], [1], [0, 0, 1, 1], [], []>} : vector<256x128xbf16>, vector<128x128xbf16>, vector<256x128xf32> -> vector<256x128xf32>
    %58 = vector.broadcast %18 : vector<1x128xf32> to vector<256x128xf32>
    %59 = arith.addf %57, %58 : vector<256x128xf32>
    %60 = math.tanh %59 : vector<256x128xf32>
    %61 = arith.truncf %60 : vector<256x128xf32> to vector<256x128xbf16>
    %cst_33 = arith.constant dense<0.000000e+00> : vector<256x128xf32>
    %62 = tpu.matmul %61, %4, %cst_33 {dimension_numbers = #tpu.dot_dimension_numbers<[1], [0], [0], [1], [0, 0, 1, 1], [], []>} : vector<256x128xbf16>, vector<128x128xbf16>, vector<256x128xf32> -> vector<256x128xf32>
    %63 = vector.broadcast %19 : vector<1x128xf32> to vector<256x128xf32>
    %64 = arith.addf %62, %63 : vector<256x128xf32>
    %65 = arith.truncf %60 : vector<256x128xf32> to vector<256x128xbf16>
    %cst_34 = arith.constant dense<0.000000e+00> : vector<256x8xf32>
    %66 = tpu.matmul %65, %5, %cst_34 {dimension_numbers = #tpu.dot_dimension_numbers<[1], [0], [0], [1], [0, 0, 1, 1], [], []>} : vector<256x128xbf16>, vector<128x8xbf16>, vector<256x8xf32> -> vector<256x8xf32>
    %67 = vector.broadcast %20 : vector<1x8xf32> to vector<256x8xf32>
    %68 = arith.addf %66, %67 : vector<256x8xf32>
    %69 = arith.truncf %55 : vector<256x8xf32> to vector<256x8xbf16>
    %cst_35 = arith.constant dense<0.000000e+00> : vector<256x256xf32>
    %70 = tpu.matmul %69, %9, %cst_35 {dimension_numbers = #tpu.dot_dimension_numbers<[1], [0], [0], [1], [0, 0, 1, 1], [], []>} : vector<256x8xbf16>, vector<8x256xbf16>, vector<256x256xf32> -> vector<256x256xf32>
    %71 = tpu.concatenate %64, %64 in 1 : vector<256x128xf32>, vector<256x128xf32> -> vector<256x256xf32>
    %72 = arith.mulf %71, %70 : vector<256x256xf32>
    %73 = arith.truncf %72 : vector<256x256xf32> to vector<256x256xbf16>
    %cst_36 = arith.constant dense<0.000000e+00> : vector<256x16xf32>
    %74 = tpu.matmul %73, %10, %cst_36 {dimension_numbers = #tpu.dot_dimension_numbers<[1], [0], [0], [1], [0, 0, 1, 1], [], []>} : vector<256x256xbf16>, vector<256x16xbf16>, vector<256x16xf32> -> vector<256x16xf32>
    %75 = arith.truncf %74 : vector<256x16xf32> to vector<256x16xbf16>
    %cst_37 = arith.constant dense<0.000000e+00> : vector<256x128xf32>
    %76 = tpu.matmul %75, %11, %cst_37 {dimension_numbers = #tpu.dot_dimension_numbers<[1], [0], [0], [1], [0, 0, 1, 1], [], []>} : vector<256x16xbf16>, vector<16x128xbf16>, vector<256x128xf32> -> vector<256x128xf32>
    %77 = arith.mulf %64, %76 : vector<256x128xf32>
    %78 = arith.truncf %77 : vector<256x128xf32> to vector<256x128xbf16>
    %cst_38 = arith.constant dense<0.000000e+00> : vector<256x8xf32>
    %79 = tpu.matmul %78, %12, %cst_38 {dimension_numbers = #tpu.dot_dimension_numbers<[1], [0], [0], [1], [0, 0, 1, 1], [], []>} : vector<256x128xbf16>, vector<128x8xbf16>, vector<256x8xf32> -> vector<256x8xf32>
    %80 = vector.extract_strided_slice %74 {offsets = [0, 0], sizes = [256, 8], strides = [1, 1]} : vector<256x16xf32> to vector<256x8xf32>
    %81 = vector.broadcast %38 : vector<256x1xf32> to vector<256x8xf32>
    %82 = arith.mulf %68, %81 : vector<256x8xf32>
    %83 = arith.subf %80, %79 : vector<256x8xf32>
    %84 = arith.addf %83, %82 : vector<256x8xf32>
    %cst_39 = arith.constant 0.00999999977 : f32
    %85 = vector.broadcast %cst_39 : f32 to vector<256x8xf32>
    %86 = arith.mulf %85, %55 : vector<256x8xf32>
    %87 = arith.subf %84, %86 : vector<256x8xf32>
    %cst_40 = arith.constant 1.000000e+00 : f32
    %88 = vector.broadcast %cst_40 : f32 to vector<256x8xf32>
    %89 = arith.mulf %88, %87 : vector<256x8xf32>
    %90 = arith.addf %37, %89 : vector<256x8xf32>
    %91 = arith.truncf %90 : vector<256x8xf32> to vector<256x8xbf16>
    %cst_41 = arith.constant dense<0.000000e+00> : vector<256x160xf32>
    %92 = tpu.matmul %91, %1, %cst_41 {dimension_numbers = #tpu.dot_dimension_numbers<[1], [0], [0], [1], [0, 0, 1, 1], [], []>} : vector<256x8xbf16>, vector<8x160xbf16>, vector<256x160xf32> -> vector<256x160xf32>
    %93 = vector.broadcast %17 : vector<1x160xf32> to vector<256x160xf32>
    %94 = arith.addf %92, %93 : vector<256x160xf32>
    %95 = math.tanh %94 : vector<256x160xf32>
    %96 = vector.extract_strided_slice %95 {offsets = [0, 0], sizes = [256, 128], strides = [1, 1]} : vector<256x160xf32> to vector<256x128xf32>
    %97 = vector.extract_strided_slice %95 {offsets = [0, 128], sizes = [256, 32], strides = [1, 1]} : vector<256x160xf32> to vector<256x32xf32>
    %98 = arith.mulf %97, %97 : vector<256x32xf32>
    %cst_42 = arith.constant 1.000000e+00 : f32
    %99 = vector.broadcast %cst_42 : f32 to vector<256x32xf32>
    %100 = arith.subf %99, %98 : vector<256x32xf32>
    %101 = vector.broadcast %21 : vector<1x32xf32> to vector<256x32xf32>
    %102 = arith.mulf %101, %100 : vector<256x32xf32>
    %103 = arith.truncf %102 : vector<256x32xf32> to vector<256x32xbf16>
    %cst_43 = arith.constant dense<0.000000e+00> : vector<256x8xf32>
    %104 = tpu.matmul %103, %2, %cst_43 {dimension_numbers = #tpu.dot_dimension_numbers<[1], [0], [0], [1], [0, 0, 1, 1], [], []>} : vector<256x32xbf16>, vector<32x8xbf16>, vector<256x8xf32> -> vector<256x8xf32>
    %cst_44 = arith.constant 1.000000e-01 : f32
    %105 = vector.broadcast %cst_44 : f32 to vector<256x8xf32>
    %106 = arith.mulf %105, %90 : vector<256x8xf32>
    %107 = arith.addf %104, %106 : vector<256x8xf32>
    %108 = arith.truncf %96 : vector<256x128xf32> to vector<256x128xbf16>
    %cst_45 = arith.constant dense<0.000000e+00> : vector<256x128xf32>
    %109 = tpu.matmul %108, %3, %cst_45 {dimension_numbers = #tpu.dot_dimension_numbers<[1], [0], [0], [1], [0, 0, 1, 1], [], []>} : vector<256x128xbf16>, vector<128x128xbf16>, vector<256x128xf32> -> vector<256x128xf32>
    %110 = vector.broadcast %18 : vector<1x128xf32> to vector<256x128xf32>
    %111 = arith.addf %109, %110 : vector<256x128xf32>
    %112 = math.tanh %111 : vector<256x128xf32>
    %113 = arith.truncf %112 : vector<256x128xf32> to vector<256x128xbf16>
    %cst_46 = arith.constant dense<0.000000e+00> : vector<256x8xf32>
    %114 = tpu.matmul %113, %5, %cst_46 {dimension_numbers = #tpu.dot_dimension_numbers<[1], [0], [0], [1], [0, 0, 1, 1], [], []>} : vector<256x128xbf16>, vector<128x8xbf16>, vector<256x8xf32> -> vector<256x8xf32>
    %115 = vector.broadcast %20 : vector<1x8xf32> to vector<256x8xf32>
    %116 = arith.addf %114, %115 : vector<256x8xf32>
    %117 = arith.mulf %116, %107 : vector<256x8xf32>
    %118 = arith.truncf %117 : vector<256x8xf32> to vector<256x8xbf16>
    %cst_47 = arith.constant dense<0.000000e+00> : vector<256x128xf32>
    %119 = tpu.matmul %118, %13, %cst_47 {dimension_numbers = #tpu.dot_dimension_numbers<[1], [0], [0], [1], [0, 0, 1, 1], [], []>} : vector<256x8xbf16>, vector<8x128xbf16>, vector<256x128xf32> -> vector<256x128xf32>
    %c0_48 = arith.constant 0 : index
    %c0_49 = arith.constant 0 : index
    %120 = vector.load %arg4[%c0_48, %c0_49] : memref<256x128xf32, #tpu.memory_space<vmem>>, vector<256x128xf32>
    tpu.vector_store %arg4[%c0_48, %c0_49], %119 {strides = array<i32>} : memref<256x128xf32, #tpu.memory_space<vmem>>, vector<256x128xf32>,
    return
  }
  func.func @transform_0(%arg0: i32) -> (i32, i32) {
    %c0_i32 = arith.constant 0 : i32
    %c0_i32_0 = arith.constant 0 : i32
    return %arg0, %c0_i32 : i32, i32
  }
  func.func @transform_1(%arg0: i32) -> (i32, i32) {
    %c0_i32 = arith.constant 0 : i32
    %c0_i32_0 = arith.constant 0 : i32
    %c0_i32_1 = arith.constant 0 : i32
    return %c0_i32, %c0_i32_0 : i32, i32
  }
  func.func @transform_2(%arg0: i32) -> (i32, i32) {
    %c0_i32 = arith.constant 0 : i32
    %c0_i32_0 = arith.constant 0 : i32
    %c0_i32_1 = arith.constant 0 : i32
    return %c0_i32, %c0_i32_0 : i32, i32
  }
  func.func @transform_3(%arg0: i32) -> (i32, i32) {
    %c0_i32 = arith.constant 0 : i32
    %c0_i32_0 = arith.constant 0 : i32
    return %arg0, %c0_i32 : i32, i32
  }
}

</mosaic_0001>

<llo_original>
// kernel: tpu_custom_call.1
$region0: #{tpu_custom_call.1}
  #allocation0 [shape = 'u32[]', space=smem, size = 0x4, offset = 0x4, fixed_abs, tag = 'smem constant byte address 0x4 - core index']
  #allocation1 [shape = 'u32[72,128]{1,0:T(1,128)}', space=vmem, size = 0x9000, scoped, tag = 'internal scratch']
  %s0 = inlined_call_operand.vmem [shape: f32[256,16], index: 0, kind: input, shape index: {}]
  %s1 = inlined_call_operand.hbm [shape: bf16[944,256], index: 1, kind: input, shape index: {}]
  %s2 = inlined_call_operand.vmem [shape: f32[8,256], index: 2, kind: input, shape index: {}]
  %s3 = inlined_call_operand.hbm [shape: f32[256,128], index: 3, kind: output, shape index: {}]
  %s4 = sld [smem:[#allocation0]]
  $region26: #{tpu_custom_call.1} parent=0
    _
  %s6 = ssub.s32 1, %s4
  %s7 = scalar_select 0, %s6, %s4
  $region1: #{tpu_custom_call.1} parent=0
    #allocation2 [shape = 'u8[483328]{0}', space=vmem, size = 0x76000, scoped, tag = 'input window, operand 1, single buffered']
    #allocation3 [shape = 's32[1]{0}', space=sflag, size = 0x4, scoped, tag = 'scoped memory for tpu_custom_call.1']
    #allocation4 [shape = 's32[1]{0}', space=sflag, size = 0x4, scoped, tag = 'scoped memory for tpu_custom_call.1']
    #allocation5 [shape = 'u8[131072]{0}', space=vmem, size = 0x20000, scoped, tag = 'output window, operand 0, single buffered']
    %8 = vsyncpa [#allocation3], 0
    %9 = vsyncpa [#allocation4], 0
    // Predicated region
    $region2: #{tpu_custom_call.1} parent=1 // pred_check
      _
    $region3: #{tpu_custom_call.1} parent=1 // pred_check_branch
      %11 = sbr.rel (0) target = $region5
    $region4: #{tpu_custom_call.1} parent=1 // pred_region
      _
    $region5: #{tpu_custom_call.1} parent=1 // pred_fallthru
      _
    // Predicated region
    $region6: #{tpu_custom_call.1} parent=1 // pred_check
      _
    $region7: #{tpu_custom_call.1} parent=1 // pred_check_branch
      %13 = sbr.rel (0) target = $region9
    $region8: #{tpu_custom_call.1} parent=1 // pred_region
      %15 = vsyncadd [#allocation3], 0
      %s16 = sshll.u32 %s1, 4
      %s17 = int_to_ptr.hbm [resolvable:$true] %s16
      %s18 = sshll.u32 [#allocation2], 4
      %s19 = int_to_ptr.vmem [resolvable:$true] %s18
      %24 = dma.hbm_to_vmem [thread:$0]  %s17, 15104, %s19, [#allocation3], 128, 128, 8
    $region9: #{tpu_custom_call.1} parent=1 // pred_fallthru
      _
    // Predicated region
    $region10: #{tpu_custom_call.1} parent=1 // pred_check
      _
    $region11: #{tpu_custom_call.1} parent=1 // pred_check_branch
      %26 = sbr.rel (0) target = $region13
    $region12: #{tpu_custom_call.1} parent=1 // pred_region
      _
    $region13: #{tpu_custom_call.1} parent=1 // pred_fallthru
      _
    // Predicated region
    $region14: #{tpu_custom_call.1} parent=1 // pred_check
      _
    $region15: #{tpu_custom_call.1} parent=1 // pred_check_branch
      %28 = sbr.rel (0) target = $region17
    $region16: #{tpu_custom_call.1} parent=1 // pred_region
      %30 = dma.done [#allocation3], 15104
    $region17: #{tpu_custom_call.1} parent=1 // pred_fallthru
      _
    %v32 = vld [vmem:[%s0] sm:$0xff]
    %v33 = vld [vmem:[%s0 + $0x8] sm:$0xff]
    %v34 = vld [vmem:[%s0 + $0x10] sm:$0xff]
    %v35 = vld [vmem:[%s0 + $0x18] sm:$0xff]
    %v36 = vld [vmem:[%s0 + $0x20] sm:$0xff]
    %v37 = vld [vmem:[%s0 + $0x28] sm:$0xff]
    %v38 = vld [vmem:[%s0 + $0x30] sm:$0xff]
    %v39 = vld [vmem:[%s0 + $0x38] sm:$0xff]
    %v40 = vld [vmem:[%s0 + $0x40] sm:$0xff]
    %v41 = vld [vmem:[%s0 + $0x48] sm:$0xff]
    %v42 = vld [vmem:[%s0 + $0x50] sm:$0xff]
    %v43 = vld [vmem:[%s0 + $0x58] sm:$0xff]
    %v44 = vld [vmem:[%s0 + $0x60] sm:$0xff]
    %v45 = vld [vmem:[%s0 + $0x68] sm:$0xff]
    %v46 = vld [vmem:[%s0 + $0x70] sm:$0xff]
    %v47 = vld [vmem:[%s0 + $0x78] sm:$0xff]
    %v48 = vld [vmem:[%s0 + $0x80] sm:$0xff]
    %v49 = vld [vmem:[%s0 + $0x88] sm:$0xff]
    %v50 = vld [vmem:[%s0 + $0x90] sm:$0xff]
    %v51 = vld [vmem:[%s0 + $0x98] sm:$0xff]
    %v52 = vld [vmem:[%s0 + $0xa0] sm:$0xff]
    %v53 = vld [vmem:[%s0 + $0xa8] sm:$0xff]
    %v54 = vld [vmem:[%s0 + $0xb0] sm:$0xff]
    %v55 = vld [vmem:[%s0 + $0xb8] sm:$0xff]
    %v56 = vld [vmem:[%s0 + $0xc0] sm:$0xff]
    %v57 = vld [vmem:[%s0 + $0xc8] sm:$0xff]
    %v58 = vld [vmem:[%s0 + $0xd0] sm:$0xff]
    %v59 = vld [vmem:[%s0 + $0xd8] sm:$0xff]
    %v60 = vld [vmem:[%s0 + $0xe0] sm:$0xff]
    %v61 = vld [vmem:[%s0 + $0xe8] sm:$0xff]
    %v62 = vld [vmem:[%s0 + $0xf0] sm:$0xff]
    %v63 = vld [vmem:[%s0 + $0xf8] sm:$0xff]
    %v64 = vld [vmem:[#allocation2] sm:$0xff]
    %v65 = vld [vmem:[#allocation2 + $0x10] sm:$0xf]
    %v66 = vld [vmem:[#allocation2 + $0x18] sm:$0xf]
    %v67 = vld [vmem:[#allocation2 + $0x20] sm:$0xf]
    %v68 = vld [vmem:[#allocation2 + $0x28] sm:$0xf]
    %v69 = vld [vmem:[#allocation2 + $0x30] sm:$0xf]
    %v70 = vld [vmem:[#allocation2 + $0x38] sm:$0xf]
    %v71 = vld [vmem:[#allocation2 + $0x40] sm:$0xf]
    %v72 = vld [vmem:[#allocation2 + $0x48] sm:$0xf]
    %v73 = vld [vmem:[#allocation2 + $0x50] sm:$0xf]
    %v74 = vld [vmem:[#allocation2 + $0x58] sm:$0xf]
    %v75 = vld [vmem:[#allocation2 + $0x60] sm:$0xf]
    %v76 = vld [vmem:[#allocation2 + $0x68] sm:$0xf]
    %v77 = vld [vmem:[#allocation2 + $0x70] sm:$0xf]
    %v78 = vld [vmem:[#allocation2 + $0x78] sm:$0xf]
    %v79 = vld [vmem:[#allocation2 + $0x80] sm:$0xf]
    %v80 = vld [vmem:[#allocation2 + $0x88] sm:$0xf]
    %v81 = vld [vmem:[#allocation2 + $0x90] sm:$0xf]
    %v82 = vld [vmem:[#allocation2 + $0x98] sm:$0xf]
    %v83 = vld [vmem:[#allocation2 + $0xa0] sm:$0xf]
    %v84 = vld [vmem:[#allocation2 + $0xa8] sm:$0xf]
    %v85 = vld [vmem:[#allocation2 + $0xb0] sm:$0xf]
    %v86 = vld [vmem:[#allocation2 + $0xb8] sm:$0xf]
    %v87 = vld [vmem:[#allocation2 + $0xc0] sm:$0xf]
    %v88 = vld [vmem:[#allocation2 + $0xc8] sm:$0xf]
    %v89 = vld [vmem:[#allocation2 + $0xd0] sm:$0xf]
    %v90 = vld [vmem:[#allocation2 + $0xd8] sm:$0xf]
    %v91 = vld [vmem:[#allocation2 + $0xe0] sm:$0xf]
    %v92 = vld [vmem:[#allocation2 + $0xe8] sm:$0xf]
    %v93 = vld [vmem:[#allocation2 + $0xf0] sm:$0xf]
    %v94 = vld [vmem:[#allocation2 + $0xf8] sm:$0xf]
    %v95 = vld [vmem:[#allocation2 + $0x100] sm:$0xf]
    %v96 = vld [vmem:[#allocation2 + $0x108] sm:$0xf]
    %v97 = vld [vmem:[#allocation2 + $0x110] sm:$0xf]
    %v98 = vld [vmem:[#allocation2 + $0x118] sm:$0xf]
    %v99 = vld [vmem:[#allocation2 + $0x120] sm:$0xf]
    %v100 = vld [vmem:[#allocation2 + $0x128] sm:$0xf]
    %v101 = vld [vmem:[#allocation2 + $0x130] sm:$0xf]
    %v102 = vld [vmem:[#allocation2 + $0x138] sm:$0xf]
    %v103 = vld [vmem:[#allocation2 + $0x140] sm:$0xf]
    %v104 = vld [vmem:[#allocation2 + $0x148] sm:$0xf]
    %v105 = vld [vmem:[#allocation2 + $0x150] sm:$0xf]
    %v106 = vld [vmem:[#allocation2 + $0x158] sm:$0xf]
    %v107 = vld [vmem:[#allocation2 + $0x160] sm:$0xf]
    %v108 = vld [vmem:[#allocation2 + $0x168] sm:$0xf]
    %v109 = vld [vmem:[#allocation2 + $0x170] sm:$0xf]
    %v110 = vld [vmem:[#allocation2 + $0x178] sm:$0xf]
    %v111 = vld [vmem:[#allocation2 + $0x180] sm:$0xf]
    %v112 = vld [vmem:[#allocation2 + $0x188] sm:$0xf]
    %v113 = vld [vmem:[#allocation2 + $0x190] sm:$0xf]
    %v114 = vld [vmem:[#allocation2 + $0x198] sm:$0xf]
    %v115 = vld [vmem:[#allocation2 + $0x1a0] sm:$0xf]
    %v116 = vld [vmem:[#allocation2 + $0x1a8] sm:$0xf]
    %v117 = vld [vmem:[#allocation2 + $0x1b0] sm:$0xf]
    %v118 = vld [vmem:[#allocation2 + $0x1b8] sm:$0xf]
    %v119 = vld [vmem:[#allocation2 + $0x1c0] sm:$0xf]
    %v120 = vld [vmem:[#allocation2 + $0x1c8] sm:$0xf]
    %v121 = vld [vmem:[#allocation2 + $0x1d0] sm:$0xf]
    %v122 = vld [vmem:[#allocation2 + $0x1d8] sm:$0xf]
    %v123 = vld [vmem:[#allocation2 + $0x1e0] sm:$0xf]
    %v124 = vld [vmem:[#allocation2 + $0x1e8] sm:$0xf]
    %v125 = vld [vmem:[#allocation2 + $0x1f0] sm:$0xf]
    %v126 = vld [vmem:[#allocation2 + $0x1f8] sm:$0xf]
    %v127 = vld [vmem:[#allocation2 + $0x200] sm:$0xff]
    %v128 = vld [vmem:[#allocation2 + $0x210] sm:$0xf]
    %v129 = vld [vmem:[#allocation2 + $0x218] sm:$0xf]
    %v130 = vld [vmem:[#allocation2 + $0x220] sm:$0xf]
    %v131 = vld [vmem:[#allocation2 + $0x228] sm:$0xf]
    %v132 = vld [vmem:[#allocation2 + $0x230] sm:$0xf]
    %v133 = vld [vmem:[#allocation2 + $0x238] sm:$0xf]
    %v134 = vld [vmem:[#allocation2 + $0x240] sm:$0xf]
    %v135 = vld [vmem:[#allocation2 + $0x248] sm:$0xf]
    %v136 = vld [vmem:[#allocation2 + $0x250] sm:$0xf]
    %v137 = vld [vmem:[#allocation2 + $0x258] sm:$0xf]
    %v138 = vld [vmem:[#allocation2 + $0x260] sm:$0xf]
    %v139 = vld [vmem:[#allocation2 + $0x268] sm:$0xf]
    %v140 = vld [vmem:[#allocation2 + $0x270] sm:$0xf]
    %v141 = vld [vmem:[#allocation2 + $0x278] sm:$0xf]
    %v142 = vld [vmem:[#allocation2 + $0x280] sm:$0xf]
    %v143 = vld [vmem:[#allocation2 + $0x288] sm:$0xf]
    %v144 = vld [vmem:[#allocation2 + $0x290] sm:$0xf]
    %v145 = vld [vmem:[#allocation2 + $0x298] sm:$0xf]
    %v146 = vld [vmem:[#allocation2 + $0x2a0] sm:$0xf]
    %v147 = vld [vmem:[#allocation2 + $0x2a8] sm:$0xf]
    %v148 = vld [vmem:[#allocation2 + $0x2b0] sm:$0xf]
    %v149 = vld [vmem:[#allocation2 + $0x2b8] sm:$0xf]
    %v150 = vld [vmem:[#allocation2 + $0x2c0] sm:$0xf]
    %v151 = vld [vmem:[#allocation2 + $0x2c8] sm:$0xf]
    %v152 = vld [vmem:[#allocation2 + $0x2d0] sm:$0xf]
    %v153 = vld [vmem:[#allocation2 + $0x2d8] sm:$0xf]
    %v154 = vld [vmem:[#allocation2 + $0x2e0] sm:$0xf]
    %v155 = vld [vmem:[#allocation2 + $0x2e8] sm:$0xf]
    %v156 = vld [vmem:[#allocation2 + $0x2f0] sm:$0xf]
    %v157 = vld [vmem:[#allocation2 + $0x2f8] sm:$0xf]
    %v158 = vld [vmem:[#allocation2 + $0x300] sm:$0xf]
    %v159 = vld [vmem:[#allocation2 + $0x308] sm:$0xf]
    %v160 = vld [vmem:[#allocation2 + $0x310] sm:$0xf]
    %v161 = vld [vmem:[#allocation2 + $0x318] sm:$0xf]
    %v162 = vld [vmem:[#allocation2 + $0x320] sm:$0xf]
    %v163 = vld [vmem:[#allocation2 + $0x328] sm:$0xf]
    %v164 = vld [vmem:[#allocation2 + $0x330] sm:$0xf]
    %v165 = vld [vmem:[#allocation2 + $0x338] sm:$0xf]
    %v166 = vld [vmem:[#allocation2 + $0x340] sm:$0xf]
    %v167 = vld [vmem:[#allocation2 + $0x348] sm:$0xf]
    %v168 = vld [vmem:[#allocation2 + $0x350] sm:$0xf]
    %v169 = vld [vmem:[#allocation2 + $0x358] sm:$0xf]
    %v170 = vld [vmem:[#allocation2 + $0x360] sm:$0xf]
    %v171 = vld [vmem:[#allocation2 + $0x368] sm:$0xf]
    %v172 = vld [vmem:[#allocation2 + $0x370] sm:$0xf]
    %v173 = vld [vmem:[#allocation2 + $0x378] sm:$0xf]
    %v174 = vld [vmem:[#allocation2 + $0x380] sm:$0xf]
    %v175 = vld [vmem:[#allocation2 + $0x388] sm:$0xf]
    %v176 = vld [vmem:[#allocation2 + $0x390] sm:$0xf]
    %v177 = vld [vmem:[#allocation2 + $0x398] sm:$0xf]
    %v178 = vld [vmem:[#allocation2 + $0x3a0] sm:$0xf]
    %v179 = vld [vmem:[%s2] ss:$0 sm:$0xff]
    %v180 = vld [vmem:[%s2 + $0x1] ss:$0 sm:$0xff]
    %v181 = vld [vmem:[%s2 + $0x2] ss:$0 sm:$0xff]
    %s182 = scalar_lea.vmem %s2, 3
    %v183 = vld [vmem:[%s182] ss:$8 sm:$0x3]
    %v184 = vld [vmem:[%s2 + $0x4] ss:$0 sm:$0xff]
    %v185 = vld [vmem:[%s2 + $0x5] ss:$0 sm:$0xff]
    %v186 = vld [vmem:[%s2 + $0x6] ss:$0 sm:$0xff]
    %v187 = vld [vmem:[%s2 + $0x7] ss:$0 sm:$0xff]
    %v188 = vpack.c.bf16 %v33, %v32
    %v189 = vpack.c.bf16 %v35, %v34
    %v190 = vpack.c.bf16 %v37, %v36
    %v191 = vpack.c.bf16 %v39, %v38
    %v192 = vpack.c.bf16 %v41, %v40
    %v193 = vpack.c.bf16 %v43, %v42
    %v194 = vpack.c.bf16 %v45, %v44
    %v195 = vpack.c.bf16 %v47, %v46
    %v196 = vpack.c.bf16 %v49, %v48
    %v197 = vpack.c.bf16 %v51, %v50
    %v198 = vpack.c.bf16 %v53, %v52
    %v199 = vpack.c.bf16 %v55, %v54
    %v200 = vpack.c.bf16 %v57, %v56
    %v201 = vpack.c.bf16 %v59, %v58
    %v202 = vpack.c.bf16 %v61, %v60
    %v203 = vpack.c.bf16 %v63, %v62
    %v206 = vunpack.c.l.b16 %v117
    %v207 = vunpack.c.l.b16 %v118
    %v208 = vpack.c.b16 %v207, %v206
    %vm210 = vcmask 130048
    %v212 = vsel %vm210, %v188, 0
    %v215 = vsel %vm210, %v189, 0
    %v218 = vsel %vm210, %v190, 0
    %v221 = vsel %vm210, %v191, 0
    %v224 = vsel %vm210, %v192, 0
    %v227 = vsel %vm210, %v193, 0
    %v230 = vsel %vm210, %v194, 0
    %v233 = vsel %vm210, %v195, 0
    %v236 = vsel %vm210, %v196, 0
    %v239 = vsel %vm210, %v197, 0
    %v242 = vsel %vm210, %v198, 0
    %v245 = vsel %vm210, %v199, 0
    %v248 = vsel %vm210, %v200, 0
    %v251 = vsel %vm210, %v201, 0
    %v254 = vsel %vm210, %v202, 0
    %v257 = vsel %vm210, %v203, 0
    %259 = vmatpush.bf16.msra.mxu0 0
    %260 = vmatpush.bf16.msra.mxu0 0
    %261 = vmatpush.bf16.msra.mxu0 0
    %262 = vmatpush.bf16.msra.mxu0 0
    %263 = vmatpush.bf16.msra.mxu0 0
    %264 = vmatpush.bf16.msra.mxu0 0
    %265 = vmatpush.bf16.msra.mxu0 0
    %266 = vmatpush.bf16.msra.mxu0 %v208
    %267 = vmatmul.bf16.gmra.mxu0 %v212
    %v268 = vpop.f32.mrf.mxu0
    %v269 = vadd.f32 %v179, %v268
    %v270 = vpop.f32.mrf.mxu0
    %v271 = vadd.f32 %v179, %v270
    %272 = vmatmul.bf16.gmra.mxu0 %v215
    %v273 = vpop.f32.mrf.mxu0
    %v274 = vadd.f32 %v179, %v273
    %v275 = vpop.f32.mrf.mxu0
    %v276 = vadd.f32 %v179, %v275
    %277 = vmatmul.bf16.gmra.mxu0 %v218
    %v278 = vpop.f32.mrf.mxu0
    %v279 = vadd.f32 %v179, %v278
    %v280 = vpop.f32.mrf.mxu0
    %v281 = vadd.f32 %v179, %v280
    %282 = vmatmul.bf16.gmra.mxu0 %v221
    %v283 = vpop.f32.mrf.mxu0
    %v284 = vadd.f32 %v179, %v283
    %v285 = vpop.f32.mrf.mxu0
    %v286 = vadd.f32 %v179, %v285
    %287 = vmatmul.bf16.gmra.mxu0 %v224
    %v288 = vpop.f32.mrf.mxu0
    %v289 = vadd.f32 %v179, %v288
    %v290 = vpop.f32.mrf.mxu0
    %v291 = vadd.f32 %v179, %v290
    %292 = vmatmul.bf16.gmra.mxu0 %v227
    %v293 = vpop.f32.mrf.mxu0
    %v294 = vadd.f32 %v179, %v293
    %v295 = vpop.f32.mrf.mxu0
    %v296 = vadd.f32 %v179, %v295
    %297 = vmatmul.bf16.gmra.mxu0 %v230
    %v298 = vpop.f32.mrf.mxu0
    %v299 = vadd.f32 %v179, %v298
    %v300 = vpop.f32.mrf.mxu0
    %v301 = vadd.f32 %v179, %v300
    %302 = vmatmul.bf16.gmra.mxu0 %v233
    %v303 = vpop.f32.mrf.mxu0
    %v304 = vadd.f32 %v179, %v303
    %v305 = vpop.f32.mrf.mxu0
    %v306 = vadd.f32 %v179, %v305
    %307 = vmatmul.bf16.gmra.mxu0 %v236
    %v308 = vpop.f32.mrf.mxu0
    %v309 = vadd.f32 %v179, %v308
    %v310 = vpop.f32.mrf.mxu0
    %v311 = vadd.f32 %v179, %v310
    %312 = vmatmul.bf16.gmra.mxu0 %v239
    %v313 = vpop.f32.mrf.mxu0
    %v314 = vadd.f32 %v179, %v313
    %v315 = vpop.f32.mrf.mxu0
    %v316 = vadd.f32 %v179, %v315
    %317 = vmatmul.bf16.gmra.mxu0 %v242
    %v318 = vpop.f32.mrf.mxu0
    %v319 = vadd.f32 %v179, %v318
    %v320 = vpop.f32.mrf.mxu0
    %v321 = vadd.f32 %v179, %v320
    %322 = vmatmul.bf16.gmra.mxu0 %v245
    %v323 = vpop.f32.mrf.mxu0
    %v324 = vadd.f32 %v179, %v323
    %v325 = vpop.f32.mrf.mxu0
    %v326 = vadd.f32 %v179, %v325
    %327 = vmatmul.bf16.gmra.mxu0 %v248
    %v328 = vpop.f32.mrf.mxu0
    %v329 = vadd.f32 %v179, %v328
    %v330 = vpop.f32.mrf.mxu0
    %v331 = vadd.f32 %v179, %v330
    %332 = vmatmul.bf16.gmra.mxu0 %v251
    %v333 = vpop.f32.mrf.mxu0
    %v334 = vadd.f32 %v179, %v333
    %v335 = vpop.f32.mrf.mxu0
    %v336 = vadd.f32 %v179, %v335
    %337 = vmatmul.bf16.gmra.mxu0 %v254
    %v338 = vpop.f32.mrf.mxu0
    %v339 = vadd.f32 %v179, %v338
    %v340 = vpop.f32.mrf.mxu0
    %v341 = vadd.f32 %v179, %v340
    %342 = vmatmul.bf16.gmra.mxu0 %v257
    %v343 = vpop.f32.mrf.mxu0
    %v344 = vadd.f32 %v179, %v343
    %v345 = vpop.f32.mrf.mxu0
    %v346 = vadd.f32 %v179, %v345
    %347 = vdwg.mxu0
    %v348 = vmax.f32 %v269, 0.0
    %v349 = vmax.f32 %v271, 0.0
    %v350 = vmax.f32 %v274, 0.0
    %v351 = vmax.f32 %v276, 0.0
    %v352 = vmax.f32 %v279, 0.0
    %v353 = vmax.f32 %v281, 0.0
    %v354 = vmax.f32 %v284, 0.0
    %v355 = vmax.f32 %v286, 0.0
    %v356 = vmax.f32 %v289, 0.0
    %v357 = vmax.f32 %v291, 0.0
    %v358 = vmax.f32 %v294, 0.0
    %v359 = vmax.f32 %v296, 0.0
    %v360 = vmax.f32 %v299, 0.0
    %v361 = vmax.f32 %v301, 0.0
    %v362 = vmax.f32 %v304, 0.0
    %v363 = vmax.f32 %v306, 0.0
    %v364 = vmax.f32 %v309, 0.0
    %v365 = vmax.f32 %v311, 0.0
    %v366 = vmax.f32 %v314, 0.0
    %v367 = vmax.f32 %v316, 0.0
    %v368 = vmax.f32 %v319, 0.0
    %v369 = vmax.f32 %v321, 0.0
    %v370 = vmax.f32 %v324, 0.0
    %v371 = vmax.f32 %v326, 0.0
    %v372 = vmax.f32 %v329, 0.0
    %v373 = vmax.f32 %v331, 0.0
    %v374 = vmax.f32 %v334, 0.0
    %v375 = vmax.f32 %v336, 0.0
    %v376 = vmax.f32 %v339, 0.0
    %v377 = vmax.f32 %v341, 0.0
    %v378 = vmax.f32 %v344, 0.0
    %v379 = vmax.f32 %v346, 0.0
    %v380 = vpack.c.bf16 %v349, %v348
    %v381 = vpack.c.bf16 %v351, %v350
    %v382 = vpack.c.bf16 %v353, %v352
    %v383 = vpack.c.bf16 %v355, %v354
    %v384 = vpack.c.bf16 %v357, %v356
    %v385 = vpack.c.bf16 %v359, %v358
    %v386 = vpack.c.bf16 %v361, %v360
    %v387 = vpack.c.bf16 %v363, %v362
    %v388 = vpack.c.bf16 %v365, %v364
    %v389 = vpack.c.bf16 %v367, %v366
    %v390 = vpack.c.bf16 %v369, %v368
    %v391 = vpack.c.bf16 %v371, %v370
    %v392 = vpack.c.bf16 %v373, %v372
    %v393 = vpack.c.bf16 %v375, %v374
    %v394 = vpack.c.bf16 %v377, %v376
    %v395 = vpack.c.bf16 %v379, %v378
    %v400 = vunpack.c.l.b16 %v119
    %v401 = vunpack.c.l.b16 %v120
    %v402 = vunpack.c.l.b16 %v121
    %v403 = vunpack.c.l.b16 %v122
    %v404 = vpack.c.b16 %v401, %v400
    %v405 = vpack.c.b16 %v403, %v402
    %vm408 = vcmask 261120
    %v410 = vsel %vm408, %v380, 0
    %v413 = vsel %vm408, %v381, 0
    %v416 = vsel %vm408, %v382, 0
    %v419 = vsel %vm408, %v383, 0
    %v422 = vsel %vm408, %v384, 0
    %v425 = vsel %vm408, %v385, 0
    %v428 = vsel %vm408, %v386, 0
    %v431 = vsel %vm408, %v387, 0
    %v434 = vsel %vm408, %v388, 0
    %v437 = vsel %vm408, %v389, 0
    %v440 = vsel %vm408, %v390, 0
    %v443 = vsel %vm408, %v391, 0
    %v446 = vsel %vm408, %v392, 0
    %v449 = vsel %vm408, %v393, 0
    %v452 = vsel %vm408, %v394, 0
    %v455 = vsel %vm408, %v395, 0
    %457 = vmatpush.bf16.msra.mxu0 0
    %458 = vmatpush.bf16.msra.mxu0 0
    %459 = vmatpush.bf16.msra.mxu0 0
    %460 = vmatpush.bf16.msra.mxu0 0
    %461 = vmatpush.bf16.msra.mxu0 0
    %462 = vmatpush.bf16.msra.mxu0 0
    %463 = vmatpush.bf16.msra.mxu0 %v405
    %464 = vmatpush.bf16.msra.mxu0 %v404
    %465 = vmatmul.bf16.gmra.mxu0 %v410
    %v466 = vpop.f32.mrf.mxu0
    %v467 = vadd.f32 %v180, %v466
    %v468 = vpop.f32.mrf.mxu0
    %v469 = vadd.f32 %v180, %v468
    %470 = vmatmul.bf16.gmra.mxu0 %v413
    %v471 = vpop.f32.mrf.mxu0
    %v472 = vadd.f32 %v180, %v471
    %v473 = vpop.f32.mrf.mxu0
    %v474 = vadd.f32 %v180, %v473
    %475 = vmatmul.bf16.gmra.mxu0 %v416
    %v476 = vpop.f32.mrf.mxu0
    %v477 = vadd.f32 %v180, %v476
    %v478 = vpop.f32.mrf.mxu0
    %v479 = vadd.f32 %v180, %v478
    %480 = vmatmul.bf16.gmra.mxu0 %v419
    %v481 = vpop.f32.mrf.mxu0
    %v482 = vadd.f32 %v180, %v481
    %v483 = vpop.f32.mrf.mxu0
    %v484 = vadd.f32 %v180, %v483
    %485 = vmatmul.bf16.gmra.mxu0 %v422
    %v486 = vpop.f32.mrf.mxu0
    %v487 = vadd.f32 %v180, %v486
    %v488 = vpop.f32.mrf.mxu0
    %v489 = vadd.f32 %v180, %v488
    %490 = vmatmul.bf16.gmra.mxu0 %v425
    %v491 = vpop.f32.mrf.mxu0
    %v492 = vadd.f32 %v180, %v491
    %v493 = vpop.f32.mrf.mxu0
    %v494 = vadd.f32 %v180, %v493
    %495 = vmatmul.bf16.gmra.mxu0 %v428
    %v496 = vpop.f32.mrf.mxu0
    %v497 = vadd.f32 %v180, %v496
    %v498 = vpop.f32.mrf.mxu0
    %v499 = vadd.f32 %v180, %v498
    %500 = vmatmul.bf16.gmra.mxu0 %v431
    %v501 = vpop.f32.mrf.mxu0
    %v502 = vadd.f32 %v180, %v501
    %v503 = vpop.f32.mrf.mxu0
    %v504 = vadd.f32 %v180, %v503
    %505 = vmatmul.bf16.gmra.mxu0 %v434
    %v506 = vpop.f32.mrf.mxu0
    %v507 = vadd.f32 %v180, %v506
    %v508 = vpop.f32.mrf.mxu0
    %v509 = vadd.f32 %v180, %v508
    %510 = vmatmul.bf16.gmra.mxu0 %v437
    %v511 = vpop.f32.mrf.mxu0
    %v512 = vadd.f32 %v180, %v511
    %v513 = vpop.f32.mrf.mxu0
    %v514 = vadd.f32 %v180, %v513
    %515 = vmatmul.bf16.gmra.mxu0 %v440
    %v516 = vpop.f32.mrf.mxu0
    %v517 = vadd.f32 %v180, %v516
    %v518 = vpop.f32.mrf.mxu0
    %v519 = vadd.f32 %v180, %v518
    %520 = vmatmul.bf16.gmra.mxu0 %v443
    %v521 = vpop.f32.mrf.mxu0
    %v522 = vadd.f32 %v180, %v521
    %v523 = vpop.f32.mrf.mxu0
    %v524 = vadd.f32 %v180, %v523
    %525 = vmatmul.bf16.gmra.mxu0 %v446
    %v526 = vpop.f32.mrf.mxu0
    %v527 = vadd.f32 %v180, %v526
    %v528 = vpop.f32.mrf.mxu0
    %v529 = vadd.f32 %v180, %v528
    %530 = vmatmul.bf16.gmra.mxu0 %v449
    %v531 = vpop.f32.mrf.mxu0
    %v532 = vadd.f32 %v180, %v531
    %v533 = vpop.f32.mrf.mxu0
    %v534 = vadd.f32 %v180, %v533
    %535 = vmatmul.bf16.gmra.mxu0 %v452
    %v536 = vpop.f32.mrf.mxu0
    %v537 = vadd.f32 %v180, %v536
    %v538 = vpop.f32.mrf.mxu0
    %v539 = vadd.f32 %v180, %v538
    %540 = vmatmul.bf16.gmra.mxu0 %v455
    %v541 = vpop.f32.mrf.mxu0
    %v542 = vadd.f32 %v180, %v541
    %v543 = vpop.f32.mrf.mxu0
    %v544 = vadd.f32 %v180, %v543
    %545 = vdwg.mxu0
    %v546 = vmax.f32 %v467, 0.0
    %v547 = vmax.f32 %v469, 0.0
    %v548 = vmax.f32 %v472, 0.0
    %v549 = vmax.f32 %v474, 0.0
    %v550 = vmax.f32 %v477, 0.0
    %v551 = vmax.f32 %v479, 0.0
    %v552 = vmax.f32 %v482, 0.0
    %v553 = vmax.f32 %v484, 0.0
    %v554 = vmax.f32 %v487, 0.0
    %v555 = vmax.f32 %v489, 0.0
    %v556 = vmax.f32 %v492, 0.0
    %v557 = vmax.f32 %v494, 0.0
    %v558 = vmax.f32 %v497, 0.0
    %v559 = vmax.f32 %v499, 0.0
    %v560 = vmax.f32 %v502, 0.0
    %v561 = vmax.f32 %v504, 0.0
    %v562 = vmax.f32 %v507, 0.0
    %v563 = vmax.f32 %v509, 0.0
    %v564 = vmax.f32 %v512, 0.0
    %v565 = vmax.f32 %v514, 0.0
    %v566 = vmax.f32 %v517, 0.0
    %v567 = vmax.f32 %v519, 0.0
    %v568 = vmax.f32 %v522, 0.0
    %v569 = vmax.f32 %v524, 0.0
    %v570 = vmax.f32 %v527, 0.0
    %v571 = vmax.f32 %v529, 0.0
    %v572 = vmax.f32 %v532, 0.0
    %v573 = vmax.f32 %v534, 0.0
    %v574 = vmax.f32 %v537, 0.0
    %v575 = vmax.f32 %v539, 0.0
    %v576 = vmax.f32 %v542, 0.0
    %v577 = vmax.f32 %v544, 0.0
    %v578 = vpack.c.bf16 %v547, %v546
    %v579 = vpack.c.bf16 %v549, %v548
    %v580 = vpack.c.bf16 %v551, %v550
    %v581 = vpack.c.bf16 %v553, %v552
    %v582 = vpack.c.bf16 %v555, %v554
    %v583 = vpack.c.bf16 %v557, %v556
    %v584 = vpack.c.bf16 %v559, %v558
    %v585 = vpack.c.bf16 %v561, %v560
    %v586 = vpack.c.bf16 %v563, %v562
    %v587 = vpack.c.bf16 %v565, %v564
    %v588 = vpack.c.bf16 %v567, %v566
    %v589 = vpack.c.bf16 %v569, %v568
    %v590 = vpack.c.bf16 %v571, %v570
    %v591 = vpack.c.bf16 %v573, %v572
    %v592 = vpack.c.bf16 %v575, %v574
    %v593 = vpack.c.bf16 %v577, %v576
    %v598 = vunpack.c.l.b16 %v123
    %v599 = vunpack.c.l.b16 %v124
    %v600 = vunpack.c.l.b16 %v125
    %v601 = vunpack.c.l.b16 %v126
    %v602 = vpack.c.b16 %v599, %v598
    %v603 = vpack.c.b16 %v601, %v600
    %v607 = vsel %vm408, %v578, 0
    %v610 = vsel %vm408, %v579, 0
    %v613 = vsel %vm408, %v580, 0
    %v616 = vsel %vm408, %v581, 0
    %v619 = vsel %vm408, %v582, 0
    %v622 = vsel %vm408, %v583, 0
    %v625 = vsel %vm408, %v584, 0
    %v628 = vsel %vm408, %v585, 0
    %v631 = vsel %vm408, %v586, 0
    %v634 = vsel %vm408, %v587, 0
    %v637 = vsel %vm408, %v588, 0
    %v640 = vsel %vm408, %v589, 0
    %v643 = vsel %vm408, %v590, 0
    %v646 = vsel %vm408, %v591, 0
    %v649 = vsel %vm408, %v592, 0
    %v652 = vsel %vm408, %v593, 0
    %654 = vmatpush.bf16.msra.mxu0 0
    %655 = vmatpush.bf16.msra.mxu0 0
    %656 = vmatpush.bf16.msra.mxu0 0
    %657 = vmatpush.bf16.msra.mxu0 0
    %658 = vmatpush.bf16.msra.mxu0 0
    %659 = vmatpush.bf16.msra.mxu0 0
    %660 = vmatpush.bf16.msra.mxu0 %v603
    %661 = vmatpush.bf16.msra.mxu0 %v602
    %662 = vmatmul.bf16.gmra.mxu0 %v607
    %v663 = vpop.f32.mrf.mxu0
    %v664 = vadd.f32 %v181, %v663
    %v665 = vpop.f32.mrf.mxu0
    %v666 = vadd.f32 %v181, %v665
    %667 = vmatmul.bf16.gmra.mxu0 %v610
    %v668 = vpop.f32.mrf.mxu0
    %v669 = vadd.f32 %v181, %v668
    %v670 = vpop.f32.mrf.mxu0
    %v671 = vadd.f32 %v181, %v670
    %672 = vmatmul.bf16.gmra.mxu0 %v613
    %v673 = vpop.f32.mrf.mxu0
    %v674 = vadd.f32 %v181, %v673
    %v675 = vpop.f32.mrf.mxu0
    %v676 = vadd.f32 %v181, %v675
    %677 = vmatmul.bf16.gmra.mxu0 %v616
    %v678 = vpop.f32.mrf.mxu0
    %v679 = vadd.f32 %v181, %v678
    %v680 = vpop.f32.mrf.mxu0
    %v681 = vadd.f32 %v181, %v680
    %682 = vmatmul.bf16.gmra.mxu0 %v619
    %v683 = vpop.f32.mrf.mxu0
    %v684 = vadd.f32 %v181, %v683
    %v685 = vpop.f32.mrf.mxu0
    %v686 = vadd.f32 %v181, %v685
    %687 = vmatmul.bf16.gmra.mxu0 %v622
    %v688 = vpop.f32.mrf.mxu0
    %v689 = vadd.f32 %v181, %v688
    %v690 = vpop.f32.mrf.mxu0
    %v691 = vadd.f32 %v181, %v690
    %692 = vmatmul.bf16.gmra.mxu0 %v625
    %v693 = vpop.f32.mrf.mxu0
    %v694 = vadd.f32 %v181, %v693
    %v695 = vpop.f32.mrf.mxu0
    %v696 = vadd.f32 %v181, %v695
    %697 = vmatmul.bf16.gmra.mxu0 %v628
    %v698 = vpop.f32.mrf.mxu0
    %v699 = vadd.f32 %v181, %v698
    %v700 = vpop.f32.mrf.mxu0
    %v701 = vadd.f32 %v181, %v700
    %702 = vmatmul.bf16.gmra.mxu0 %v631
    %v703 = vpop.f32.mrf.mxu0
    %v704 = vadd.f32 %v181, %v703
    %v705 = vpop.f32.mrf.mxu0
    %v706 = vadd.f32 %v181, %v705
    %707 = vmatmul.bf16.gmra.mxu0 %v634
    %v708 = vpop.f32.mrf.mxu0
    %v709 = vadd.f32 %v181, %v708
    %v710 = vpop.f32.mrf.mxu0
    %v711 = vadd.f32 %v181, %v710
    %712 = vmatmul.bf16.gmra.mxu0 %v637
    %v713 = vpop.f32.mrf.mxu0
    %v714 = vadd.f32 %v181, %v713
    %v715 = vpop.f32.mrf.mxu0
    %v716 = vadd.f32 %v181, %v715
    %717 = vmatmul.bf16.gmra.mxu0 %v640
    %v718 = vpop.f32.mrf.mxu0
    %v719 = vadd.f32 %v181, %v718
    %v720 = vpop.f32.mrf.mxu0
    %v721 = vadd.f32 %v181, %v720
    %722 = vmatmul.bf16.gmra.mxu0 %v643
    %v723 = vpop.f32.mrf.mxu0
    %v724 = vadd.f32 %v181, %v723
    %v725 = vpop.f32.mrf.mxu0
    %v726 = vadd.f32 %v181, %v725
    %727 = vmatmul.bf16.gmra.mxu0 %v646
    %v728 = vpop.f32.mrf.mxu0
    %v729 = vadd.f32 %v181, %v728
    %v730 = vpop.f32.mrf.mxu0
    %v731 = vadd.f32 %v181, %v730
    %732 = vmatmul.bf16.gmra.mxu0 %v649
    %v733 = vpop.f32.mrf.mxu0
    %v734 = vadd.f32 %v181, %v733
    %v735 = vpop.f32.mrf.mxu0
    %v736 = vadd.f32 %v181, %v735
    %737 = vmatmul.bf16.gmra.mxu0 %v652
    %v738 = vpop.f32.mrf.mxu0
    %v739 = vadd.f32 %v181, %v738
    %v740 = vpop.f32.mrf.mxu0
    %v741 = vadd.f32 %v181, %v740
    %742 = vdwg.mxu0
    %v743 = vpack.c.bf16 %v666, %v664
    %v744 = vpack.c.bf16 %v671, %v669
    %v745 = vpack.c.bf16 %v676, %v674
    %v746 = vpack.c.bf16 %v681, %v679
    %v747 = vpack.c.bf16 %v686, %v684
    %v748 = vpack.c.bf16 %v691, %v689
    %v749 = vpack.c.bf16 %v696, %v694
    %v750 = vpack.c.bf16 %v701, %v699
    %v751 = vpack.c.bf16 %v706, %v704
    %v752 = vpack.c.bf16 %v711, %v709
    %v753 = vpack.c.bf16 %v716, %v714
    %v754 = vpack.c.bf16 %v721, %v719
    %v755 = vpack.c.bf16 %v726, %v724
    %v756 = vpack.c.bf16 %v731, %v729
    %v757 = vpack.c.bf16 %v736, %v734
    %v758 = vpack.c.bf16 %v741, %v739
    %v760 = vperm.slane %v183, 0
    %v761 = vperm.slane %v183, 1
    %v765 = vunpack.c.l.b16 %v64
    %v766 = vunpack.c.h.b16 %v64
    %v767 = vpack.c.b16 %v765, %v765
    %v768 = vpack.c.b16 %v766, %v766
    %vm769 = vcmask 64512
    %v771 = vsel %vm769, %v743, 0
    %v774 = vsel %vm769, %v744, 0
    %v777 = vsel %vm769, %v745, 0
    %v780 = vsel %vm769, %v746, 0
    %v783 = vsel %vm769, %v747, 0
    %v786 = vsel %vm769, %v748, 0
    %v789 = vsel %vm769, %v749, 0
    %v792 = vsel %vm769, %v750, 0
    %v795 = vsel %vm769, %v751, 0
    %v798 = vsel %vm769, %v752, 0
    %v801 = vsel %vm769, %v753, 0
    %v804 = vsel %vm769, %v754, 0
    %v807 = vsel %vm769, %v755, 0
    %v810 = vsel %vm769, %v756, 0
    %v813 = vsel %vm769, %v757, 0
    %v816 = vsel %vm769, %v758, 0
    %vm818 = vcmask 1043456
    %v820 = vsel %vm818, %v767, 0
    %v823 = vsel %vm818, %v768, 0
    %825 = vmatpush.bf16.msra.mxu0 0
    %826 = vmatpush.bf16.msra.mxu0 0
    %827 = vmatpush.bf16.msra.mxu0 0
    %828 = vmatpush.bf16.msra.mxu0 0
    %829 = vmatpush.bf16.msra.mxu0 0
    %830 = vmatpush.bf16.msra.mxu0 0
    %831 = vmatpush.bf16.msra.mxu0 0
    %832 = vmatpush.bf16.msra.mxu0 %v820
    %833 = vmatmul.bf16.gmra.mxu0 %v771
    %v834 = vpop.f32.mrf.mxu0
    %v835 = vadd.f32 %v760, %v834
    %v836 = vpop.f32.mrf.mxu0
    %v837 = vadd.f32 %v760, %v836
    %838 = vmatmul.bf16.gmra.mxu0 %v774
    %v839 = vpop.f32.mrf.mxu0
    %v840 = vadd.f32 %v760, %v839
    %v841 = vpop.f32.mrf.mxu0
    %v842 = vadd.f32 %v760, %v841
    %843 = vmatmul.bf16.gmra.mxu0 %v777
    %v844 = vpop.f32.mrf.mxu0
    %v845 = vadd.f32 %v760, %v844
    %v846 = vpop.f32.mrf.mxu0
    %v847 = vadd.f32 %v760, %v846
    %848 = vmatmul.bf16.gmra.mxu0 %v780
    %v849 = vpop.f32.mrf.mxu0
    %v850 = vadd.f32 %v760, %v849
    %v851 = vpop.f32.mrf.mxu0
    %v852 = vadd.f32 %v760, %v851
    %853 = vmatmul.bf16.gmra.mxu0 %v783
    %v854 = vpop.f32.mrf.mxu0
    %v855 = vadd.f32 %v760, %v854
    %v856 = vpop.f32.mrf.mxu0
    %v857 = vadd.f32 %v760, %v856
    %858 = vmatmul.bf16.gmra.mxu0 %v786
    %v859 = vpop.f32.mrf.mxu0
    %v860 = vadd.f32 %v760, %v859
    %v861 = vpop.f32.mrf.mxu0
    %v862 = vadd.f32 %v760, %v861
    %863 = vmatmul.bf16.gmra.mxu0 %v789
    %v864 = vpop.f32.mrf.mxu0
    %v865 = vadd.f32 %v760, %v864
    %v866 = vpop.f32.mrf.mxu0
    %v867 = vadd.f32 %v760, %v866
    %868 = vmatmul.bf16.gmra.mxu0 %v792
    %v869 = vpop.f32.mrf.mxu0
    %v870 = vadd.f32 %v760, %v869
    %v871 = vpop.f32.mrf.mxu0
    %v872 = vadd.f32 %v760, %v871
    %873 = vmatmul.bf16.gmra.mxu0 %v795
    %v874 = vpop.f32.mrf.mxu0
    %v875 = vadd.f32 %v760, %v874
    %v876 = vpop.f32.mrf.mxu0
    %v877 = vadd.f32 %v760, %v876
    %878 = vmatmul.bf16.gmra.mxu0 %v798
    %v879 = vpop.f32.mrf.mxu0
    %v880 = vadd.f32 %v760, %v879
    %v881 = vpop.f32.mrf.mxu0
    %v882 = vadd.f32 %v760, %v881
    %883 = vmatmul.bf16.gmra.mxu0 %v801
    %v884 = vpop.f32.mrf.mxu0
    %v885 = vadd.f32 %v760, %v884
    %v886 = vpop.f32.mrf.mxu0
    %v887 = vadd.f32 %v760, %v886
    %888 = vmatmul.bf16.gmra.mxu0 %v804
    %v889 = vpop.f32.mrf.mxu0
    %v890 = vadd.f32 %v760, %v889
    %v891 = vpop.f32.mrf.mxu0
    %v892 = vadd.f32 %v760, %v891
    %893 = vmatmul.bf16.gmra.mxu0 %v807
    %v894 = vpop.f32.mrf.mxu0
    %v895 = vadd.f32 %v760, %v894
    %v896 = vpop.f32.mrf.mxu0
    %v897 = vadd.f32 %v760, %v896
    %898 = vmatmul.bf16.gmra.mxu0 %v810
    %v899 = vpop.f32.mrf.mxu0
    %v900 = vadd.f32 %v760, %v899
    %v901 = vpop.f32.mrf.mxu0
    %v902 = vadd.f32 %v760, %v901
    %903 = vmatmul.bf16.gmra.mxu0 %v813
    %v904 = vpop.f32.mrf.mxu0
    %v905 = vadd.f32 %v760, %v904
    %v906 = vpop.f32.mrf.mxu0
    %v907 = vadd.f32 %v760, %v906
    %908 = vmatmul.bf16.gmra.mxu0 %v816
    %v909 = vpop.f32.mrf.mxu0
    %v910 = vadd.f32 %v760, %v909
    %v911 = vpop.f32.mrf.mxu0
    %v912 = vadd.f32 %v760, %v911
    %913 = vdwg.mxu0
    %914 = vmatpush.bf16.msra.mxu0 0
    %915 = vmatpush.bf16.msra.mxu0 0
    %916 = vmatpush.bf16.msra.mxu0 0
    %917 = vmatpush.bf16.msra.mxu0 0
    %918 = vmatpush.bf16.msra.mxu0 0
    %919 = vmatpush.bf16.msra.mxu0 0
    %920 = vmatpush.bf16.msra.mxu0 0
    %921 = vmatpush.bf16.msra.mxu0 %v823
    %922 = vmatmul.bf16.gmra.mxu0 %v771
    %v923 = vpop.f32.mrf.mxu0
    %v924 = vadd.f32 %v761, %v923
    %v925 = vpop.f32.mrf.mxu0
    %v926 = vadd.f32 %v761, %v925
    %927 = vmatmul.bf16.gmra.mxu0 %v774
    %v928 = vpop.f32.mrf.mxu0
    %v929 = vadd.f32 %v761, %v928
    %v930 = vpop.f32.mrf.mxu0
    %v931 = vadd.f32 %v761, %v930
    %932 = vmatmul.bf16.gmra.mxu0 %v777
    %v933 = vpop.f32.mrf.mxu0
    %v934 = vadd.f32 %v761, %v933
    %v935 = vpop.f32.mrf.mxu0
    %v936 = vadd.f32 %v761, %v935
    %937 = vmatmul.bf16.gmra.mxu0 %v780
    %v938 = vpop.f32.mrf.mxu0
    %v939 = vadd.f32 %v761, %v938
    %v940 = vpop.f32.mrf.mxu0
    %v941 = vadd.f32 %v761, %v940
    %942 = vmatmul.bf16.gmra.mxu0 %v783
    %v943 = vpop.f32.mrf.mxu0
    %v944 = vadd.f32 %v761, %v943
    %v945 = vpop.f32.mrf.mxu0
    %v946 = vadd.f32 %v761, %v945
    %947 = vmatmul.bf16.gmra.mxu0 %v786
    %v948 = vpop.f32.mrf.mxu0
    %v949 = vadd.f32 %v761, %v948
    %v950 = vpop.f32.mrf.mxu0
    %v951 = vadd.f32 %v761, %v950
    %952 = vmatmul.bf16.gmra.mxu0 %v789
    %v953 = vpop.f32.mrf.mxu0
    %v954 = vadd.f32 %v761, %v953
    %v955 = vpop.f32.mrf.mxu0
    %v956 = vadd.f32 %v761, %v955
    %957 = vmatmul.bf16.gmra.mxu0 %v792
    %v958 = vpop.f32.mrf.mxu0
    %v959 = vadd.f32 %v761, %v958
    %v960 = vpop.f32.mrf.mxu0
    %v961 = vadd.f32 %v761, %v960
    %962 = vmatmul.bf16.gmra.mxu0 %v795
    %v963 = vpop.f32.mrf.mxu0
    %v964 = vadd.f32 %v761, %v963
    %v965 = vpop.f32.mrf.mxu0
    %v966 = vadd.f32 %v761, %v965
    %967 = vmatmul.bf16.gmra.mxu0 %v798
    %v968 = vpop.f32.mrf.mxu0
    %v969 = vadd.f32 %v761, %v968
    %v970 = vpop.f32.mrf.mxu0
    %v971 = vadd.f32 %v761, %v970
    %972 = vmatmul.bf16.gmra.mxu0 %v801
    %v973 = vpop.f32.mrf.mxu0
    %v974 = vadd.f32 %v761, %v973
    %v975 = vpop.f32.mrf.mxu0
    %v976 = vadd.f32 %v761, %v975
    %977 = vmatmul.bf16.gmra.mxu0 %v804
    %v978 = vpop.f32.mrf.mxu0
    %v979 = vadd.f32 %v761, %v978
    %v980 = vpop.f32.mrf.mxu0
    %v981 = vadd.f32 %v761, %v980
    %982 = vmatmul.bf16.gmra.mxu0 %v807
    %v983 = vpop.f32.mrf.mxu0
    %v984 = vadd.f32 %v761, %v983
    %v985 = vpop.f32.mrf.mxu0
    %v986 = vadd.f32 %v761, %v985
    %987 = vmatmul.bf16.gmra.mxu0 %v810
    %v988 = vpop.f32.mrf.mxu0
    %v989 = vadd.f32 %v761, %v988
    %v990 = vpop.f32.mrf.mxu0
    %v991 = vadd.f32 %v761, %v990
    %992 = vmatmul.bf16.gmra.mxu0 %v813
    %v993 = vpop.f32.mrf.mxu0
    %v994 = vadd.f32 %v761, %v993
    %v995 = vpop.f32.mrf.mxu0
    %v996 = vadd.f32 %v761, %v995
    %997 = vmatmul.bf16.gmra.mxu0 %v816
    %v998 = vpop.f32.mrf.mxu0
    %v999 = vadd.f32 %v761, %v998
    %v1000 = vpop.f32.mrf.mxu0
    %v1001 = vadd.f32 %v761, %v1000
    %1002 = vdwg.mxu0
    %v1003 = vtanh.pop %v835
    %v1004 = vtanh.pop %v924
    %v1005 = vtanh.pop %v837
    %v1006 = vtanh.pop %v926
    %v1007 = vtanh.pop %v840
    %v1008 = vtanh.pop %v929
    %v1009 = vtanh.pop %v842
    %v1010 = vtanh.pop %v931
    %v1011 = vtanh.pop %v845
    %v1012 = vtanh.pop %v934
    %v1013 = vtanh.pop %v847
    %v1014 = vtanh.pop %v936
    %v1015 = vtanh.pop %v850
    %v1016 = vtanh.pop %v939
    %v1017 = vtanh.pop %v852
    %v1018 = vtanh.pop %v941
    %v1019 = vtanh.pop %v855
    %v1020 = vtanh.pop %v944
    %v1021 = vtanh.pop %v857
    %v1022 = vtanh.pop %v946
    %v1023 = vtanh.pop %v860
    %v1024 = vtanh.pop %v949
    %v1025 = vtanh.pop %v862
    %v1026 = vtanh.pop %v951
    %v1027 = vtanh.pop %v865
    %v1028 = vtanh.pop %v954
    %v1029 = vtanh.pop %v867
    %v1030 = vtanh.pop %v956
    %v1031 = vtanh.pop %v870
    %v1032 = vtanh.pop %v959
    %v1033 = vtanh.pop %v872
    %v1034 = vtanh.pop %v961
    %v1035 = vtanh.pop %v875
    %v1036 = vtanh.pop %v964
    %v1037 = vtanh.pop %v877
    %v1038 = vtanh.pop %v966
    %v1039 = vtanh.pop %v880
    %v1040 = vtanh.pop %v969
    %v1041 = vtanh.pop %v882
    %v1042 = vtanh.pop %v971
    %v1043 = vtanh.pop %v885
    %v1044 = vtanh.pop %v974
    %v1045 = vtanh.pop %v887
    %v1046 = vtanh.pop %v976
    %v1047 = vtanh.pop %v890
    %v1048 = vtanh.pop %v979
    %v1049 = vtanh.pop %v892
    %v1050 = vtanh.pop %v981
    %v1051 = vtanh.pop %v895
    %v1052 = vtanh.pop %v984
    %v1053 = vtanh.pop %v897
    %v1054 = vtanh.pop %v986
    %v1055 = vtanh.pop %v900
    %v1056 = vtanh.pop %v989
    %v1057 = vtanh.pop %v902
    %v1058 = vtanh.pop %v991
    %v1059 = vtanh.pop %v905
    %v1060 = vtanh.pop %v994
    %v1061 = vtanh.pop %v907
    %v1062 = vtanh.pop %v996
    %v1063 = vtanh.pop %v910
    %v1064 = vtanh.pop %v999
    %v1065 = vtanh.pop %v912
    %v1066 = vtanh.pop %v1001
    %v1067 = vmul.f32 %v1004, %v1004
    %v1068 = vmul.f32 %v1006, %v1006
    %v1069 = vmul.f32 %v1008, %v1008
    %v1070 = vmul.f32 %v1010, %v1010
    %v1071 = vmul.f32 %v1012, %v1012
    %v1072 = vmul.f32 %v1014, %v1014
    %v1073 = vmul.f32 %v1016, %v1016
    %v1074 = vmul.f32 %v1018, %v1018
    %v1075 = vmul.f32 %v1020, %v1020
    %v1076 = vmul.f32 %v1022, %v1022
    %v1077 = vmul.f32 %v1024, %v1024
    %v1078 = vmul.f32 %v1026, %v1026
    %v1079 = vmul.f32 %v1028, %v1028
    %v1080 = vmul.f32 %v1030, %v1030
    %v1081 = vmul.f32 %v1032, %v1032
    %v1082 = vmul.f32 %v1034, %v1034
    %v1083 = vmul.f32 %v1036, %v1036
    %v1084 = vmul.f32 %v1038, %v1038
    %v1085 = vmul.f32 %v1040, %v1040
    %v1086 = vmul.f32 %v1042, %v1042
    %v1087 = vmul.f32 %v1044, %v1044
    %v1088 = vmul.f32 %v1046, %v1046
    %v1089 = vmul.f32 %v1048, %v1048
    %v1090 = vmul.f32 %v1050, %v1050
    %v1091 = vmul.f32 %v1052, %v1052
    %v1092 = vmul.f32 %v1054, %v1054
    %v1093 = vmul.f32 %v1056, %v1056
    %v1094 = vmul.f32 %v1058, %v1058
    %v1095 = vmul.f32 %v1060, %v1060
    %v1096 = vmul.f32 %v1062, %v1062
    %v1097 = vmul.f32 %v1064, %v1064
    %v1098 = vmul.f32 %v1066, %v1066
    %v1099 = vsub.f32 1.0, %v1067
    %v1100 = vsub.f32 1.0, %v1068
    %v1101 = vsub.f32 1.0, %v1069
    %v1102 = vsub.f32 1.0, %v1070
    %v1103 = vsub.f32 1.0, %v1071
    %v1104 = vsub.f32 1.0, %v1072
    %v1105 = vsub.f32 1.0, %v1073
    %v1106 = vsub.f32 1.0, %v1074
    %v1107 = vsub.f32 1.0, %v1075
    %v1108 = vsub.f32 1.0, %v1076
    %v1109 = vsub.f32 1.0, %v1077
    %v1110 = vsub.f32 1.0, %v1078
    %v1111 = vsub.f32 1.0, %v1079
    %v1112 = vsub.f32 1.0, %v1080
    %v1113 = vsub.f32 1.0, %v1081
    %v1114 = vsub.f32 1.0, %v1082
    %v1115 = vsub.f32 1.0, %v1083
    %v1116 = vsub.f32 1.0, %v1084
    %v1117 = vsub.f32 1.0, %v1085
    %v1118 = vsub.f32 1.0, %v1086
    %v1119 = vsub.f32 1.0, %v1087
    %v1120 = vsub.f32 1.0, %v1088
    %v1121 = vsub.f32 1.0, %v1089
    %v1122 = vsub.f32 1.0, %v1090
    %v1123 = vsub.f32 1.0, %v1091
    %v1124 = vsub.f32 1.0, %v1092
    %v1125 = vsub.f32 1.0, %v1093
    %v1126 = vsub.f32 1.0, %v1094
    %v1127 = vsub.f32 1.0, %v1095
    %v1128 = vsub.f32 1.0, %v1096
    %v1129 = vsub.f32 1.0, %v1097
    %v1130 = vsub.f32 1.0, %v1098
    %v1131 = vmul.f32 %v187, %v1099
    %v1132 = vmul.f32 %v187, %v1100
    %v1133 = vmul.f32 %v187, %v1101
    %v1134 = vmul.f32 %v187, %v1102
    %v1135 = vmul.f32 %v187, %v1103
    %v1136 = vmul.f32 %v187, %v1104
    %v1137 = vmul.f32 %v187, %v1105
    %v1138 = vmul.f32 %v187, %v1106
    %v1139 = vmul.f32 %v187, %v1107
    %v1140 = vmul.f32 %v187, %v1108
    %v1141 = vmul.f32 %v187, %v1109
    %v1142 = vmul.f32 %v187, %v1110
    %v1143 = vmul.f32 %v187, %v1111
    %v1144 = vmul.f32 %v187, %v1112
    %v1145 = vmul.f32 %v187, %v1113
    %v1146 = vmul.f32 %v187, %v1114
    %v1147 = vmul.f32 %v187, %v1115
    %v1148 = vmul.f32 %v187, %v1116
    %v1149 = vmul.f32 %v187, %v1117
    %v1150 = vmul.f32 %v187, %v1118
    %v1151 = vmul.f32 %v187, %v1119
    %v1152 = vmul.f32 %v187, %v1120
    %v1153 = vmul.f32 %v187, %v1121
    %v1154 = vmul.f32 %v187, %v1122
    %v1155 = vmul.f32 %v187, %v1123
    %v1156 = vmul.f32 %v187, %v1124
    %v1157 = vmul.f32 %v187, %v1125
    %v1158 = vmul.f32 %v187, %v1126
    %v1159 = vmul.f32 %v187, %v1127
    %v1160 = vmul.f32 %v187, %v1128
    %v1161 = vmul.f32 %v187, %v1129
    %v1162 = vmul.f32 %v187, %v1130
    %v1163 = vpack.c.bf16 %v1132, %v1131
    %v1164 = vpack.c.bf16 %v1134, %v1133
    %v1165 = vpack.c.bf16 %v1136, %v1135
    %v1166 = vpack.c.bf16 %v1138, %v1137
    %v1167 = vpack.c.bf16 %v1140, %v1139
    %v1168 = vpack.c.bf16 %v1142, %v1141
    %v1169 = vpack.c.bf16 %v1144, %v1143
    %v1170 = vpack.c.bf16 %v1146, %v1145
    %v1171 = vpack.c.bf16 %v1148, %v1147
    %v1172 = vpack.c.bf16 %v1150, %v1149
    %v1173 = vpack.c.bf16 %v1152, %v1151
    %v1174 = vpack.c.bf16 %v1154, %v1153
    %v1175 = vpack.c.bf16 %v1156, %v1155
    %v1176 = vpack.c.bf16 %v1158, %v1157
    %v1177 = vpack.c.bf16 %v1160, %v1159
    %v1178 = vpack.c.bf16 %v1162, %v1161
    %v1179 = vmul.f32 %v664, 0.1
    %v1180 = vmul.f32 %v666, 0.1
    %v1181 = vmul.f32 %v669, 0.1
    %v1182 = vmul.f32 %v671, 0.1
    %v1183 = vmul.f32 %v674, 0.1
    %v1184 = vmul.f32 %v676, 0.1
    %v1185 = vmul.f32 %v679, 0.1
    %v1186 = vmul.f32 %v681, 0.1
    %v1187 = vmul.f32 %v684, 0.1
    %v1188 = vmul.f32 %v686, 0.1
    %v1189 = vmul.f32 %v689, 0.1
    %v1190 = vmul.f32 %v691, 0.1
    %v1191 = vmul.f32 %v694, 0.1
    %v1192 = vmul.f32 %v696, 0.1
    %v1193 = vmul.f32 %v699, 0.1
    %v1194 = vmul.f32 %v701, 0.1
    %v1195 = vmul.f32 %v704, 0.1
    %v1196 = vmul.f32 %v706, 0.1
    %v1197 = vmul.f32 %v709, 0.1
    %v1198 = vmul.f32 %v711, 0.1
    %v1199 = vmul.f32 %v714, 0.1
    %v1200 = vmul.f32 %v716, 0.1
    %v1201 = vmul.f32 %v719, 0.1
    %v1202 = vmul.f32 %v721, 0.1
    %v1203 = vmul.f32 %v724, 0.1
    %v1204 = vmul.f32 %v726, 0.1
    %v1205 = vmul.f32 %v729, 0.1
    %v1206 = vmul.f32 %v731, 0.1
    %v1207 = vmul.f32 %v734, 0.1
    %v1208 = vmul.f32 %v736, 0.1
    %v1209 = vmul.f32 %v739, 0.1
    %v1210 = vmul.f32 %v741, 0.1
    %v1215 = vunpack.c.l.b16 %v65
    %v1216 = vunpack.c.l.b16 %v66
    %v1217 = vunpack.c.l.b16 %v67
    %v1218 = vunpack.c.l.b16 %v68
    %v1219 = vpack.c.b16 %v1216, %v1215
    %v1220 = vpack.c.b16 %v1218, %v1217
    %v1224 = vsel %vm408, %v1163, 0
    %v1227 = vsel %vm408, %v1164, 0
    %v1230 = vsel %vm408, %v1165, 0
    %v1233 = vsel %vm408, %v1166, 0
    %v1236 = vsel %vm408, %v1167, 0
    %v1239 = vsel %vm408, %v1168, 0
    %v1242 = vsel %vm408, %v1169, 0
    %v1245 = vsel %vm408, %v1170, 0
    %v1248 = vsel %vm408, %v1171, 0
    %v1251 = vsel %vm408, %v1172, 0
    %v1254 = vsel %vm408, %v1173, 0
    %v1257 = vsel %vm408, %v1174, 0
    %v1260 = vsel %vm408, %v1175, 0
    %v1263 = vsel %vm408, %v1176, 0
    %v1266 = vsel %vm408, %v1177, 0
    %v1269 = vsel %vm408, %v1178, 0
    %1271 = vmatpush.bf16.msra.mxu0 0
    %1272 = vmatpush.bf16.msra.mxu0 0
    %1273 = vmatpush.bf16.msra.mxu0 0
    %1274 = vmatpush.bf16.msra.mxu0 0
    %1275 = vmatpush.bf16.msra.mxu0 0
    %1276 = vmatpush.bf16.msra.mxu0 0
    %1277 = vmatpush.bf16.msra.mxu0 %v1220
    %1278 = vmatpush.bf16.msra.mxu0 %v1219
    %1279 = vmatmul.bf16.gmra.mxu0 %v1224
    %v1280 = vpop.f32.mrf.mxu0
    %v1281 = vadd.f32 %v1179, %v1280
    %v1282 = vpop.f32.mrf.mxu0
    %v1283 = vadd.f32 %v1180, %v1282
    %1284 = vmatmul.bf16.gmra.mxu0 %v1227
    %v1285 = vpop.f32.mrf.mxu0
    %v1286 = vadd.f32 %v1181, %v1285
    %v1287 = vpop.f32.mrf.mxu0
    %v1288 = vadd.f32 %v1182, %v1287
    %1289 = vmatmul.bf16.gmra.mxu0 %v1230
    %v1290 = vpop.f32.mrf.mxu0
    %v1291 = vadd.f32 %v1183, %v1290
    %v1292 = vpop.f32.mrf.mxu0
    %v1293 = vadd.f32 %v1184, %v1292
    %1294 = vmatmul.bf16.gmra.mxu0 %v1233
    %v1295 = vpop.f32.mrf.mxu0
    %v1296 = vadd.f32 %v1185, %v1295
    %v1297 = vpop.f32.mrf.mxu0
    %v1298 = vadd.f32 %v1186, %v1297
    %1299 = vmatmul.bf16.gmra.mxu0 %v1236
    %v1300 = vpop.f32.mrf.mxu0
    %v1301 = vadd.f32 %v1187, %v1300
    %v1302 = vpop.f32.mrf.mxu0
    %v1303 = vadd.f32 %v1188, %v1302
    %1304 = vmatmul.bf16.gmra.mxu0 %v1239
    %v1305 = vpop.f32.mrf.mxu0
    %v1306 = vadd.f32 %v1189, %v1305
    %v1307 = vpop.f32.mrf.mxu0
    %v1308 = vadd.f32 %v1190, %v1307
    %1309 = vmatmul.bf16.gmra.mxu0 %v1242
    %v1310 = vpop.f32.mrf.mxu0
    %v1311 = vadd.f32 %v1191, %v1310
    %v1312 = vpop.f32.mrf.mxu0
    %v1313 = vadd.f32 %v1192, %v1312
    %1314 = vmatmul.bf16.gmra.mxu0 %v1245
    %v1315 = vpop.f32.mrf.mxu0
    %v1316 = vadd.f32 %v1193, %v1315
    %v1317 = vpop.f32.mrf.mxu0
    %v1318 = vadd.f32 %v1194, %v1317
    %1319 = vmatmul.bf16.gmra.mxu0 %v1248
    %v1320 = vpop.f32.mrf.mxu0
    %v1321 = vadd.f32 %v1195, %v1320
    %v1322 = vpop.f32.mrf.mxu0
    %v1323 = vadd.f32 %v1196, %v1322
    %1324 = vmatmul.bf16.gmra.mxu0 %v1251
    %v1325 = vpop.f32.mrf.mxu0
    %v1326 = vadd.f32 %v1197, %v1325
    %v1327 = vpop.f32.mrf.mxu0
    %v1328 = vadd.f32 %v1198, %v1327
    %1329 = vmatmul.bf16.gmra.mxu0 %v1254
    %v1330 = vpop.f32.mrf.mxu0
    %v1331 = vadd.f32 %v1199, %v1330
    %v1332 = vpop.f32.mrf.mxu0
    %v1333 = vadd.f32 %v1200, %v1332
    %1334 = vmatmul.bf16.gmra.mxu0 %v1257
    %v1335 = vpop.f32.mrf.mxu0
    %v1336 = vadd.f32 %v1201, %v1335
    %v1337 = vpop.f32.mrf.mxu0
    %v1338 = vadd.f32 %v1202, %v1337
    %1339 = vmatmul.bf16.gmra.mxu0 %v1260
    %v1340 = vpop.f32.mrf.mxu0
    %v1341 = vadd.f32 %v1203, %v1340
    %v1342 = vpop.f32.mrf.mxu0
    %v1343 = vadd.f32 %v1204, %v1342
    %1344 = vmatmul.bf16.gmra.mxu0 %v1263
    %v1345 = vpop.f32.mrf.mxu0
    %v1346 = vadd.f32 %v1205, %v1345
    %v1347 = vpop.f32.mrf.mxu0
    %v1348 = vadd.f32 %v1206, %v1347
    %1349 = vmatmul.bf16.gmra.mxu0 %v1266
    %v1350 = vpop.f32.mrf.mxu0
    %v1351 = vadd.f32 %v1207, %v1350
    %v1352 = vpop.f32.mrf.mxu0
    %v1353 = vadd.f32 %v1208, %v1352
    %1354 = vmatmul.bf16.gmra.mxu0 %v1269
    %v1355 = vpop.f32.mrf.mxu0
    %v1356 = vadd.f32 %v1209, %v1355
    %v1357 = vpop.f32.mrf.mxu0
    %v1358 = vadd.f32 %v1210, %v1357
    %1359 = vdwg.mxu0
    %v1360 = vpack.c.bf16 %v1005, %v1003
    %v1361 = vpack.c.bf16 %v1009, %v1007
    %v1362 = vpack.c.bf16 %v1013, %v1011
    %v1363 = vpack.c.bf16 %v1017, %v1015
    %v1364 = vpack.c.bf16 %v1021, %v1019
    %v1365 = vpack.c.bf16 %v1025, %v1023
    %v1366 = vpack.c.bf16 %v1029, %v1027
    %v1367 = vpack.c.bf16 %v1033, %v1031
    %v1368 = vpack.c.bf16 %v1037, %v1035
    %v1369 = vpack.c.bf16 %v1041, %v1039
    %v1370 = vpack.c.bf16 %v1045, %v1043
    %v1371 = vpack.c.bf16 %v1049, %v1047
    %v1372 = vpack.c.bf16 %v1053, %v1051
    %v1373 = vpack.c.bf16 %v1057, %v1055
    %v1374 = vpack.c.bf16 %v1061, %v1059
    %v1375 = vpack.c.bf16 %v1065, %v1063
    %v1392 = vunpack.c.l.b16 %v69
    %v1393 = vunpack.c.l.b16 %v70
    %v1394 = vunpack.c.l.b16 %v71
    %v1395 = vunpack.c.l.b16 %v72
    %v1396 = vunpack.c.l.b16 %v73
    %v1397 = vunpack.c.l.b16 %v74
    %v1398 = vunpack.c.l.b16 %v75
    %v1399 = vunpack.c.l.b16 %v76
    %v1400 = vunpack.c.l.b16 %v77
    %v1401 = vunpack.c.l.b16 %v78
    %v1402 = vunpack.c.l.b16 %v79
    %v1403 = vunpack.c.l.b16 %v80
    %v1404 = vunpack.c.l.b16 %v81
    %v1405 = vunpack.c.l.b16 %v82
    %v1406 = vunpack.c.l.b16 %v83
    %v1407 = vunpack.c.l.b16 %v84
    %v1408 = vpack.c.b16 %v1393, %v1392
    %v1409 = vpack.c.b16 %v1395, %v1394
    %v1410 = vpack.c.b16 %v1397, %v1396
    %v1411 = vpack.c.b16 %v1399, %v1398
    %v1412 = vpack.c.b16 %v1401, %v1400
    %v1413 = vpack.c.b16 %v1403, %v1402
    %v1414 = vpack.c.b16 %v1405, %v1404
    %v1415 = vpack.c.b16 %v1407, %v1406
    %1424 = vmatpush.bf16.msra.mxu0 %v1415
    %1425 = vmatpush.bf16.msra.mxu0 %v1414
    %1426 = vmatpush.bf16.msra.mxu0 %v1413
    %1427 = vmatpush.bf16.msra.mxu0 %v1412
    %1428 = vmatpush.bf16.msra.mxu0 %v1411
    %1429 = vmatpush.bf16.msra.mxu0 %v1410
    %1430 = vmatpush.bf16.msra.mxu0 %v1409
    %1431 = vmatpush.bf16.msra.mxu0 %v1408
    %1432 = vmatmul.bf16.gmra.mxu0 %v1360
    %v1433 = vpop.f32.mrf.mxu0
    %v1434 = vadd.f32 %v184, %v1433
    %v1435 = vpop.f32.mrf.mxu0
    %v1436 = vadd.f32 %v184, %v1435
    %1437 = vmatmul.bf16.gmra.mxu0 %v1361
    %v1438 = vpop.f32.mrf.mxu0
    %v1439 = vadd.f32 %v184, %v1438
    %v1440 = vpop.f32.mrf.mxu0
    %v1441 = vadd.f32 %v184, %v1440
    %1442 = vmatmul.bf16.gmra.mxu0 %v1362
    %v1443 = vpop.f32.mrf.mxu0
    %v1444 = vadd.f32 %v184, %v1443
    %v1445 = vpop.f32.mrf.mxu0
    %v1446 = vadd.f32 %v184, %v1445
    %1447 = vmatmul.bf16.gmra.mxu0 %v1363
    %v1448 = vpop.f32.mrf.mxu0
    %v1449 = vadd.f32 %v184, %v1448
    %v1450 = vpop.f32.mrf.mxu0
    %v1451 = vadd.f32 %v184, %v1450
    %1452 = vmatmul.bf16.gmra.mxu0 %v1364
    %v1453 = vpop.f32.mrf.mxu0
    %v1454 = vadd.f32 %v184, %v1453
    %v1455 = vpop.f32.mrf.mxu0
    %v1456 = vadd.f32 %v184, %v1455
    %1457 = vmatmul.bf16.gmra.mxu0 %v1365
    %v1458 = vpop.f32.mrf.mxu0
    %v1459 = vadd.f32 %v184, %v1458
    %v1460 = vpop.f32.mrf.mxu0
    %v1461 = vadd.f32 %v184, %v1460
    %1462 = vmatmul.bf16.gmra.mxu0 %v1366
    %v1463 = vpop.f32.mrf.mxu0
    %v1464 = vadd.f32 %v184, %v1463
    %v1465 = vpop.f32.mrf.mxu0
    %v1466 = vadd.f32 %v184, %v1465
    %1467 = vmatmul.bf16.gmra.mxu0 %v1367
    %v1468 = vpop.f32.mrf.mxu0
    %v1469 = vadd.f32 %v184, %v1468
    %v1470 = vpop.f32.mrf.mxu0
    %v1471 = vadd.f32 %v184, %v1470
    %1472 = vmatmul.bf16.gmra.mxu0 %v1368
    %v1473 = vpop.f32.mrf.mxu0
    %v1474 = vadd.f32 %v184, %v1473
    %v1475 = vpop.f32.mrf.mxu0
    %v1476 = vadd.f32 %v184, %v1475
    %1477 = vmatmul.bf16.gmra.mxu0 %v1369
    %v1478 = vpop.f32.mrf.mxu0
    %v1479 = vadd.f32 %v184, %v1478
    %v1480 = vpop.f32.mrf.mxu0
    %v1481 = vadd.f32 %v184, %v1480
    %1482 = vmatmul.bf16.gmra.mxu0 %v1370
    %v1483 = vpop.f32.mrf.mxu0
    %v1484 = vadd.f32 %v184, %v1483
    %v1485 = vpop.f32.mrf.mxu0
    %v1486 = vadd.f32 %v184, %v1485
    %1487 = vmatmul.bf16.gmra.mxu0 %v1371
    %v1488 = vpop.f32.mrf.mxu0
    %v1489 = vadd.f32 %v184, %v1488
    %v1490 = vpop.f32.mrf.mxu0
    %v1491 = vadd.f32 %v184, %v1490
    %1492 = vmatmul.bf16.gmra.mxu0 %v1372
    %v1493 = vpop.f32.mrf.mxu0
    %v1494 = vadd.f32 %v184, %v1493
    %v1495 = vpop.f32.mrf.mxu0
    %v1496 = vadd.f32 %v184, %v1495
    %1497 = vmatmul.bf16.gmra.mxu0 %v1373
    %v1498 = vpop.f32.mrf.mxu0
    %v1499 = vadd.f32 %v184, %v1498
    %v1500 = vpop.f32.mrf.mxu0
    %v1501 = vadd.f32 %v184, %v1500
    %1502 = vmatmul.bf16.gmra.mxu0 %v1374
    %v1503 = vpop.f32.mrf.mxu0
    %v1504 = vadd.f32 %v184, %v1503
    %v1505 = vpop.f32.mrf.mxu0
    %v1506 = vadd.f32 %v184, %v1505
    %1507 = vmatmul.bf16.gmra.mxu0 %v1375
    %v1508 = vpop.f32.mrf.mxu0
    %v1509 = vadd.f32 %v184, %v1508
    %v1510 = vpop.f32.mrf.mxu0
    %v1511 = vadd.f32 %v184, %v1510
    %1512 = vdwg.mxu0
    %v1513 = vtanh.pop %v1434
    %v1514 = vtanh.pop %v1436
    %v1515 = vtanh.pop %v1439
    %v1516 = vtanh.pop %v1441
    %v1517 = vtanh.pop %v1444
    %v1518 = vtanh.pop %v1446
    %v1519 = vtanh.pop %v1449
    %v1520 = vtanh.pop %v1451
    %v1521 = vtanh.pop %v1454
    %v1522 = vtanh.pop %v1456
    %v1523 = vtanh.pop %v1459
    %v1524 = vtanh.pop %v1461
    %v1525 = vtanh.pop %v1464
    %v1526 = vtanh.pop %v1466
    %v1527 = vtanh.pop %v1469
    %v1528 = vtanh.pop %v1471
    %v1529 = vtanh.pop %v1474
    %v1530 = vtanh.pop %v1476
    %v1531 = vtanh.pop %v1479
    %v1532 = vtanh.pop %v1481
    %v1533 = vtanh.pop %v1484
    %v1534 = vtanh.pop %v1486
    %v1535 = vtanh.pop %v1489
    %v1536 = vtanh.pop %v1491
    %v1537 = vtanh.pop %v1494
    %v1538 = vtanh.pop %v1496
    %v1539 = vtanh.pop %v1499
    %v1540 = vtanh.pop %v1501
    %v1541 = vtanh.pop %v1504
    %v1542 = vtanh.pop %v1506
    %v1543 = vtanh.pop %v1509
    %v1544 = vtanh.pop %v1511
    %v1545 = vpack.c.bf16 %v1514, %v1513
    %v1546 = vpack.c.bf16 %v1516, %v1515
    %v1547 = vpack.c.bf16 %v1518, %v1517
    %v1548 = vpack.c.bf16 %v1520, %v1519
    %v1549 = vpack.c.bf16 %v1522, %v1521
    %v1550 = vpack.c.bf16 %v1524, %v1523
    %v1551 = vpack.c.bf16 %v1526, %v1525
    %v1552 = vpack.c.bf16 %v1528, %v1527
    %v1553 = vpack.c.bf16 %v1530, %v1529
    %v1554 = vpack.c.bf16 %v1532, %v1531
    %v1555 = vpack.c.bf16 %v1534, %v1533
    %v1556 = vpack.c.bf16 %v1536, %v1535
    %v1557 = vpack.c.bf16 %v1538, %v1537
    %v1558 = vpack.c.bf16 %v1540, %v1539
    %v1559 = vpack.c.bf16 %v1542, %v1541
    %v1560 = vpack.c.bf16 %v1544, %v1543
    %v1577 = vunpack.c.l.b16 %v85
    %v1578 = vunpack.c.l.b16 %v86
    %v1579 = vunpack.c.l.b16 %v87
    %v1580 = vunpack.c.l.b16 %v88
    %v1581 = vunpack.c.l.b16 %v89
    %v1582 = vunpack.c.l.b16 %v90
    %v1583 = vunpack.c.l.b16 %v91
    %v1584 = vunpack.c.l.b16 %v92
    %v1585 = vunpack.c.l.b16 %v93
    %v1586 = vunpack.c.l.b16 %v94
    %v1587 = vunpack.c.l.b16 %v95
    %v1588 = vunpack.c.l.b16 %v96
    %v1589 = vunpack.c.l.b16 %v97
    %v1590 = vunpack.c.l.b16 %v98
    %v1591 = vunpack.c.l.b16 %v99
    %v1592 = vunpack.c.l.b16 %v100
    %v1593 = vpack.c.b16 %v1578, %v1577
    %v1594 = vpack.c.b16 %v1580, %v1579
    %v1595 = vpack.c.b16 %v1582, %v1581
    %v1596 = vpack.c.b16 %v1584, %v1583
    %v1597 = vpack.c.b16 %v1586, %v1585
    %v1598 = vpack.c.b16 %v1588, %v1587
    %v1599 = vpack.c.b16 %v1590, %v1589
    %v1600 = vpack.c.b16 %v1592, %v1591
    %1609 = vmatpush.bf16.msra.mxu0 %v1600
    %1610 = vmatpush.bf16.msra.mxu0 %v1599
    %1611 = vmatpush.bf16.msra.mxu0 %v1598
    %1612 = vmatpush.bf16.msra.mxu0 %v1597
    %1613 = vmatpush.bf16.msra.mxu0 %v1596
    %1614 = vmatpush.bf16.msra.mxu0 %v1595
    %1615 = vmatpush.bf16.msra.mxu0 %v1594
    %1616 = vmatpush.bf16.msra.mxu0 %v1593
    %1617 = vmatmul.bf16.gmra.mxu0 %v1545
    %v1618 = vpop.f32.mrf.mxu0
    %v1619 = vadd.f32 %v185, %v1618
    %v1620 = vpop.f32.mrf.mxu0
    %v1621 = vadd.f32 %v185, %v1620
    %1622 = vmatmul.bf16.gmra.mxu0 %v1546
    %v1623 = vpop.f32.mrf.mxu0
    %v1624 = vadd.f32 %v185, %v1623
    %v1625 = vpop.f32.mrf.mxu0
    %v1626 = vadd.f32 %v185, %v1625
    %1627 = vmatmul.bf16.gmra.mxu0 %v1547
    %v1628 = vpop.f32.mrf.mxu0
    %v1629 = vadd.f32 %v185, %v1628
    %v1630 = vpop.f32.mrf.mxu0
    %v1631 = vadd.f32 %v185, %v1630
    %1632 = vmatmul.bf16.gmra.mxu0 %v1548
    %v1633 = vpop.f32.mrf.mxu0
    %v1634 = vadd.f32 %v185, %v1633
    %v1635 = vpop.f32.mrf.mxu0
    %v1636 = vadd.f32 %v185, %v1635
    %1637 = vmatmul.bf16.gmra.mxu0 %v1549
    %v1638 = vpop.f32.mrf.mxu0
    %v1639 = vadd.f32 %v185, %v1638
    %v1640 = vpop.f32.mrf.mxu0
    %v1641 = vadd.f32 %v185, %v1640
    %1642 = vmatmul.bf16.gmra.mxu0 %v1550
    %v1643 = vpop.f32.mrf.mxu0
    %v1644 = vadd.f32 %v185, %v1643
    %v1645 = vpop.f32.mrf.mxu0
    %v1646 = vadd.f32 %v185, %v1645
    %1647 = vmatmul.bf16.gmra.mxu0 %v1551
    %v1648 = vpop.f32.mrf.mxu0
    %v1649 = vadd.f32 %v185, %v1648
    %v1650 = vpop.f32.mrf.mxu0
    %v1651 = vadd.f32 %v185, %v1650
    %1652 = vmatmul.bf16.gmra.mxu0 %v1552
    %v1653 = vpop.f32.mrf.mxu0
    %v1654 = vadd.f32 %v185, %v1653
    %v1655 = vpop.f32.mrf.mxu0
    %v1656 = vadd.f32 %v185, %v1655
    %1657 = vmatmul.bf16.gmra.mxu0 %v1553
    %v1658 = vpop.f32.mrf.mxu0
    %v1659 = vadd.f32 %v185, %v1658
    %v1660 = vpop.f32.mrf.mxu0
    %v1661 = vadd.f32 %v185, %v1660
    %1662 = vmatmul.bf16.gmra.mxu0 %v1554
    %v1663 = vpop.f32.mrf.mxu0
    %v1664 = vadd.f32 %v185, %v1663
    %v1665 = vpop.f32.mrf.mxu0
    %v1666 = vadd.f32 %v185, %v1665
    %1667 = vmatmul.bf16.gmra.mxu0 %v1555
    %v1668 = vpop.f32.mrf.mxu0
    %v1669 = vadd.f32 %v185, %v1668
    %v1670 = vpop.f32.mrf.mxu0
    %v1671 = vadd.f32 %v185, %v1670
    %1672 = vmatmul.bf16.gmra.mxu0 %v1556
    %v1673 = vpop.f32.mrf.mxu0
    %v1674 = vadd.f32 %v185, %v1673
    %v1675 = vpop.f32.mrf.mxu0
    %v1676 = vadd.f32 %v185, %v1675
    %1677 = vmatmul.bf16.gmra.mxu0 %v1557
    %v1678 = vpop.f32.mrf.mxu0
    %v1679 = vadd.f32 %v185, %v1678
    %v1680 = vpop.f32.mrf.mxu0
    %v1681 = vadd.f32 %v185, %v1680
    %1682 = vmatmul.bf16.gmra.mxu0 %v1558
    %v1683 = vpop.f32.mrf.mxu0
    %v1684 = vadd.f32 %v185, %v1683
    %v1685 = vpop.f32.mrf.mxu0
    %v1686 = vadd.f32 %v185, %v1685
    %1687 = vmatmul.bf16.gmra.mxu0 %v1559
    %v1688 = vpop.f32.mrf.mxu0
    %v1689 = vadd.f32 %v185, %v1688
    %v1690 = vpop.f32.mrf.mxu0
    %v1691 = vadd.f32 %v185, %v1690
    %1692 = vmatmul.bf16.gmra.mxu0 %v1560
    %v1693 = vpop.f32.mrf.mxu0
    %v1694 = vadd.f32 %v185, %v1693
    %v1695 = vpop.f32.mrf.mxu0
    %v1696 = vadd.f32 %v185, %v1695
    %1697 = vdwg.mxu0
    %v1714 = vunpack.c.l.b16 %v101
    %v1715 = vunpack.c.l.b16 %v102
    %v1716 = vunpack.c.l.b16 %v103
    %v1717 = vunpack.c.l.b16 %v104
    %v1718 = vunpack.c.l.b16 %v105
    %v1719 = vunpack.c.l.b16 %v106
    %v1720 = vunpack.c.l.b16 %v107
    %v1721 = vunpack.c.l.b16 %v108
    %v1722 = vunpack.c.l.b16 %v109
    %v1723 = vunpack.c.l.b16 %v110
    %v1724 = vunpack.c.l.b16 %v111
    %v1725 = vunpack.c.l.b16 %v112
    %v1726 = vunpack.c.l.b16 %v113
    %v1727 = vunpack.c.l.b16 %v114
    %v1728 = vunpack.c.l.b16 %v115
    %v1729 = vunpack.c.l.b16 %v116
    %v1730 = vpack.c.b16 %v1715, %v1714
    %v1731 = vpack.c.b16 %v1717, %v1716
    %v1732 = vpack.c.b16 %v1719, %v1718
    %v1733 = vpack.c.b16 %v1721, %v1720
    %v1734 = vpack.c.b16 %v1723, %v1722
    %v1735 = vpack.c.b16 %v1725, %v1724
    %v1736 = vpack.c.b16 %v1727, %v1726
    %v1737 = vpack.c.b16 %v1729, %v1728
    %1746 = vmatpush.bf16.msra.mxu0 %v1737
    %1747 = vmatpush.bf16.msra.mxu0 %v1736
    %1748 = vmatpush.bf16.msra.mxu0 %v1735
    %1749 = vmatpush.bf16.msra.mxu0 %v1734
    %1750 = vmatpush.bf16.msra.mxu0 %v1733
    %1751 = vmatpush.bf16.msra.mxu0 %v1732
    %1752 = vmatpush.bf16.msra.mxu0 %v1731
    %1753 = vmatpush.bf16.msra.mxu0 %v1730
    %1754 = vmatmul.bf16.gmra.mxu0 %v1545
    %v1755 = vpop.f32.mrf.mxu0
    %v1756 = vadd.f32 %v186, %v1755
    %v1757 = vpop.f32.mrf.mxu0
    %v1758 = vadd.f32 %v186, %v1757
    %1759 = vmatmul.bf16.gmra.mxu0 %v1546
    %v1760 = vpop.f32.mrf.mxu0
    %v1761 = vadd.f32 %v186, %v1760
    %v1762 = vpop.f32.mrf.mxu0
    %v1763 = vadd.f32 %v186, %v1762
    %1764 = vmatmul.bf16.gmra.mxu0 %v1547
    %v1765 = vpop.f32.mrf.mxu0
    %v1766 = vadd.f32 %v186, %v1765
    %v1767 = vpop.f32.mrf.mxu0
    %v1768 = vadd.f32 %v186, %v1767
    %1769 = vmatmul.bf16.gmra.mxu0 %v1548
    %v1770 = vpop.f32.mrf.mxu0
    %v1771 = vadd.f32 %v186, %v1770
    %v1772 = vpop.f32.mrf.mxu0
    %v1773 = vadd.f32 %v186, %v1772
    %1774 = vmatmul.bf16.gmra.mxu0 %v1549
    %v1775 = vpop.f32.mrf.mxu0
    %v1776 = vadd.f32 %v186, %v1775
    %v1777 = vpop.f32.mrf.mxu0
    %v1778 = vadd.f32 %v186, %v1777
    %1779 = vmatmul.bf16.gmra.mxu0 %v1550
    %v1780 = vpop.f32.mrf.mxu0
    %v1781 = vadd.f32 %v186, %v1780
    %v1782 = vpop.f32.mrf.mxu0
    %v1783 = vadd.f32 %v186, %v1782
    %1784 = vmatmul.bf16.gmra.mxu0 %v1551
    %v1785 = vpop.f32.mrf.mxu0
    %v1786 = vadd.f32 %v186, %v1785
    %v1787 = vpop.f32.mrf.mxu0
    %v1788 = vadd.f32 %v186, %v1787
    %1789 = vmatmul.bf16.gmra.mxu0 %v1552
    %v1790 = vpop.f32.mrf.mxu0
    %v1791 = vadd.f32 %v186, %v1790
    %v1792 = vpop.f32.mrf.mxu0
    %v1793 = vadd.f32 %v186, %v1792
    %1794 = vmatmul.bf16.gmra.mxu0 %v1553
    %v1795 = vpop.f32.mrf.mxu0
    %v1796 = vadd.f32 %v186, %v1795
    %v1797 = vpop.f32.mrf.mxu0
    %v1798 = vadd.f32 %v186, %v1797
    %1799 = vmatmul.bf16.gmra.mxu0 %v1554
    %v1800 = vpop.f32.mrf.mxu0
    %v1801 = vadd.f32 %v186, %v1800
    %v1802 = vpop.f32.mrf.mxu0
    %v1803 = vadd.f32 %v186, %v1802
    %1804 = vmatmul.bf16.gmra.mxu0 %v1555
    %v1805 = vpop.f32.mrf.mxu0
    %v1806 = vadd.f32 %v186, %v1805
    %v1807 = vpop.f32.mrf.mxu0
    %v1808 = vadd.f32 %v186, %v1807
    %1809 = vmatmul.bf16.gmra.mxu0 %v1556
    %v1810 = vpop.f32.mrf.mxu0
    %v1811 = vadd.f32 %v186, %v1810
    %v1812 = vpop.f32.mrf.mxu0
    %v1813 = vadd.f32 %v186, %v1812
    %1814 = vmatmul.bf16.gmra.mxu0 %v1557
    %v1815 = vpop.f32.mrf.mxu0
    %v1816 = vadd.f32 %v186, %v1815
    %v1817 = vpop.f32.mrf.mxu0
    %v1818 = vadd.f32 %v186, %v1817
    %1819 = vmatmul.bf16.gmra.mxu0 %v1558
    %v1820 = vpop.f32.mrf.mxu0
    %v1821 = vadd.f32 %v186, %v1820
    %v1822 = vpop.f32.mrf.mxu0
    %v1823 = vadd.f32 %v186, %v1822
    %1824 = vmatmul.bf16.gmra.mxu0 %v1559
    %v1825 = vpop.f32.mrf.mxu0
    %v1826 = vadd.f32 %v186, %v1825
    %v1827 = vpop.f32.mrf.mxu0
    %v1828 = vadd.f32 %v186, %v1827
    %1829 = vmatmul.bf16.gmra.mxu0 %v1560
    %v1830 = vpop.f32.mrf.mxu0
    %v1831 = vadd.f32 %v186, %v1830
    %v1832 = vpop.f32.mrf.mxu0
    %v1833 = vadd.f32 %v186, %v1832
    %1834 = vdwg.mxu0
    %v1835 = vpack.c.bf16 %v1283, %v1281
    %v1836 = vpack.c.bf16 %v1288, %v1286
    %v1837 = vpack.c.bf16 %v1293, %v1291
    %v1838 = vpack.c.bf16 %v1298, %v1296
    %v1839 = vpack.c.bf16 %v1303, %v1301
    %v1840 = vpack.c.bf16 %v1308, %v1306
    %v1841 = vpack.c.bf16 %v1313, %v1311
    %v1842 = vpack.c.bf16 %v1318, %v1316
    %v1843 = vpack.c.bf16 %v1323, %v1321
    %v1844 = vpack.c.bf16 %v1328, %v1326
    %v1845 = vpack.c.bf16 %v1333, %v1331
    %v1846 = vpack.c.bf16 %v1338, %v1336
    %v1847 = vpack.c.bf16 %v1343, %v1341
    %v1848 = vpack.c.bf16 %v1348, %v1346
    %v1849 = vpack.c.bf16 %v1353, %v1351
    %v1850 = vpack.c.bf16 %v1358, %v1356
    %v1852 = vunpack.c.l.b16 %v127
    %v1853 = vunpack.c.h.b16 %v127
    %v1854 = vpack.c.b16 %v1852, %v1852
    %v1855 = vpack.c.b16 %v1853, %v1853
    %v1857 = vsel %vm769, %v1835, 0
    %v1860 = vsel %vm769, %v1836, 0
    %v1863 = vsel %vm769, %v1837, 0
    %v1866 = vsel %vm769, %v1838, 0
    %v1869 = vsel %vm769, %v1839, 0
    %v1872 = vsel %vm769, %v1840, 0
    %v1875 = vsel %vm769, %v1841, 0
    %v1878 = vsel %vm769, %v1842, 0
    %v1881 = vsel %vm769, %v1843, 0
    %v1884 = vsel %vm769, %v1844, 0
    %v1887 = vsel %vm769, %v1845, 0
    %v1890 = vsel %vm769, %v1846, 0
    %v1893 = vsel %vm769, %v1847, 0
    %v1896 = vsel %vm769, %v1848, 0
    %v1899 = vsel %vm769, %v1849, 0
    %v1902 = vsel %vm769, %v1850, 0
    %v1905 = vsel %vm818, %v1854, 0
    %v1908 = vsel %vm818, %v1855, 0
    %1910 = vmatpush.bf16.msra.mxu0 0
    %1911 = vmatpush.bf16.msra.mxu0 0
    %1912 = vmatpush.bf16.msra.mxu0 0
    %1913 = vmatpush.bf16.msra.mxu0 0
    %1914 = vmatpush.bf16.msra.mxu0 0
    %1915 = vmatpush.bf16.msra.mxu0 0
    %1916 = vmatpush.bf16.msra.mxu0 0
    %1917 = vmatpush.bf16.msra.mxu0 %v1905
    %1918 = vmatmul.bf16.gmra.mxu0 %v1857
    %v1919 = vpop.f32.mrf.mxu0
    %v1920 = vadd.f32 0.0, %v1919
    %v1921 = vpop.f32.mrf.mxu0
    %v1922 = vadd.f32 0.0, %v1921
    %1923 = vmatmul.bf16.gmra.mxu0 %v1860
    %v1924 = vpop.f32.mrf.mxu0
    %v1925 = vadd.f32 0.0, %v1924
    %v1926 = vpop.f32.mrf.mxu0
    %v1927 = vadd.f32 0.0, %v1926
    %1928 = vmatmul.bf16.gmra.mxu0 %v1863
    %v1929 = vpop.f32.mrf.mxu0
    %v1930 = vadd.f32 0.0, %v1929
    %v1931 = vpop.f32.mrf.mxu0
    %v1932 = vadd.f32 0.0, %v1931
    %1933 = vmatmul.bf16.gmra.mxu0 %v1866
    %v1934 = vpop.f32.mrf.mxu0
    %v1935 = vadd.f32 0.0, %v1934
    %v1936 = vpop.f32.mrf.mxu0
    %v1937 = vadd.f32 0.0, %v1936
    %1938 = vmatmul.bf16.gmra.mxu0 %v1869
    %v1939 = vpop.f32.mrf.mxu0
    %v1940 = vadd.f32 0.0, %v1939
    %v1941 = vpop.f32.mrf.mxu0
    %v1942 = vadd.f32 0.0, %v1941
    %1943 = vmatmul.bf16.gmra.mxu0 %v1872
    %v1944 = vpop.f32.mrf.mxu0
    %v1945 = vadd.f32 0.0, %v1944
    %v1946 = vpop.f32.mrf.mxu0
    %v1947 = vadd.f32 0.0, %v1946
    %1948 = vmatmul.bf16.gmra.mxu0 %v1875
    %v1949 = vpop.f32.mrf.mxu0
    %v1950 = vadd.f32 0.0, %v1949
    %v1951 = vpop.f32.mrf.mxu0
    %v1952 = vadd.f32 0.0, %v1951
    %1953 = vmatmul.bf16.gmra.mxu0 %v1878
    %v1954 = vpop.f32.mrf.mxu0
    %v1955 = vadd.f32 0.0, %v1954
    %v1956 = vpop.f32.mrf.mxu0
    %v1957 = vadd.f32 0.0, %v1956
    %1958 = vmatmul.bf16.gmra.mxu0 %v1881
    %v1959 = vpop.f32.mrf.mxu0
    %v1960 = vadd.f32 0.0, %v1959
    %v1961 = vpop.f32.mrf.mxu0
    %v1962 = vadd.f32 0.0, %v1961
    %1963 = vmatmul.bf16.gmra.mxu0 %v1884
    %v1964 = vpop.f32.mrf.mxu0
    %v1965 = vadd.f32 0.0, %v1964
    %v1966 = vpop.f32.mrf.mxu0
    %v1967 = vadd.f32 0.0, %v1966
    %1968 = vmatmul.bf16.gmra.mxu0 %v1887
    %v1969 = vpop.f32.mrf.mxu0
    %v1970 = vadd.f32 0.0, %v1969
    %v1971 = vpop.f32.mrf.mxu0
    %v1972 = vadd.f32 0.0, %v1971
    %1973 = vmatmul.bf16.gmra.mxu0 %v1890
    %v1974 = vpop.f32.mrf.mxu0
    %v1975 = vadd.f32 0.0, %v1974
    %v1976 = vpop.f32.mrf.mxu0
    %v1977 = vadd.f32 0.0, %v1976
    %1978 = vmatmul.bf16.gmra.mxu0 %v1893
    %v1979 = vpop.f32.mrf.mxu0
    %v1980 = vadd.f32 0.0, %v1979
    %v1981 = vpop.f32.mrf.mxu0
    %v1982 = vadd.f32 0.0, %v1981
    %1983 = vmatmul.bf16.gmra.mxu0 %v1896
    %v1984 = vpop.f32.mrf.mxu0
    %v1985 = vadd.f32 0.0, %v1984
    %v1986 = vpop.f32.mrf.mxu0
    %v1987 = vadd.f32 0.0, %v1986
    %1988 = vmatmul.bf16.gmra.mxu0 %v1899
    %v1989 = vpop.f32.mrf.mxu0
    %v1990 = vadd.f32 0.0, %v1989
    %v1991 = vpop.f32.mrf.mxu0
    %v1992 = vadd.f32 0.0, %v1991
    %1993 = vmatmul.bf16.gmra.mxu0 %v1902
    %v1994 = vpop.f32.mrf.mxu0
    %v1995 = vadd.f32 0.0, %v1994
    %v1996 = vpop.f32.mrf.mxu0
    %v1997 = vadd.f32 0.0, %v1996
    %1998 = vdwg.mxu0
    %1999 = vmatpush.bf16.msra.mxu0 0
    %2000 = vmatpush.bf16.msra.mxu0 0
    %2001 = vmatpush.bf16.msra.mxu0 0
    %2002 = vmatpush.bf16.msra.mxu0 0
    %2003 = vmatpush.bf16.msra.mxu0 0
    %2004 = vmatpush.bf16.msra.mxu0 0
    %2005 = vmatpush.bf16.msra.mxu0 0
    %2006 = vmatpush.bf16.msra.mxu0 %v1908
    %2007 = vmatmul.bf16.gmra.mxu0 %v1857
    %v2008 = vpop.f32.mrf.mxu0
    %v2009 = vadd.f32 0.0, %v2008
    %v2010 = vpop.f32.mrf.mxu0
    %v2011 = vadd.f32 0.0, %v2010
    %2012 = vmatmul.bf16.gmra.mxu0 %v1860
    %v2013 = vpop.f32.mrf.mxu0
    %v2014 = vadd.f32 0.0, %v2013
    %v2015 = vpop.f32.mrf.mxu0
    %v2016 = vadd.f32 0.0, %v2015
    %2017 = vmatmul.bf16.gmra.mxu0 %v1863
    %v2018 = vpop.f32.mrf.mxu0
    %v2019 = vadd.f32 0.0, %v2018
    %v2020 = vpop.f32.mrf.mxu0
    %v2021 = vadd.f32 0.0, %v2020
    %2022 = vmatmul.bf16.gmra.mxu0 %v1866
    %v2023 = vpop.f32.mrf.mxu0
    %v2024 = vadd.f32 0.0, %v2023
    %v2025 = vpop.f32.mrf.mxu0
    %v2026 = vadd.f32 0.0, %v2025
    %2027 = vmatmul.bf16.gmra.mxu0 %v1869
    %v2028 = vpop.f32.mrf.mxu0
    %v2029 = vadd.f32 0.0, %v2028
    %v2030 = vpop.f32.mrf.mxu0
    %v2031 = vadd.f32 0.0, %v2030
    %2032 = vmatmul.bf16.gmra.mxu0 %v1872
    %v2033 = vpop.f32.mrf.mxu0
    %v2034 = vadd.f32 0.0, %v2033
    %v2035 = vpop.f32.mrf.mxu0
    %v2036 = vadd.f32 0.0, %v2035
    %2037 = vmatmul.bf16.gmra.mxu0 %v1875
    %v2038 = vpop.f32.mrf.mxu0
    %v2039 = vadd.f32 0.0, %v2038
    %v2040 = vpop.f32.mrf.mxu0
    %v2041 = vadd.f32 0.0, %v2040
    %2042 = vmatmul.bf16.gmra.mxu0 %v1878
    %v2043 = vpop.f32.mrf.mxu0
    %v2044 = vadd.f32 0.0, %v2043
    %v2045 = vpop.f32.mrf.mxu0
    %v2046 = vadd.f32 0.0, %v2045
    %2047 = vmatmul.bf16.gmra.mxu0 %v1881
    %v2048 = vpop.f32.mrf.mxu0
    %v2049 = vadd.f32 0.0, %v2048
    %v2050 = vpop.f32.mrf.mxu0
    %v2051 = vadd.f32 0.0, %v2050
    %2052 = vmatmul.bf16.gmra.mxu0 %v1884
    %v2053 = vpop.f32.mrf.mxu0
    %v2054 = vadd.f32 0.0, %v2053
    %v2055 = vpop.f32.mrf.mxu0
    %v2056 = vadd.f32 0.0, %v2055
    %2057 = vmatmul.bf16.gmra.mxu0 %v1887
    %v2058 = vpop.f32.mrf.mxu0
    %v2059 = vadd.f32 0.0, %v2058
    %v2060 = vpop.f32.mrf.mxu0
    %v2061 = vadd.f32 0.0, %v2060
    %2062 = vmatmul.bf16.gmra.mxu0 %v1890
    %v2063 = vpop.f32.mrf.mxu0
    %v2064 = vadd.f32 0.0, %v2063
    %v2065 = vpop.f32.mrf.mxu0
    %v2066 = vadd.f32 0.0, %v2065
    %2067 = vmatmul.bf16.gmra.mxu0 %v1893
    %v2068 = vpop.f32.mrf.mxu0
    %v2069 = vadd.f32 0.0, %v2068
    %v2070 = vpop.f32.mrf.mxu0
    %v2071 = vadd.f32 0.0, %v2070
    %2072 = vmatmul.bf16.gmra.mxu0 %v1896
    %v2073 = vpop.f32.mrf.mxu0
    %v2074 = vadd.f32 0.0, %v2073
    %v2075 = vpop.f32.mrf.mxu0
    %v2076 = vadd.f32 0.0, %v2075
    %2077 = vmatmul.bf16.gmra.mxu0 %v1899
    %v2078 = vpop.f32.mrf.mxu0
    %v2079 = vadd.f32 0.0, %v2078
    %v2080 = vpop.f32.mrf.mxu0
    %v2081 = vadd.f32 0.0, %v2080
    %2082 = vmatmul.bf16.gmra.mxu0 %v1902
    %v2083 = vpop.f32.mrf.mxu0
    %v2084 = vadd.f32 0.0, %v2083
    %v2085 = vpop.f32.mrf.mxu0
    %v2086 = vadd.f32 0.0, %v2085
    %2087 = vdwg.mxu0
    %v2088 = vmul.f32 %v1619, %v1920
    %v2089 = vmul.f32 %v1619, %v2009
    %v2090 = vmul.f32 %v1621, %v1922
    %v2091 = vmul.f32 %v1621, %v2011
    %v2092 = vmul.f32 %v1624, %v1925
    %v2093 = vmul.f32 %v1624, %v2014
    %v2094 = vmul.f32 %v1626, %v1927
    %v2095 = vmul.f32 %v1626, %v2016
    %v2096 = vmul.f32 %v1629, %v1930
    %v2097 = vmul.f32 %v1629, %v2019
    %v2098 = vmul.f32 %v1631, %v1932
    %v2099 = vmul.f32 %v1631, %v2021
    %v2100 = vmul.f32 %v1634, %v1935
    %v2101 = vmul.f32 %v1634, %v2024
    %v2102 = vmul.f32 %v1636, %v1937
    %v2103 = vmul.f32 %v1636, %v2026
    %v2104 = vmul.f32 %v1639, %v1940
    %v2105 = vmul.f32 %v1639, %v2029
    %v2106 = vmul.f32 %v1641, %v1942
    %v2107 = vmul.f32 %v1641, %v2031
    %v2108 = vmul.f32 %v1644, %v1945
    %v2109 = vmul.f32 %v1644, %v2034
    %v2110 = vmul.f32 %v1646, %v1947
    %v2111 = vmul.f32 %v1646, %v2036
    %v2112 = vmul.f32 %v1649, %v1950
    %v2113 = vmul.f32 %v1649, %v2039
    %v2114 = vmul.f32 %v1651, %v1952
    %v2115 = vmul.f32 %v1651, %v2041
    %v2116 = vmul.f32 %v1654, %v1955
    %v2117 = vmul.f32 %v1654, %v2044
    %v2118 = vmul.f32 %v1656, %v1957
    %v2119 = vmul.f32 %v1656, %v2046
    %v2120 = vmul.f32 %v1659, %v1960
    %v2121 = vmul.f32 %v1659, %v2049
    %v2122 = vmul.f32 %v1661, %v1962
    %v2123 = vmul.f32 %v1661, %v2051
    %v2124 = vmul.f32 %v1664, %v1965
    %v2125 = vmul.f32 %v1664, %v2054
    %v2126 = vmul.f32 %v1666, %v1967
    %v2127 = vmul.f32 %v1666, %v2056
    %v2128 = vmul.f32 %v1669, %v1970
    %v2129 = vmul.f32 %v1669, %v2059
    %v2130 = vmul.f32 %v1671, %v1972
    %v2131 = vmul.f32 %v1671, %v2061
    %v2132 = vmul.f32 %v1674, %v1975
    %v2133 = vmul.f32 %v1674, %v2064
    %v2134 = vmul.f32 %v1676, %v1977
    %v2135 = vmul.f32 %v1676, %v2066
    %v2136 = vmul.f32 %v1679, %v1980
    %v2137 = vmul.f32 %v1679, %v2069
    %v2138 = vmul.f32 %v1681, %v1982
    %v2139 = vmul.f32 %v1681, %v2071
    %v2140 = vmul.f32 %v1684, %v1985
    %v2141 = vmul.f32 %v1684, %v2074
    %v2142 = vmul.f32 %v1686, %v1987
    %v2143 = vmul.f32 %v1686, %v2076
    %v2144 = vmul.f32 %v1689, %v1990
    %v2145 = vmul.f32 %v1689, %v2079
    %v2146 = vmul.f32 %v1691, %v1992
    %v2147 = vmul.f32 %v1691, %v2081
    %v2148 = vmul.f32 %v1694, %v1995
    %v2149 = vmul.f32 %v1694, %v2084
    %v2150 = vmul.f32 %v1696, %v1997
    %v2151 = vmul.f32 %v1696, %v2086
    %v2152 = vpack.c.bf16 %v2090, %v2088
    %v2153 = vpack.c.bf16 %v2091, %v2089
    %v2154 = vpack.c.bf16 %v2094, %v2092
    %v2155 = vpack.c.bf16 %v2095, %v2093
    %v2156 = vpack.c.bf16 %v2098, %v2096
    %v2157 = vpack.c.bf16 %v2099, %v2097
    %v2158 = vpack.c.bf16 %v2102, %v2100
    %v2159 = vpack.c.bf16 %v2103, %v2101
    %v2160 = vpack.c.bf16 %v2106, %v2104
    %v2161 = vpack.c.bf16 %v2107, %v2105
    %v2162 = vpack.c.bf16 %v2110, %v2108
    %v2163 = vpack.c.bf16 %v2111, %v2109
    %v2164 = vpack.c.bf16 %v2114, %v2112
    %v2165 = vpack.c.bf16 %v2115, %v2113
    %v2166 = vpack.c.bf16 %v2118, %v2116
    %v2167 = vpack.c.bf16 %v2119, %v2117
    %v2168 = vpack.c.bf16 %v2122, %v2120
    %v2169 = vpack.c.bf16 %v2123, %v2121
    %v2170 = vpack.c.bf16 %v2126, %v2124
    %v2171 = vpack.c.bf16 %v2127, %v2125
    %v2172 = vpack.c.bf16 %v2130, %v2128
    %v2173 = vpack.c.bf16 %v2131, %v2129
    %v2174 = vpack.c.bf16 %v2134, %v2132
    %v2175 = vpack.c.bf16 %v2135, %v2133
    %v2176 = vpack.c.bf16 %v2138, %v2136
    %v2177 = vpack.c.bf16 %v2139, %v2137
    %v2178 = vpack.c.bf16 %v2142, %v2140
    %v2179 = vpack.c.bf16 %v2143, %v2141
    %v2180 = vpack.c.bf16 %v2146, %v2144
    %v2181 = vpack.c.bf16 %v2147, %v2145
    %v2182 = vpack.c.bf16 %v2150, %v2148
    %v2183 = vpack.c.bf16 %v2151, %v2149
    %v2216 = vunpack.c.l.b16 %v128
    %v2217 = vunpack.c.l.b16 %v129
    %v2218 = vunpack.c.l.b16 %v130
    %v2219 = vunpack.c.l.b16 %v131
    %v2220 = vunpack.c.l.b16 %v132
    %v2221 = vunpack.c.l.b16 %v133
    %v2222 = vunpack.c.l.b16 %v134
    %v2223 = vunpack.c.l.b16 %v135
    %v2224 = vunpack.c.l.b16 %v136
    %v2225 = vunpack.c.l.b16 %v137
    %v2226 = vunpack.c.l.b16 %v138
    %v2227 = vunpack.c.l.b16 %v139
    %v2228 = vunpack.c.l.b16 %v140
    %v2229 = vunpack.c.l.b16 %v141
    %v2230 = vunpack.c.l.b16 %v142
    %v2231 = vunpack.c.l.b16 %v143
    %v2232 = vunpack.c.l.b16 %v144
    %v2233 = vunpack.c.l.b16 %v145
    %v2234 = vunpack.c.l.b16 %v146
    %v2235 = vunpack.c.l.b16 %v147
    %v2236 = vunpack.c.l.b16 %v148
    %v2237 = vunpack.c.l.b16 %v149
    %v2238 = vunpack.c.l.b16 %v150
    %v2239 = vunpack.c.l.b16 %v151
    %v2240 = vunpack.c.l.b16 %v152
    %v2241 = vunpack.c.l.b16 %v153
    %v2242 = vunpack.c.l.b16 %v154
    %v2243 = vunpack.c.l.b16 %v155
    %v2244 = vunpack.c.l.b16 %v156
    %v2245 = vunpack.c.l.b16 %v157
    %v2246 = vunpack.c.l.b16 %v158
    %v2247 = vunpack.c.l.b16 %v159
    %v2248 = vpack.c.b16 %v2217, %v2216
    %v2249 = vpack.c.b16 %v2219, %v2218
    %v2250 = vpack.c.b16 %v2221, %v2220
    %v2251 = vpack.c.b16 %v2223, %v2222
    %v2252 = vpack.c.b16 %v2225, %v2224
    %v2253 = vpack.c.b16 %v2227, %v2226
    %v2254 = vpack.c.b16 %v2229, %v2228
    %v2255 = vpack.c.b16 %v2231, %v2230
    %v2256 = vpack.c.b16 %v2233, %v2232
    %v2257 = vpack.c.b16 %v2235, %v2234
    %v2258 = vpack.c.b16 %v2237, %v2236
    %v2259 = vpack.c.b16 %v2239, %v2238
    %v2260 = vpack.c.b16 %v2241, %v2240
    %v2261 = vpack.c.b16 %v2243, %v2242
    %v2262 = vpack.c.b16 %v2245, %v2244
    %v2263 = vpack.c.b16 %v2247, %v2246
    %2280 = vmatpush.bf16.msra.mxu0 %v2255
    %2281 = vmatpush.bf16.msra.mxu0 %v2254
    %2282 = vmatpush.bf16.msra.mxu0 %v2253
    %2283 = vmatpush.bf16.msra.mxu0 %v2252
    %2284 = vmatpush.bf16.msra.mxu0 %v2251
    %2285 = vmatpush.bf16.msra.mxu0 %v2250
    %2286 = vmatpush.bf16.msra.mxu0 %v2249
    %2287 = vmatpush.bf16.msra.mxu0 %v2248
    %2288 = vmatmul.bf16.gmra.mxu0 %v2152
    %v2289 = vpop.f32.mrf.mxu0
    %v2290 = vadd.f32 0.0, %v2289
    %v2291 = vpop.f32.mrf.mxu0
    %v2292 = vadd.f32 0.0, %v2291
    %2293 = vmatmul.bf16.gmra.mxu0 %v2154
    %v2294 = vpop.f32.mrf.mxu0
    %v2295 = vadd.f32 0.0, %v2294
    %v2296 = vpop.f32.mrf.mxu0
    %v2297 = vadd.f32 0.0, %v2296
    %2298 = vmatmul.bf16.gmra.mxu0 %v2156
    %v2299 = vpop.f32.mrf.mxu0
    %v2300 = vadd.f32 0.0, %v2299
    %v2301 = vpop.f32.mrf.mxu0
    %v2302 = vadd.f32 0.0, %v2301
    %2303 = vmatmul.bf16.gmra.mxu0 %v2158
    %v2304 = vpop.f32.mrf.mxu0
    %v2305 = vadd.f32 0.0, %v2304
    %v2306 = vpop.f32.mrf.mxu0
    %v2307 = vadd.f32 0.0, %v2306
    %2308 = vmatmul.bf16.gmra.mxu0 %v2160
    %v2309 = vpop.f32.mrf.mxu0
    %v2310 = vadd.f32 0.0, %v2309
    %v2311 = vpop.f32.mrf.mxu0
    %v2312 = vadd.f32 0.0, %v2311
    %2313 = vmatmul.bf16.gmra.mxu0 %v2162
    %v2314 = vpop.f32.mrf.mxu0
    %v2315 = vadd.f32 0.0, %v2314
    %v2316 = vpop.f32.mrf.mxu0
    %v2317 = vadd.f32 0.0, %v2316
    %2318 = vmatmul.bf16.gmra.mxu0 %v2164
    %v2319 = vpop.f32.mrf.mxu0
    %v2320 = vadd.f32 0.0, %v2319
    %v2321 = vpop.f32.mrf.mxu0
    %v2322 = vadd.f32 0.0, %v2321
    %2323 = vmatmul.bf16.gmra.mxu0 %v2166
    %v2324 = vpop.f32.mrf.mxu0
    %v2325 = vadd.f32 0.0, %v2324
    %v2326 = vpop.f32.mrf.mxu0
    %v2327 = vadd.f32 0.0, %v2326
    %2328 = vmatmul.bf16.gmra.mxu0 %v2168
    %v2329 = vpop.f32.mrf.mxu0
    %v2330 = vadd.f32 0.0, %v2329
    %v2331 = vpop.f32.mrf.mxu0
    %v2332 = vadd.f32 0.0, %v2331
    %2333 = vmatmul.bf16.gmra.mxu0 %v2170
    %v2334 = vpop.f32.mrf.mxu0
    %v2335 = vadd.f32 0.0, %v2334
    %v2336 = vpop.f32.mrf.mxu0
    %v2337 = vadd.f32 0.0, %v2336
    %2338 = vmatmul.bf16.gmra.mxu0 %v2172
    %v2339 = vpop.f32.mrf.mxu0
    %v2340 = vadd.f32 0.0, %v2339
    %v2341 = vpop.f32.mrf.mxu0
    %v2342 = vadd.f32 0.0, %v2341
    %2343 = vmatmul.bf16.gmra.mxu0 %v2174
    %v2344 = vpop.f32.mrf.mxu0
    %v2345 = vadd.f32 0.0, %v2344
    %v2346 = vpop.f32.mrf.mxu0
    %v2347 = vadd.f32 0.0, %v2346
    %2348 = vmatmul.bf16.gmra.mxu0 %v2176
    %v2349 = vpop.f32.mrf.mxu0
    %v2350 = vadd.f32 0.0, %v2349
    %v2351 = vpop.f32.mrf.mxu0
    %v2352 = vadd.f32 0.0, %v2351
    %2353 = vmatmul.bf16.gmra.mxu0 %v2178
    %v2354 = vpop.f32.mrf.mxu0
    %v2355 = vadd.f32 0.0, %v2354
    %v2356 = vpop.f32.mrf.mxu0
    %v2357 = vadd.f32 0.0, %v2356
    %2358 = vmatmul.bf16.gmra.mxu0 %v2180
    %v2359 = vpop.f32.mrf.mxu0
    %v2360 = vadd.f32 0.0, %v2359
    %v2361 = vpop.f32.mrf.mxu0
    %v2362 = vadd.f32 0.0, %v2361
    %2363 = vmatmul.bf16.gmra.mxu0 %v2182
    %v2364 = vpop.f32.mrf.mxu0
    %v2365 = vadd.f32 0.0, %v2364
    %v2366 = vpop.f32.mrf.mxu0
    %v2367 = vadd.f32 0.0, %v2366
    %2368 = vdwg.mxu0
    %2369 = vmatpush.bf16.msra.mxu0 %v2263
    %2370 = vmatpush.bf16.msra.mxu0 %v2262
    %2371 = vmatpush.bf16.msra.mxu0 %v2261
    %2372 = vmatpush.bf16.msra.mxu0 %v2260
    %2373 = vmatpush.bf16.msra.mxu0 %v2259
    %2374 = vmatpush.bf16.msra.mxu0 %v2258
    %2375 = vmatpush.bf16.msra.mxu0 %v2257
    %2376 = vmatpush.bf16.msra.mxu0 %v2256
    %2377 = vmatmul.bf16.gmra.mxu0 %v2153
    %v2378 = vpop.f32.mrf.mxu0
    %v2379 = vadd.f32 %v2290, %v2378
    %v2380 = vpop.f32.mrf.mxu0
    %v2381 = vadd.f32 %v2292, %v2380
    %2382 = vmatmul.bf16.gmra.mxu0 %v2155
    %v2383 = vpop.f32.mrf.mxu0
    %v2384 = vadd.f32 %v2295, %v2383
    %v2385 = vpop.f32.mrf.mxu0
    %v2386 = vadd.f32 %v2297, %v2385
    %2387 = vmatmul.bf16.gmra.mxu0 %v2157
    %v2388 = vpop.f32.mrf.mxu0
    %v2389 = vadd.f32 %v2300, %v2388
    %v2390 = vpop.f32.mrf.mxu0
    %v2391 = vadd.f32 %v2302, %v2390
    %2392 = vmatmul.bf16.gmra.mxu0 %v2159
    %v2393 = vpop.f32.mrf.mxu0
    %v2394 = vadd.f32 %v2305, %v2393
    %v2395 = vpop.f32.mrf.mxu0
    %v2396 = vadd.f32 %v2307, %v2395
    %2397 = vmatmul.bf16.gmra.mxu0 %v2161
    %v2398 = vpop.f32.mrf.mxu0
    %v2399 = vadd.f32 %v2310, %v2398
    %v2400 = vpop.f32.mrf.mxu0
    %v2401 = vadd.f32 %v2312, %v2400
    %2402 = vmatmul.bf16.gmra.mxu0 %v2163
    %v2403 = vpop.f32.mrf.mxu0
    %v2404 = vadd.f32 %v2315, %v2403
    %v2405 = vpop.f32.mrf.mxu0
    %v2406 = vadd.f32 %v2317, %v2405
    %2407 = vmatmul.bf16.gmra.mxu0 %v2165
    %v2408 = vpop.f32.mrf.mxu0
    %v2409 = vadd.f32 %v2320, %v2408
    %v2410 = vpop.f32.mrf.mxu0
    %v2411 = vadd.f32 %v2322, %v2410
    %2412 = vmatmul.bf16.gmra.mxu0 %v2167
    %v2413 = vpop.f32.mrf.mxu0
    %v2414 = vadd.f32 %v2325, %v2413
    %v2415 = vpop.f32.mrf.mxu0
    %v2416 = vadd.f32 %v2327, %v2415
    %2417 = vmatmul.bf16.gmra.mxu0 %v2169
    %v2418 = vpop.f32.mrf.mxu0
    %v2419 = vadd.f32 %v2330, %v2418
    %v2420 = vpop.f32.mrf.mxu0
    %v2421 = vadd.f32 %v2332, %v2420
    %2422 = vmatmul.bf16.gmra.mxu0 %v2171
    %v2423 = vpop.f32.mrf.mxu0
    %v2424 = vadd.f32 %v2335, %v2423
    %v2425 = vpop.f32.mrf.mxu0
    %v2426 = vadd.f32 %v2337, %v2425
    %2427 = vmatmul.bf16.gmra.mxu0 %v2173
    %v2428 = vpop.f32.mrf.mxu0
    %v2429 = vadd.f32 %v2340, %v2428
    %v2430 = vpop.f32.mrf.mxu0
    %v2431 = vadd.f32 %v2342, %v2430
    %2432 = vmatmul.bf16.gmra.mxu0 %v2175
    %v2433 = vpop.f32.mrf.mxu0
    %v2434 = vadd.f32 %v2345, %v2433
    %v2435 = vpop.f32.mrf.mxu0
    %v2436 = vadd.f32 %v2347, %v2435
    %2437 = vmatmul.bf16.gmra.mxu0 %v2177
    %v2438 = vpop.f32.mrf.mxu0
    %v2439 = vadd.f32 %v2350, %v2438
    %v2440 = vpop.f32.mrf.mxu0
    %v2441 = vadd.f32 %v2352, %v2440
    %2442 = vmatmul.bf16.gmra.mxu0 %v2179
    %v2443 = vpop.f32.mrf.mxu0
    %v2444 = vadd.f32 %v2355, %v2443
    %v2445 = vpop.f32.mrf.mxu0
    %v2446 = vadd.f32 %v2357, %v2445
    %2447 = vmatmul.bf16.gmra.mxu0 %v2181
    %v2448 = vpop.f32.mrf.mxu0
    %v2449 = vadd.f32 %v2360, %v2448
    %v2450 = vpop.f32.mrf.mxu0
    %v2451 = vadd.f32 %v2362, %v2450
    %2452 = vmatmul.bf16.gmra.mxu0 %v2183
    %v2453 = vpop.f32.mrf.mxu0
    %v2454 = vadd.f32 %v2365, %v2453
    %v2455 = vpop.f32.mrf.mxu0
    %v2456 = vadd.f32 %v2367, %v2455
    %2457 = vdwg.mxu0
    %v2458 = vpack.c.bf16 %v2381, %v2379
    %v2459 = vpack.c.bf16 %v2386, %v2384
    %v2460 = vpack.c.bf16 %v2391, %v2389
    %v2461 = vpack.c.bf16 %v2396, %v2394
    %v2462 = vpack.c.bf16 %v2401, %v2399
    %v2463 = vpack.c.bf16 %v2406, %v2404
    %v2464 = vpack.c.bf16 %v2411, %v2409
    %v2465 = vpack.c.bf16 %v2416, %v2414
    %v2466 = vpack.c.bf16 %v2421, %v2419
    %v2467 = vpack.c.bf16 %v2426, %v2424
    %v2468 = vpack.c.bf16 %v2431, %v2429
    %v2469 = vpack.c.bf16 %v2436, %v2434
    %v2470 = vpack.c.bf16 %v2441, %v2439
    %v2471 = vpack.c.bf16 %v2446, %v2444
    %v2472 = vpack.c.bf16 %v2451, %v2449
    %v2473 = vpack.c.bf16 %v2456, %v2454
    %v2476 = vunpack.c.l.b16 %v160
    %v2477 = vunpack.c.l.b16 %v161
    %v2478 = vpack.c.b16 %v2477, %v2476
    %v2481 = vsel %vm210, %v2458, 0
    %v2484 = vsel %vm210, %v2459, 0
    %v2487 = vsel %vm210, %v2460, 0
    %v2490 = vsel %vm210, %v2461, 0
    %v2493 = vsel %vm210, %v2462, 0
    %v2496 = vsel %vm210, %v2463, 0
    %v2499 = vsel %vm210, %v2464, 0
    %v2502 = vsel %vm210, %v2465, 0
    %v2505 = vsel %vm210, %v2466, 0
    %v2508 = vsel %vm210, %v2467, 0
    %v2511 = vsel %vm210, %v2468, 0
    %v2514 = vsel %vm210, %v2469, 0
    %v2517 = vsel %vm210, %v2470, 0
    %v2520 = vsel %vm210, %v2471, 0
    %v2523 = vsel %vm210, %v2472, 0
    %v2526 = vsel %vm210, %v2473, 0
    %2528 = vmatpush.bf16.msra.mxu0 0
    %2529 = vmatpush.bf16.msra.mxu0 0
    %2530 = vmatpush.bf16.msra.mxu0 0
    %2531 = vmatpush.bf16.msra.mxu0 0
    %2532 = vmatpush.bf16.msra.mxu0 0
    %2533 = vmatpush.bf16.msra.mxu0 0
    %2534 = vmatpush.bf16.msra.mxu0 0
    %2535 = vmatpush.bf16.msra.mxu0 %v2478
    %2536 = vmatmul.bf16.gmra.mxu0 %v2481
    %v2537 = vpop.f32.mrf.mxu0
    %v2538 = vadd.f32 0.0, %v2537
    %v2539 = vpop.f32.mrf.mxu0
    %v2540 = vadd.f32 0.0, %v2539
    %2541 = vmatmul.bf16.gmra.mxu0 %v2484
    %v2542 = vpop.f32.mrf.mxu0
    %v2543 = vadd.f32 0.0, %v2542
    %v2544 = vpop.f32.mrf.mxu0
    %v2545 = vadd.f32 0.0, %v2544
    %2546 = vmatmul.bf16.gmra.mxu0 %v2487
    %v2547 = vpop.f32.mrf.mxu0
    %v2548 = vadd.f32 0.0, %v2547
    %v2549 = vpop.f32.mrf.mxu0
    %v2550 = vadd.f32 0.0, %v2549
    %2551 = vmatmul.bf16.gmra.mxu0 %v2490
    %v2552 = vpop.f32.mrf.mxu0
    %v2553 = vadd.f32 0.0, %v2552
    %v2554 = vpop.f32.mrf.mxu0
    %v2555 = vadd.f32 0.0, %v2554
    %2556 = vmatmul.bf16.gmra.mxu0 %v2493
    %v2557 = vpop.f32.mrf.mxu0
    %v2558 = vadd.f32 0.0, %v2557
    %v2559 = vpop.f32.mrf.mxu0
    %v2560 = vadd.f32 0.0, %v2559
    %2561 = vmatmul.bf16.gmra.mxu0 %v2496
    %v2562 = vpop.f32.mrf.mxu0
    %v2563 = vadd.f32 0.0, %v2562
    %v2564 = vpop.f32.mrf.mxu0
    %v2565 = vadd.f32 0.0, %v2564
    %2566 = vmatmul.bf16.gmra.mxu0 %v2499
    %v2567 = vpop.f32.mrf.mxu0
    %v2568 = vadd.f32 0.0, %v2567
    %v2569 = vpop.f32.mrf.mxu0
    %v2570 = vadd.f32 0.0, %v2569
    %2571 = vmatmul.bf16.gmra.mxu0 %v2502
    %v2572 = vpop.f32.mrf.mxu0
    %v2573 = vadd.f32 0.0, %v2572
    %v2574 = vpop.f32.mrf.mxu0
    %v2575 = vadd.f32 0.0, %v2574
    %2576 = vmatmul.bf16.gmra.mxu0 %v2505
    %v2577 = vpop.f32.mrf.mxu0
    %v2578 = vadd.f32 0.0, %v2577
    %v2579 = vpop.f32.mrf.mxu0
    %v2580 = vadd.f32 0.0, %v2579
    %2581 = vmatmul.bf16.gmra.mxu0 %v2508
    %v2582 = vpop.f32.mrf.mxu0
    %v2583 = vadd.f32 0.0, %v2582
    %v2584 = vpop.f32.mrf.mxu0
    %v2585 = vadd.f32 0.0, %v2584
    %2586 = vmatmul.bf16.gmra.mxu0 %v2511
    %v2587 = vpop.f32.mrf.mxu0
    %v2588 = vadd.f32 0.0, %v2587
    %v2589 = vpop.f32.mrf.mxu0
    %v2590 = vadd.f32 0.0, %v2589
    %2591 = vmatmul.bf16.gmra.mxu0 %v2514
    %v2592 = vpop.f32.mrf.mxu0
    %v2593 = vadd.f32 0.0, %v2592
    %v2594 = vpop.f32.mrf.mxu0
    %v2595 = vadd.f32 0.0, %v2594
    %2596 = vmatmul.bf16.gmra.mxu0 %v2517
    %v2597 = vpop.f32.mrf.mxu0
    %v2598 = vadd.f32 0.0, %v2597
    %v2599 = vpop.f32.mrf.mxu0
    %v2600 = vadd.f32 0.0, %v2599
    %2601 = vmatmul.bf16.gmra.mxu0 %v2520
    %v2602 = vpop.f32.mrf.mxu0
    %v2603 = vadd.f32 0.0, %v2602
    %v2604 = vpop.f32.mrf.mxu0
    %v2605 = vadd.f32 0.0, %v2604
    %2606 = vmatmul.bf16.gmra.mxu0 %v2523
    %v2607 = vpop.f32.mrf.mxu0
    %v2608 = vadd.f32 0.0, %v2607
    %v2609 = vpop.f32.mrf.mxu0
    %v2610 = vadd.f32 0.0, %v2609
    %2611 = vmatmul.bf16.gmra.mxu0 %v2526
    %v2612 = vpop.f32.mrf.mxu0
    %v2613 = vadd.f32 0.0, %v2612
    %v2614 = vpop.f32.mrf.mxu0
    %v2615 = vadd.f32 0.0, %v2614
    %2616 = vdwg.mxu0
    %v2617 = vmul.f32 %v1619, %v2538
    %v2618 = vmul.f32 %v1621, %v2540
    %v2619 = vmul.f32 %v1624, %v2543
    %v2620 = vmul.f32 %v1626, %v2545
    %v2621 = vmul.f32 %v1629, %v2548
    %v2622 = vmul.f32 %v1631, %v2550
    %v2623 = vmul.f32 %v1634, %v2553
    %v2624 = vmul.f32 %v1636, %v2555
    %v2625 = vmul.f32 %v1639, %v2558
    %v2626 = vmul.f32 %v1641, %v2560
    %v2627 = vmul.f32 %v1644, %v2563
    %v2628 = vmul.f32 %v1646, %v2565
    %v2629 = vmul.f32 %v1649, %v2568
    %v2630 = vmul.f32 %v1651, %v2570
    %v2631 = vmul.f32 %v1654, %v2573
    %v2632 = vmul.f32 %v1656, %v2575
    %v2633 = vmul.f32 %v1659, %v2578
    %v2634 = vmul.f32 %v1661, %v2580
    %v2635 = vmul.f32 %v1664, %v2583
    %v2636 = vmul.f32 %v1666, %v2585
    %v2637 = vmul.f32 %v1669, %v2588
    %v2638 = vmul.f32 %v1671, %v2590
    %v2639 = vmul.f32 %v1674, %v2593
    %v2640 = vmul.f32 %v1676, %v2595
    %v2641 = vmul.f32 %v1679, %v2598
    %v2642 = vmul.f32 %v1681, %v2600
    %v2643 = vmul.f32 %v1684, %v2603
    %v2644 = vmul.f32 %v1686, %v2605
    %v2645 = vmul.f32 %v1689, %v2608
    %v2646 = vmul.f32 %v1691, %v2610
    %v2647 = vmul.f32 %v1694, %v2613
    %v2648 = vmul.f32 %v1696, %v2615
    %v2649 = vpack.c.bf16 %v2618, %v2617
    %v2650 = vpack.c.bf16 %v2620, %v2619
    %v2651 = vpack.c.bf16 %v2622, %v2621
    %v2652 = vpack.c.bf16 %v2624, %v2623
    %v2653 = vpack.c.bf16 %v2626, %v2625
    %v2654 = vpack.c.bf16 %v2628, %v2627
    %v2655 = vpack.c.bf16 %v2630, %v2629
    %v2656 = vpack.c.bf16 %v2632, %v2631
    %v2657 = vpack.c.bf16 %v2634, %v2633
    %v2658 = vpack.c.bf16 %v2636, %v2635
    %v2659 = vpack.c.bf16 %v2638, %v2637
    %v2660 = vpack.c.bf16 %v2640, %v2639
    %v2661 = vpack.c.bf16 %v2642, %v2641
    %v2662 = vpack.c.bf16 %v2644, %v2643
    %v2663 = vpack.c.bf16 %v2646, %v2645
    %v2664 = vpack.c.bf16 %v2648, %v2647
    %v2681 = vunpack.c.l.b16 %v162
    %v2682 = vunpack.c.l.b16 %v163
    %v2683 = vunpack.c.l.b16 %v164
    %v2684 = vunpack.c.l.b16 %v165
    %v2685 = vunpack.c.l.b16 %v166
    %v2686 = vunpack.c.l.b16 %v167
    %v2687 = vunpack.c.l.b16 %v168
    %v2688 = vunpack.c.l.b16 %v169
    %v2689 = vunpack.c.l.b16 %v170
    %v2690 = vunpack.c.l.b16 %v171
    %v2691 = vunpack.c.l.b16 %v172
    %v2692 = vunpack.c.l.b16 %v173
    %v2693 = vunpack.c.l.b16 %v174
    %v2694 = vunpack.c.l.b16 %v175
    %v2695 = vunpack.c.l.b16 %v176
    %v2696 = vunpack.c.l.b16 %v177
    %v2697 = vpack.c.b16 %v2682, %v2681
    %v2698 = vpack.c.b16 %v2684, %v2683
    %v2699 = vpack.c.b16 %v2686, %v2685
    %v2700 = vpack.c.b16 %v2688, %v2687
    %v2701 = vpack.c.b16 %v2690, %v2689
    %v2702 = vpack.c.b16 %v2692, %v2691
    %v2703 = vpack.c.b16 %v2694, %v2693
    %v2704 = vpack.c.b16 %v2696, %v2695
    %2713 = vmatpush.bf16.msra.mxu0 %v2704
    %2714 = vmatpush.bf16.msra.mxu0 %v2703
    %2715 = vmatpush.bf16.msra.mxu0 %v2702
    %2716 = vmatpush.bf16.msra.mxu0 %v2701
    %2717 = vmatpush.bf16.msra.mxu0 %v2700
    %2718 = vmatpush.bf16.msra.mxu0 %v2699
    %2719 = vmatpush.bf16.msra.mxu0 %v2698
    %2720 = vmatpush.bf16.msra.mxu0 %v2697
    %2721 = vmatmul.bf16.gmra.mxu0 %v2649
    %v2722 = vpop.f32.mrf.mxu0
    %v2723 = vadd.f32 0.0, %v2722
    %v2724 = vpop.f32.mrf.mxu0
    %v2725 = vadd.f32 0.0, %v2724
    %2726 = vmatmul.bf16.gmra.mxu0 %v2650
    %v2727 = vpop.f32.mrf.mxu0
    %v2728 = vadd.f32 0.0, %v2727
    %v2729 = vpop.f32.mrf.mxu0
    %v2730 = vadd.f32 0.0, %v2729
    %2731 = vmatmul.bf16.gmra.mxu0 %v2651
    %v2732 = vpop.f32.mrf.mxu0
    %v2733 = vadd.f32 0.0, %v2732
    %v2734 = vpop.f32.mrf.mxu0
    %v2735 = vadd.f32 0.0, %v2734
    %2736 = vmatmul.bf16.gmra.mxu0 %v2652
    %v2737 = vpop.f32.mrf.mxu0
    %v2738 = vadd.f32 0.0, %v2737
    %v2739 = vpop.f32.mrf.mxu0
    %v2740 = vadd.f32 0.0, %v2739
    %2741 = vmatmul.bf16.gmra.mxu0 %v2653
    %v2742 = vpop.f32.mrf.mxu0
    %v2743 = vadd.f32 0.0, %v2742
    %v2744 = vpop.f32.mrf.mxu0
    %v2745 = vadd.f32 0.0, %v2744
    %2746 = vmatmul.bf16.gmra.mxu0 %v2654
    %v2747 = vpop.f32.mrf.mxu0
    %v2748 = vadd.f32 0.0, %v2747
    %v2749 = vpop.f32.mrf.mxu0
    %v2750 = vadd.f32 0.0, %v2749
    %2751 = vmatmul.bf16.gmra.mxu0 %v2655
    %v2752 = vpop.f32.mrf.mxu0
    %v2753 = vadd.f32 0.0, %v2752
    %v2754 = vpop.f32.mrf.mxu0
    %v2755 = vadd.f32 0.0, %v2754
    %2756 = vmatmul.bf16.gmra.mxu0 %v2656
    %v2757 = vpop.f32.mrf.mxu0
    %v2758 = vadd.f32 0.0, %v2757
    %v2759 = vpop.f32.mrf.mxu0
    %v2760 = vadd.f32 0.0, %v2759
    %2761 = vmatmul.bf16.gmra.mxu0 %v2657
    %v2762 = vpop.f32.mrf.mxu0
    %v2763 = vadd.f32 0.0, %v2762
    %v2764 = vpop.f32.mrf.mxu0
    %v2765 = vadd.f32 0.0, %v2764
    %2766 = vmatmul.bf16.gmra.mxu0 %v2658
    %v2767 = vpop.f32.mrf.mxu0
    %v2768 = vadd.f32 0.0, %v2767
    %v2769 = vpop.f32.mrf.mxu0
    %v2770 = vadd.f32 0.0, %v2769
    %2771 = vmatmul.bf16.gmra.mxu0 %v2659
    %v2772 = vpop.f32.mrf.mxu0
    %v2773 = vadd.f32 0.0, %v2772
    %v2774 = vpop.f32.mrf.mxu0
    %v2775 = vadd.f32 0.0, %v2774
    %2776 = vmatmul.bf16.gmra.mxu0 %v2660
    %v2777 = vpop.f32.mrf.mxu0
    %v2778 = vadd.f32 0.0, %v2777
    %v2779 = vpop.f32.mrf.mxu0
    %v2780 = vadd.f32 0.0, %v2779
    %2781 = vmatmul.bf16.gmra.mxu0 %v2661
    %v2782 = vpop.f32.mrf.mxu0
    %v2783 = vadd.f32 0.0, %v2782
    %v2784 = vpop.f32.mrf.mxu0
    %v2785 = vadd.f32 0.0, %v2784
    %2786 = vmatmul.bf16.gmra.mxu0 %v2662
    %v2787 = vpop.f32.mrf.mxu0
    %v2788 = vadd.f32 0.0, %v2787
    %v2789 = vpop.f32.mrf.mxu0
    %v2790 = vadd.f32 0.0, %v2789
    %2791 = vmatmul.bf16.gmra.mxu0 %v2663
    %v2792 = vpop.f32.mrf.mxu0
    %v2793 = vadd.f32 0.0, %v2792
    %v2794 = vpop.f32.mrf.mxu0
    %v2795 = vadd.f32 0.0, %v2794
    %2796 = vmatmul.bf16.gmra.mxu0 %v2664
    %v2797 = vpop.f32.mrf.mxu0
    %v2798 = vadd.f32 0.0, %v2797
    %v2799 = vpop.f32.mrf.mxu0
    %v2800 = vadd.f32 0.0, %v2799
    %2801 = vdwg.mxu0
    %2803 = vset.pattern.permute.xlu0 15
    %2804 = vperm.xlu0 %2803, %v32
    %v2805 = vpop.permute.xlu0 %2804
    %2808 = vset.pattern.permute.xlu0 15
    %2809 = vperm.xlu0 %2808, %v33
    %v2810 = vpop.permute.xlu0 %2809
    %2813 = vset.pattern.permute.xlu0 15
    %2814 = vperm.xlu0 %2813, %v34
    %v2815 = vpop.permute.xlu0 %2814
    %2818 = vset.pattern.permute.xlu0 15
    %2819 = vperm.xlu0 %2818, %v35
    %v2820 = vpop.permute.xlu0 %2819
    %2823 = vset.pattern.permute.xlu0 15
    %2824 = vperm.xlu0 %2823, %v36
    %v2825 = vpop.permute.xlu0 %2824
    %2828 = vset.pattern.permute.xlu0 15
    %2829 = vperm.xlu0 %2828, %v37
    %v2830 = vpop.permute.xlu0 %2829
    %2833 = vset.pattern.permute.xlu0 15
    %2834 = vperm.xlu0 %2833, %v38
    %v2835 = vpop.permute.xlu0 %2834
    %2838 = vset.pattern.permute.xlu0 15
    %2839 = vperm.xlu0 %2838, %v39
    %v2840 = vpop.permute.xlu0 %2839
    %2843 = vset.pattern.permute.xlu0 15
    %2844 = vperm.xlu0 %2843, %v40
    %v2845 = vpop.permute.xlu0 %2844
    %2848 = vset.pattern.permute.xlu0 15
    %2849 = vperm.xlu0 %2848, %v41
    %v2850 = vpop.permute.xlu0 %2849
    %2853 = vset.pattern.permute.xlu0 15
    %2854 = vperm.xlu0 %2853, %v42
    %v2855 = vpop.permute.xlu0 %2854
    %2858 = vset.pattern.permute.xlu0 15
    %2859 = vperm.xlu0 %2858, %v43
    %v2860 = vpop.permute.xlu0 %2859
    %2863 = vset.pattern.permute.xlu0 15
    %2864 = vperm.xlu0 %2863, %v44
    %v2865 = vpop.permute.xlu0 %2864
    %2868 = vset.pattern.permute.xlu0 15
    %2869 = vperm.xlu0 %2868, %v45
    %v2870 = vpop.permute.xlu0 %2869
    %2873 = vset.pattern.permute.xlu0 15
    %2874 = vperm.xlu0 %2873, %v46
    %v2875 = vpop.permute.xlu0 %2874
    %2878 = vset.pattern.permute.xlu0 15
    %2879 = vperm.xlu0 %2878, %v47
    %v2880 = vpop.permute.xlu0 %2879
    %2883 = vset.pattern.permute.xlu0 15
    %2884 = vperm.xlu0 %2883, %v48
    %v2885 = vpop.permute.xlu0 %2884
    %2888 = vset.pattern.permute.xlu0 15
    %2889 = vperm.xlu0 %2888, %v49
    %v2890 = vpop.permute.xlu0 %2889
    %2893 = vset.pattern.permute.xlu0 15
    %2894 = vperm.xlu0 %2893, %v50
    %v2895 = vpop.permute.xlu0 %2894
    %2898 = vset.pattern.permute.xlu0 15
    %2899 = vperm.xlu0 %2898, %v51
    %v2900 = vpop.permute.xlu0 %2899
    %2903 = vset.pattern.permute.xlu0 15
    %2904 = vperm.xlu0 %2903, %v52
    %v2905 = vpop.permute.xlu0 %2904
    %2908 = vset.pattern.permute.xlu0 15
    %2909 = vperm.xlu0 %2908, %v53
    %v2910 = vpop.permute.xlu0 %2909
    %2913 = vset.pattern.permute.xlu0 15
    %2914 = vperm.xlu0 %2913, %v54
    %v2915 = vpop.permute.xlu0 %2914
    %2918 = vset.pattern.permute.xlu0 15
    %2919 = vperm.xlu0 %2918, %v55
    %v2920 = vpop.permute.xlu0 %2919
    %2923 = vset.pattern.permute.xlu0 15
    %2924 = vperm.xlu0 %2923, %v56
    %v2925 = vpop.permute.xlu0 %2924
    %2928 = vset.pattern.permute.xlu0 15
    %2929 = vperm.xlu0 %2928, %v57
    %v2930 = vpop.permute.xlu0 %2929
    %2933 = vset.pattern.permute.xlu0 15
    %2934 = vperm.xlu0 %2933, %v58
    %v2935 = vpop.permute.xlu0 %2934
    %2938 = vset.pattern.permute.xlu0 15
    %2939 = vperm.xlu0 %2938, %v59
    %v2940 = vpop.permute.xlu0 %2939
    %2943 = vset.pattern.permute.xlu0 15
    %2944 = vperm.xlu0 %2943, %v60
    %v2945 = vpop.permute.xlu0 %2944
    %2948 = vset.pattern.permute.xlu0 15
    %2949 = vperm.xlu0 %2948, %v61
    %v2950 = vpop.permute.xlu0 %2949
    %2953 = vset.pattern.permute.xlu0 15
    %2954 = vperm.xlu0 %2953, %v62
    %v2955 = vpop.permute.xlu0 %2954
    %2958 = vset.pattern.permute.xlu0 15
    %2959 = vperm.xlu0 %2958, %v63
    %v2960 = vpop.permute.xlu0 %2959
    %v2962 = vmul.f32 %v1756, %v2805
    %v2963 = vmul.f32 %v1758, %v2810
    %v2964 = vmul.f32 %v1761, %v2815
    %v2965 = vmul.f32 %v1763, %v2820
    %v2966 = vmul.f32 %v1766, %v2825
    %v2967 = vmul.f32 %v1768, %v2830
    %v2968 = vmul.f32 %v1771, %v2835
    %v2969 = vmul.f32 %v1773, %v2840
    %v2970 = vmul.f32 %v1776, %v2845
    %v2971 = vmul.f32 %v1778, %v2850
    %v2972 = vmul.f32 %v1781, %v2855
    %v2973 = vmul.f32 %v1783, %v2860
    %v2974 = vmul.f32 %v1786, %v2865
    %v2975 = vmul.f32 %v1788, %v2870
    %v2976 = vmul.f32 %v1791, %v2875
    %v2977 = vmul.f32 %v1793, %v2880
    %v2978 = vmul.f32 %v1796, %v2885
    %v2979 = vmul.f32 %v1798, %v2890
    %v2980 = vmul.f32 %v1801, %v2895
    %v2981 = vmul.f32 %v1803, %v2900
    %v2982 = vmul.f32 %v1806, %v2905
    %v2983 = vmul.f32 %v1808, %v2910
    %v2984 = vmul.f32 %v1811, %v2915
    %v2985 = vmul.f32 %v1813, %v2920
    %v2986 = vmul.f32 %v1816, %v2925
    %v2987 = vmul.f32 %v1818, %v2930
    %v2988 = vmul.f32 %v1821, %v2935
    %v2989 = vmul.f32 %v1823, %v2940
    %v2990 = vmul.f32 %v1826, %v2945
    %v2991 = vmul.f32 %v1828, %v2950
    %v2992 = vmul.f32 %v1831, %v2955
    %v2993 = vmul.f32 %v1833, %v2960
    %v2994 = vsub.f32 %v2379, %v2723
    %v2995 = vsub.f32 %v2381, %v2725
    %v2996 = vsub.f32 %v2384, %v2728
    %v2997 = vsub.f32 %v2386, %v2730
    %v2998 = vsub.f32 %v2389, %v2733
    %v2999 = vsub.f32 %v2391, %v2735
    %v3000 = vsub.f32 %v2394, %v2738
    %v3001 = vsub.f32 %v2396, %v2740
    %v3002 = vsub.f32 %v2399, %v2743
    %v3003 = vsub.f32 %v2401, %v2745
    %v3004 = vsub.f32 %v2404, %v2748
    %v3005 = vsub.f32 %v2406, %v2750
    %v3006 = vsub.f32 %v2409, %v2753
    %v3007 = vsub.f32 %v2411, %v2755
    %v3008 = vsub.f32 %v2414, %v2758
    %v3009 = vsub.f32 %v2416, %v2760
    %v3010 = vsub.f32 %v2419, %v2763
    %v3011 = vsub.f32 %v2421, %v2765
    %v3012 = vsub.f32 %v2424, %v2768
    %v3013 = vsub.f32 %v2426, %v2770
    %v3014 = vsub.f32 %v2429, %v2773
    %v3015 = vsub.f32 %v2431, %v2775
    %v3016 = vsub.f32 %v2434, %v2778
    %v3017 = vsub.f32 %v2436, %v2780
    %v3018 = vsub.f32 %v2439, %v2783
    %v3019 = vsub.f32 %v2441, %v2785
    %v3020 = vsub.f32 %v2444, %v2788
    %v3021 = vsub.f32 %v2446, %v2790
    %v3022 = vsub.f32 %v2449, %v2793
    %v3023 = vsub.f32 %v2451, %v2795
    %v3024 = vsub.f32 %v2454, %v2798
    %v3025 = vsub.f32 %v2456, %v2800
    %v3026 = vadd.f32 %v2994, %v2962
    %v3027 = vadd.f32 %v2995, %v2963
    %v3028 = vadd.f32 %v2996, %v2964
    %v3029 = vadd.f32 %v2997, %v2965
    %v3030 = vadd.f32 %v2998, %v2966
    %v3031 = vadd.f32 %v2999, %v2967
    %v3032 = vadd.f32 %v3000, %v2968
    %v3033 = vadd.f32 %v3001, %v2969
    %v3034 = vadd.f32 %v3002, %v2970
    %v3035 = vadd.f32 %v3003, %v2971
    %v3036 = vadd.f32 %v3004, %v2972
    %v3037 = vadd.f32 %v3005, %v2973
    %v3038 = vadd.f32 %v3006, %v2974
    %v3039 = vadd.f32 %v3007, %v2975
    %v3040 = vadd.f32 %v3008, %v2976
    %v3041 = vadd.f32 %v3009, %v2977
    %v3042 = vadd.f32 %v3010, %v2978
    %v3043 = vadd.f32 %v3011, %v2979
    %v3044 = vadd.f32 %v3012, %v2980
    %v3045 = vadd.f32 %v3013, %v2981
    %v3046 = vadd.f32 %v3014, %v2982
    %v3047 = vadd.f32 %v3015, %v2983
    %v3048 = vadd.f32 %v3016, %v2984
    %v3049 = vadd.f32 %v3017, %v2985
    %v3050 = vadd.f32 %v3018, %v2986
    %v3051 = vadd.f32 %v3019, %v2987
    %v3052 = vadd.f32 %v3020, %v2988
    %v3053 = vadd.f32 %v3021, %v2989
    %v3054 = vadd.f32 %v3022, %v2990
    %v3055 = vadd.f32 %v3023, %v2991
    %v3056 = vadd.f32 %v3024, %v2992
    %v3057 = vadd.f32 %v3025, %v2993
    %v3058 = vmul.f32 %v1281, 0.01
    %v3059 = vmul.f32 %v1283, 0.01
    %v3060 = vmul.f32 %v1286, 0.01
    %v3061 = vmul.f32 %v1288, 0.01
    %v3062 = vmul.f32 %v1291, 0.01
    %v3063 = vmul.f32 %v1293, 0.01
    %v3064 = vmul.f32 %v1296, 0.01
    %v3065 = vmul.f32 %v1298, 0.01
    %v3066 = vmul.f32 %v1301, 0.01
    %v3067 = vmul.f32 %v1303, 0.01
    %v3068 = vmul.f32 %v1306, 0.01
    %v3069 = vmul.f32 %v1308, 0.01
    %v3070 = vmul.f32 %v1311, 0.01
    %v3071 = vmul.f32 %v1313, 0.01
    %v3072 = vmul.f32 %v1316, 0.01
    %v3073 = vmul.f32 %v1318, 0.01
    %v3074 = vmul.f32 %v1321, 0.01
    %v3075 = vmul.f32 %v1323, 0.01
    %v3076 = vmul.f32 %v1326, 0.01
    %v3077 = vmul.f32 %v1328, 0.01
    %v3078 = vmul.f32 %v1331, 0.01
    %v3079 = vmul.f32 %v1333, 0.01
    %v3080 = vmul.f32 %v1336, 0.01
    %v3081 = vmul.f32 %v1338, 0.01
    %v3082 = vmul.f32 %v1341, 0.01
    %v3083 = vmul.f32 %v1343, 0.01
    %v3084 = vmul.f32 %v1346, 0.01
    %v3085 = vmul.f32 %v1348, 0.01
    %v3086 = vmul.f32 %v1351, 0.01
    %v3087 = vmul.f32 %v1353, 0.01
    %v3088 = vmul.f32 %v1356, 0.01
    %v3089 = vmul.f32 %v1358, 0.01
    %v3090 = vsub.f32 %v3026, %v3058
    %v3091 = vsub.f32 %v3027, %v3059
    %v3092 = vsub.f32 %v3028, %v3060
    %v3093 = vsub.f32 %v3029, %v3061
    %v3094 = vsub.f32 %v3030, %v3062
    %v3095 = vsub.f32 %v3031, %v3063
    %v3096 = vsub.f32 %v3032, %v3064
    %v3097 = vsub.f32 %v3033, %v3065
    %v3098 = vsub.f32 %v3034, %v3066
    %v3099 = vsub.f32 %v3035, %v3067
    %v3100 = vsub.f32 %v3036, %v3068
    %v3101 = vsub.f32 %v3037, %v3069
    %v3102 = vsub.f32 %v3038, %v3070
    %v3103 = vsub.f32 %v3039, %v3071
    %v3104 = vsub.f32 %v3040, %v3072
    %v3105 = vsub.f32 %v3041, %v3073
    %v3106 = vsub.f32 %v3042, %v3074
    %v3107 = vsub.f32 %v3043, %v3075
    %v3108 = vsub.f32 %v3044, %v3076
    %v3109 = vsub.f32 %v3045, %v3077
    %v3110 = vsub.f32 %v3046, %v3078
    %v3111 = vsub.f32 %v3047, %v3079
    %v3112 = vsub.f32 %v3048, %v3080
    %v3113 = vsub.f32 %v3049, %v3081
    %v3114 = vsub.f32 %v3050, %v3082
    %v3115 = vsub.f32 %v3051, %v3083
    %v3116 = vsub.f32 %v3052, %v3084
    %v3117 = vsub.f32 %v3053, %v3085
    %v3118 = vsub.f32 %v3054, %v3086
    %v3119 = vsub.f32 %v3055, %v3087
    %v3120 = vsub.f32 %v3056, %v3088
    %v3121 = vsub.f32 %v3057, %v3089
    %v3122 = vadd.f32 %v664, %v3090
    %v3123 = vadd.f32 %v666, %v3091
    %v3124 = vadd.f32 %v669, %v3092
    %v3125 = vadd.f32 %v671, %v3093
    %v3126 = vadd.f32 %v674, %v3094
    %v3127 = vadd.f32 %v676, %v3095
    %v3128 = vadd.f32 %v679, %v3096
    %v3129 = vadd.f32 %v681, %v3097
    %v3130 = vadd.f32 %v684, %v3098
    %v3131 = vadd.f32 %v686, %v3099
    %v3132 = vadd.f32 %v689, %v3100
    %v3133 = vadd.f32 %v691, %v3101
    %v3134 = vadd.f32 %v694, %v3102
    %v3135 = vadd.f32 %v696, %v3103
    %v3136 = vadd.f32 %v699, %v3104
    %v3137 = vadd.f32 %v701, %v3105
    %v3138 = vadd.f32 %v704, %v3106
    %v3139 = vadd.f32 %v706, %v3107
    %v3140 = vadd.f32 %v709, %v3108
    %v3141 = vadd.f32 %v711, %v3109
    %v3142 = vadd.f32 %v714, %v3110
    %v3143 = vadd.f32 %v716, %v3111
    %v3144 = vadd.f32 %v719, %v3112
    %v3145 = vadd.f32 %v721, %v3113
    %v3146 = vadd.f32 %v724, %v3114
    %v3147 = vadd.f32 %v726, %v3115
    %v3148 = vadd.f32 %v729, %v3116
    %v3149 = vadd.f32 %v731, %v3117
    %v3150 = vadd.f32 %v734, %v3118
    %v3151 = vadd.f32 %v736, %v3119
    %v3152 = vadd.f32 %v739, %v3120
    %v3153 = vadd.f32 %v741, %v3121
    %v3154 = vpack.c.bf16 %v3123, %v3122
    %v3155 = vpack.c.bf16 %v3125, %v3124
    %v3156 = vpack.c.bf16 %v3127, %v3126
    %v3157 = vpack.c.bf16 %v3129, %v3128
    %v3158 = vpack.c.bf16 %v3131, %v3130
    %v3159 = vpack.c.bf16 %v3133, %v3132
    %v3160 = vpack.c.bf16 %v3135, %v3134
    %v3161 = vpack.c.bf16 %v3137, %v3136
    %v3162 = vpack.c.bf16 %v3139, %v3138
    %v3163 = vpack.c.bf16 %v3141, %v3140
    %v3164 = vpack.c.bf16 %v3143, %v3142
    %v3165 = vpack.c.bf16 %v3145, %v3144
    %v3166 = vpack.c.bf16 %v3147, %v3146
    %v3167 = vpack.c.bf16 %v3149, %v3148
    %v3168 = vpack.c.bf16 %v3151, %v3150
    %v3169 = vpack.c.bf16 %v3153, %v3152
    %v3171 = vsel %vm769, %v3154, 0
    %v3174 = vsel %vm769, %v3155, 0
    %v3177 = vsel %vm769, %v3156, 0
    %v3180 = vsel %vm769, %v3157, 0
    %v3183 = vsel %vm769, %v3158, 0
    %v3186 = vsel %vm769, %v3159, 0
    %v3189 = vsel %vm769, %v3160, 0
    %v3192 = vsel %vm769, %v3161, 0
    %v3195 = vsel %vm769, %v3162, 0
    %v3198 = vsel %vm769, %v3163, 0
    %v3201 = vsel %vm769, %v3164, 0
    %v3204 = vsel %vm769, %v3165, 0
    %v3207 = vsel %vm769, %v3166, 0
    %v3210 = vsel %vm769, %v3167, 0
    %v3213 = vsel %vm769, %v3168, 0
    %v3216 = vsel %vm769, %v3169, 0
    %3218 = vmatpush.bf16.msra.mxu0 0
    %3219 = vmatpush.bf16.msra.mxu0 0
    %3220 = vmatpush.bf16.msra.mxu0 0
    %3221 = vmatpush.bf16.msra.mxu0 0
    %3222 = vmatpush.bf16.msra.mxu0 0
    %3223 = vmatpush.bf16.msra.mxu0 0
    %3224 = vmatpush.bf16.msra.mxu0 0
    %3225 = vmatpush.bf16.msra.mxu0 %v820
    %3226 = vmatmul.bf16.gmra.mxu0 %v3171
    %v3227 = vpop.f32.mrf.mxu0
    %v3228 = vadd.f32 %v760, %v3227
    %v3229 = vpop.f32.mrf.mxu0
    %v3230 = vadd.f32 %v760, %v3229
    %3231 = vmatmul.bf16.gmra.mxu0 %v3174
    %v3232 = vpop.f32.mrf.mxu0
    %v3233 = vadd.f32 %v760, %v3232
    %v3234 = vpop.f32.mrf.mxu0
    %v3235 = vadd.f32 %v760, %v3234
    %3236 = vmatmul.bf16.gmra.mxu0 %v3177
    %v3237 = vpop.f32.mrf.mxu0
    %v3238 = vadd.f32 %v760, %v3237
    %v3239 = vpop.f32.mrf.mxu0
    %v3240 = vadd.f32 %v760, %v3239
    %3241 = vmatmul.bf16.gmra.mxu0 %v3180
    %v3242 = vpop.f32.mrf.mxu0
    %v3243 = vadd.f32 %v760, %v3242
    %v3244 = vpop.f32.mrf.mxu0
    %v3245 = vadd.f32 %v760, %v3244
    %3246 = vmatmul.bf16.gmra.mxu0 %v3183
    %v3247 = vpop.f32.mrf.mxu0
    %v3248 = vadd.f32 %v760, %v3247
    %v3249 = vpop.f32.mrf.mxu0
    %v3250 = vadd.f32 %v760, %v3249
    %3251 = vmatmul.bf16.gmra.mxu0 %v3186
    %v3252 = vpop.f32.mrf.mxu0
    %v3253 = vadd.f32 %v760, %v3252
    %v3254 = vpop.f32.mrf.mxu0
    %v3255 = vadd.f32 %v760, %v3254
    %3256 = vmatmul.bf16.gmra.mxu0 %v3189
    %v3257 = vpop.f32.mrf.mxu0
    %v3258 = vadd.f32 %v760, %v3257
    %v3259 = vpop.f32.mrf.mxu0
    %v3260 = vadd.f32 %v760, %v3259
    %3261 = vmatmul.bf16.gmra.mxu0 %v3192
    %v3262 = vpop.f32.mrf.mxu0
    %v3263 = vadd.f32 %v760, %v3262
    %v3264 = vpop.f32.mrf.mxu0
    %v3265 = vadd.f32 %v760, %v3264
    %3266 = vmatmul.bf16.gmra.mxu0 %v3195
    %v3267 = vpop.f32.mrf.mxu0
    %v3268 = vadd.f32 %v760, %v3267
    %v3269 = vpop.f32.mrf.mxu0
    %v3270 = vadd.f32 %v760, %v3269
    %3271 = vmatmul.bf16.gmra.mxu0 %v3198
    %v3272 = vpop.f32.mrf.mxu0
    %v3273 = vadd.f32 %v760, %v3272
    %v3274 = vpop.f32.mrf.mxu0
    %v3275 = vadd.f32 %v760, %v3274
    %3276 = vmatmul.bf16.gmra.mxu0 %v3201
    %v3277 = vpop.f32.mrf.mxu0
    %v3278 = vadd.f32 %v760, %v3277
    %v3279 = vpop.f32.mrf.mxu0
    %v3280 = vadd.f32 %v760, %v3279
    %3281 = vmatmul.bf16.gmra.mxu0 %v3204
    %v3282 = vpop.f32.mrf.mxu0
    %v3283 = vadd.f32 %v760, %v3282
    %v3284 = vpop.f32.mrf.mxu0
    %v3285 = vadd.f32 %v760, %v3284
    %3286 = vmatmul.bf16.gmra.mxu0 %v3207
    %v3287 = vpop.f32.mrf.mxu0
    %v3288 = vadd.f32 %v760, %v3287
    %v3289 = vpop.f32.mrf.mxu0
    %v3290 = vadd.f32 %v760, %v3289
    %3291 = vmatmul.bf16.gmra.mxu0 %v3210
    %v3292 = vpop.f32.mrf.mxu0
    %v3293 = vadd.f32 %v760, %v3292
    %v3294 = vpop.f32.mrf.mxu0
    %v3295 = vadd.f32 %v760, %v3294
    %3296 = vmatmul.bf16.gmra.mxu0 %v3213
    %v3297 = vpop.f32.mrf.mxu0
    %v3298 = vadd.f32 %v760, %v3297
    %v3299 = vpop.f32.mrf.mxu0
    %v3300 = vadd.f32 %v760, %v3299
    %3301 = vmatmul.bf16.gmra.mxu0 %v3216
    %v3302 = vpop.f32.mrf.mxu0
    %v3303 = vadd.f32 %v760, %v3302
    %v3304 = vpop.f32.mrf.mxu0
    %v3305 = vadd.f32 %v760, %v3304
    %3306 = vdwg.mxu0
    %3307 = vmatpush.bf16.msra.mxu0 0
    %3308 = vmatpush.bf16.msra.mxu0 0
    %3309 = vmatpush.bf16.msra.mxu0 0
    %3310 = vmatpush.bf16.msra.mxu0 0
    %3311 = vmatpush.bf16.msra.mxu0 0
    %3312 = vmatpush.bf16.msra.mxu0 0
    %3313 = vmatpush.bf16.msra.mxu0 0
    %3314 = vmatpush.bf16.msra.mxu0 %v823
    %3315 = vmatmul.bf16.gmra.mxu0 %v3171
    %v3316 = vpop.f32.mrf.mxu0
    %v3317 = vadd.f32 %v761, %v3316
    %v3318 = vpop.f32.mrf.mxu0
    %v3319 = vadd.f32 %v761, %v3318
    %3320 = vmatmul.bf16.gmra.mxu0 %v3174
    %v3321 = vpop.f32.mrf.mxu0
    %v3322 = vadd.f32 %v761, %v3321
    %v3323 = vpop.f32.mrf.mxu0
    %v3324 = vadd.f32 %v761, %v3323
    %3325 = vmatmul.bf16.gmra.mxu0 %v3177
    %v3326 = vpop.f32.mrf.mxu0
    %v3327 = vadd.f32 %v761, %v3326
    %v3328 = vpop.f32.mrf.mxu0
    %v3329 = vadd.f32 %v761, %v3328
    %3330 = vmatmul.bf16.gmra.mxu0 %v3180
    %v3331 = vpop.f32.mrf.mxu0
    %v3332 = vadd.f32 %v761, %v3331
    %v3333 = vpop.f32.mrf.mxu0
    %v3334 = vadd.f32 %v761, %v3333
    %3335 = vmatmul.bf16.gmra.mxu0 %v3183
    %v3336 = vpop.f32.mrf.mxu0
    %v3337 = vadd.f32 %v761, %v3336
    %v3338 = vpop.f32.mrf.mxu0
    %v3339 = vadd.f32 %v761, %v3338
    %3340 = vmatmul.bf16.gmra.mxu0 %v3186
    %v3341 = vpop.f32.mrf.mxu0
    %v3342 = vadd.f32 %v761, %v3341
    %v3343 = vpop.f32.mrf.mxu0
    %v3344 = vadd.f32 %v761, %v3343
    %3345 = vmatmul.bf16.gmra.mxu0 %v3189
    %v3346 = vpop.f32.mrf.mxu0
    %v3347 = vadd.f32 %v761, %v3346
    %v3348 = vpop.f32.mrf.mxu0
    %v3349 = vadd.f32 %v761, %v3348
    %3350 = vmatmul.bf16.gmra.mxu0 %v3192
    %v3351 = vpop.f32.mrf.mxu0
    %v3352 = vadd.f32 %v761, %v3351
    %v3353 = vpop.f32.mrf.mxu0
    %v3354 = vadd.f32 %v761, %v3353
    %3355 = vmatmul.bf16.gmra.mxu0 %v3195
    %v3356 = vpop.f32.mrf.mxu0
    %v3357 = vadd.f32 %v761, %v3356
    %v3358 = vpop.f32.mrf.mxu0
    %v3359 = vadd.f32 %v761, %v3358
    %3360 = vmatmul.bf16.gmra.mxu0 %v3198
    %v3361 = vpop.f32.mrf.mxu0
    %v3362 = vadd.f32 %v761, %v3361
    %v3363 = vpop.f32.mrf.mxu0
    %v3364 = vadd.f32 %v761, %v3363
    %3365 = vmatmul.bf16.gmra.mxu0 %v3201
    %v3366 = vpop.f32.mrf.mxu0
    %v3367 = vadd.f32 %v761, %v3366
    %v3368 = vpop.f32.mrf.mxu0
    %v3369 = vadd.f32 %v761, %v3368
    %3370 = vmatmul.bf16.gmra.mxu0 %v3204
    %v3371 = vpop.f32.mrf.mxu0
    %v3372 = vadd.f32 %v761, %v3371
    %v3373 = vpop.f32.mrf.mxu0
    %v3374 = vadd.f32 %v761, %v3373
    %3375 = vmatmul.bf16.gmra.mxu0 %v3207
    %v3376 = vpop.f32.mrf.mxu0
    %v3377 = vadd.f32 %v761, %v3376
    %v3378 = vpop.f32.mrf.mxu0
    %v3379 = vadd.f32 %v761, %v3378
    %3380 = vmatmul.bf16.gmra.mxu0 %v3210
    %v3381 = vpop.f32.mrf.mxu0
    %v3382 = vadd.f32 %v761, %v3381
    %v3383 = vpop.f32.mrf.mxu0
    %v3384 = vadd.f32 %v761, %v3383
    %3385 = vmatmul.bf16.gmra.mxu0 %v3213
    %v3386 = vpop.f32.mrf.mxu0
    %v3387 = vadd.f32 %v761, %v3386
    %v3388 = vpop.f32.mrf.mxu0
    %v3389 = vadd.f32 %v761, %v3388
    %3390 = vmatmul.bf16.gmra.mxu0 %v3216
    %v3391 = vpop.f32.mrf.mxu0
    %v3392 = vadd.f32 %v761, %v3391
    %v3393 = vpop.f32.mrf.mxu0
    %v3394 = vadd.f32 %v761, %v3393
    %3395 = vdwg.mxu0
    %v3396 = vtanh.pop %v3228
    %v3397 = vtanh.pop %v3317
    %v3398 = vtanh.pop %v3230
    %v3399 = vtanh.pop %v3319
    %v3400 = vtanh.pop %v3233
    %v3401 = vtanh.pop %v3322
    %v3402 = vtanh.pop %v3235
    %v3403 = vtanh.pop %v3324
    %v3404 = vtanh.pop %v3238
    %v3405 = vtanh.pop %v3327
    %v3406 = vtanh.pop %v3240
    %v3407 = vtanh.pop %v3329
    %v3408 = vtanh.pop %v3243
    %v3409 = vtanh.pop %v3332
    %v3410 = vtanh.pop %v3245
    %v3411 = vtanh.pop %v3334
    %v3412 = vtanh.pop %v3248
    %v3413 = vtanh.pop %v3337
    %v3414 = vtanh.pop %v3250
    %v3415 = vtanh.pop %v3339
    %v3416 = vtanh.pop %v3253
    %v3417 = vtanh.pop %v3342
    %v3418 = vtanh.pop %v3255
    %v3419 = vtanh.pop %v3344
    %v3420 = vtanh.pop %v3258
    %v3421 = vtanh.pop %v3347
    %v3422 = vtanh.pop %v3260
    %v3423 = vtanh.pop %v3349
    %v3424 = vtanh.pop %v3263
    %v3425 = vtanh.pop %v3352
    %v3426 = vtanh.pop %v3265
    %v3427 = vtanh.pop %v3354
    %v3428 = vtanh.pop %v3268
    %v3429 = vtanh.pop %v3357
    %v3430 = vtanh.pop %v3270
    %v3431 = vtanh.pop %v3359
    %v3432 = vtanh.pop %v3273
    %v3433 = vtanh.pop %v3362
    %v3434 = vtanh.pop %v3275
    %v3435 = vtanh.pop %v3364
    %v3436 = vtanh.pop %v3278
    %v3437 = vtanh.pop %v3367
    %v3438 = vtanh.pop %v3280
    %v3439 = vtanh.pop %v3369
    %v3440 = vtanh.pop %v3283
    %v3441 = vtanh.pop %v3372
    %v3442 = vtanh.pop %v3285
    %v3443 = vtanh.pop %v3374
    %v3444 = vtanh.pop %v3288
    %v3445 = vtanh.pop %v3377
    %v3446 = vtanh.pop %v3290
    %v3447 = vtanh.pop %v3379
    %v3448 = vtanh.pop %v3293
    %v3449 = vtanh.pop %v3382
    %v3450 = vtanh.pop %v3295
    %v3451 = vtanh.pop %v3384
    %v3452 = vtanh.pop %v3298
    %v3453 = vtanh.pop %v3387
    %v3454 = vtanh.pop %v3300
    %v3455 = vtanh.pop %v3389
    %v3456 = vtanh.pop %v3303
    %v3457 = vtanh.pop %v3392
    %v3458 = vtanh.pop %v3305
    %v3459 = vtanh.pop %v3394
    %v3460 = vmul.f32 %v3397, %v3397
    %v3461 = vmul.f32 %v3399, %v3399
    %v3462 = vmul.f32 %v3401, %v3401
    %v3463 = vmul.f32 %v3403, %v3403
    %v3464 = vmul.f32 %v3405, %v3405
    %v3465 = vmul.f32 %v3407, %v3407
    %v3466 = vmul.f32 %v3409, %v3409
    %v3467 = vmul.f32 %v3411, %v3411
    %v3468 = vmul.f32 %v3413, %v3413
    %v3469 = vmul.f32 %v3415, %v3415
    %v3470 = vmul.f32 %v3417, %v3417
    %v3471 = vmul.f32 %v3419, %v3419
    %v3472 = vmul.f32 %v3421, %v3421
    %v3473 = vmul.f32 %v3423, %v3423
    %v3474 = vmul.f32 %v3425, %v3425
    %v3475 = vmul.f32 %v3427, %v3427
    %v3476 = vmul.f32 %v3429, %v3429
    %v3477 = vmul.f32 %v3431, %v3431
    %v3478 = vmul.f32 %v3433, %v3433
    %v3479 = vmul.f32 %v3435, %v3435
    %v3480 = vmul.f32 %v3437, %v3437
    %v3481 = vmul.f32 %v3439, %v3439
    %v3482 = vmul.f32 %v3441, %v3441
    %v3483 = vmul.f32 %v3443, %v3443
    %v3484 = vmul.f32 %v3445, %v3445
    %v3485 = vmul.f32 %v3447, %v3447
    %v3486 = vmul.f32 %v3449, %v3449
    %v3487 = vmul.f32 %v3451, %v3451
    %v3488 = vmul.f32 %v3453, %v3453
    %v3489 = vmul.f32 %v3455, %v3455
    %v3490 = vmul.f32 %v3457, %v3457
    %v3491 = vmul.f32 %v3459, %v3459
    %v3492 = vsub.f32 1.0, %v3460
    %v3493 = vsub.f32 1.0, %v3461
    %v3494 = vsub.f32 1.0, %v3462
    %v3495 = vsub.f32 1.0, %v3463
    %v3496 = vsub.f32 1.0, %v3464
    %v3497 = vsub.f32 1.0, %v3465
    %v3498 = vsub.f32 1.0, %v3466
    %v3499 = vsub.f32 1.0, %v3467
    %v3500 = vsub.f32 1.0, %v3468
    %v3501 = vsub.f32 1.0, %v3469
    %v3502 = vsub.f32 1.0, %v3470
    %v3503 = vsub.f32 1.0, %v3471
    %v3504 = vsub.f32 1.0, %v3472
    %v3505 = vsub.f32 1.0, %v3473
    %v3506 = vsub.f32 1.0, %v3474
    %v3507 = vsub.f32 1.0, %v3475
    %v3508 = vsub.f32 1.0, %v3476
    %v3509 = vsub.f32 1.0, %v3477
    %v3510 = vsub.f32 1.0, %v3478
    %v3511 = vsub.f32 1.0, %v3479
    %v3512 = vsub.f32 1.0, %v3480
    %v3513 = vsub.f32 1.0, %v3481
    %v3514 = vsub.f32 1.0, %v3482
    %v3515 = vsub.f32 1.0, %v3483
    %v3516 = vsub.f32 1.0, %v3484
    %v3517 = vsub.f32 1.0, %v3485
    %v3518 = vsub.f32 1.0, %v3486
    %v3519 = vsub.f32 1.0, %v3487
    %v3520 = vsub.f32 1.0, %v3488
    %v3521 = vsub.f32 1.0, %v3489
    %v3522 = vsub.f32 1.0, %v3490
    %v3523 = vsub.f32 1.0, %v3491
    %v3524 = vmul.f32 %v187, %v3492
    %v3525 = vmul.f32 %v187, %v3493
    %v3526 = vmul.f32 %v187, %v3494
    %v3527 = vmul.f32 %v187, %v3495
    %v3528 = vmul.f32 %v187, %v3496
    %v3529 = vmul.f32 %v187, %v3497
    %v3530 = vmul.f32 %v187, %v3498
    %v3531 = vmul.f32 %v187, %v3499
    %v3532 = vmul.f32 %v187, %v3500
    %v3533 = vmul.f32 %v187, %v3501
    %v3534 = vmul.f32 %v187, %v3502
    %v3535 = vmul.f32 %v187, %v3503
    %v3536 = vmul.f32 %v187, %v3504
    %v3537 = vmul.f32 %v187, %v3505
    %v3538 = vmul.f32 %v187, %v3506
    %v3539 = vmul.f32 %v187, %v3507
    %v3540 = vmul.f32 %v187, %v3508
    %v3541 = vmul.f32 %v187, %v3509
    %v3542 = vmul.f32 %v187, %v3510
    %v3543 = vmul.f32 %v187, %v3511
    %v3544 = vmul.f32 %v187, %v3512
    %v3545 = vmul.f32 %v187, %v3513
    %v3546 = vmul.f32 %v187, %v3514
    %v3547 = vmul.f32 %v187, %v3515
    %v3548 = vmul.f32 %v187, %v3516
    %v3549 = vmul.f32 %v187, %v3517
    %v3550 = vmul.f32 %v187, %v3518
    %v3551 = vmul.f32 %v187, %v3519
    %v3552 = vmul.f32 %v187, %v3520
    %v3553 = vmul.f32 %v187, %v3521
    %v3554 = vmul.f32 %v187, %v3522
    %v3555 = vmul.f32 %v187, %v3523
    %v3556 = vpack.c.bf16 %v3525, %v3524
    %v3557 = vpack.c.bf16 %v3527, %v3526
    %v3558 = vpack.c.bf16 %v3529, %v3528
    %v3559 = vpack.c.bf16 %v3531, %v3530
    %v3560 = vpack.c.bf16 %v3533, %v3532
    %v3561 = vpack.c.bf16 %v3535, %v3534
    %v3562 = vpack.c.bf16 %v3537, %v3536
    %v3563 = vpack.c.bf16 %v3539, %v3538
    %v3564 = vpack.c.bf16 %v3541, %v3540
    %v3565 = vpack.c.bf16 %v3543, %v3542
    %v3566 = vpack.c.bf16 %v3545, %v3544
    %v3567 = vpack.c.bf16 %v3547, %v3546
    %v3568 = vpack.c.bf16 %v3549, %v3548
    %v3569 = vpack.c.bf16 %v3551, %v3550
    %v3570 = vpack.c.bf16 %v3553, %v3552
    %v3571 = vpack.c.bf16 %v3555, %v3554
    %v3572 = vmul.f32 %v3122, 0.1
    %v3573 = vmul.f32 %v3123, 0.1
    %v3574 = vmul.f32 %v3124, 0.1
    %v3575 = vmul.f32 %v3125, 0.1
    %v3576 = vmul.f32 %v3126, 0.1
    %v3577 = vmul.f32 %v3127, 0.1
    %v3578 = vmul.f32 %v3128, 0.1
    %v3579 = vmul.f32 %v3129, 0.1
    %v3580 = vmul.f32 %v3130, 0.1
    %v3581 = vmul.f32 %v3131, 0.1
    %v3582 = vmul.f32 %v3132, 0.1
    %v3583 = vmul.f32 %v3133, 0.1
    %v3584 = vmul.f32 %v3134, 0.1
    %v3585 = vmul.f32 %v3135, 0.1
    %v3586 = vmul.f32 %v3136, 0.1
    %v3587 = vmul.f32 %v3137, 0.1
    %v3588 = vmul.f32 %v3138, 0.1
    %v3589 = vmul.f32 %v3139, 0.1
    %v3590 = vmul.f32 %v3140, 0.1
    %v3591 = vmul.f32 %v3141, 0.1
    %v3592 = vmul.f32 %v3142, 0.1
    %v3593 = vmul.f32 %v3143, 0.1
    %v3594 = vmul.f32 %v3144, 0.1
    %v3595 = vmul.f32 %v3145, 0.1
    %v3596 = vmul.f32 %v3146, 0.1
    %v3597 = vmul.f32 %v3147, 0.1
    %v3598 = vmul.f32 %v3148, 0.1
    %v3599 = vmul.f32 %v3149, 0.1
    %v3600 = vmul.f32 %v3150, 0.1
    %v3601 = vmul.f32 %v3151, 0.1
    %v3602 = vmul.f32 %v3152, 0.1
    %v3603 = vmul.f32 %v3153, 0.1
    %v3605 = vsel %vm408, %v3556, 0
    %v3608 = vsel %vm408, %v3557, 0
    %v3611 = vsel %vm408, %v3558, 0
    %v3614 = vsel %vm408, %v3559, 0
    %v3617 = vsel %vm408, %v3560, 0
    %v3620 = vsel %vm408, %v3561, 0
    %v3623 = vsel %vm408, %v3562, 0
    %v3626 = vsel %vm408, %v3563, 0
    %v3629 = vsel %vm408, %v3564, 0
    %v3632 = vsel %vm408, %v3565, 0
    %v3635 = vsel %vm408, %v3566, 0
    %v3638 = vsel %vm408, %v3567, 0
    %v3641 = vsel %vm408, %v3568, 0
    %v3644 = vsel %vm408, %v3569, 0
    %v3647 = vsel %vm408, %v3570, 0
    %v3650 = vsel %vm408, %v3571, 0
    %3652 = vmatpush.bf16.msra.mxu0 0
    %3653 = vmatpush.bf16.msra.mxu0 0
    %3654 = vmatpush.bf16.msra.mxu0 0
    %3655 = vmatpush.bf16.msra.mxu0 0
    %3656 = vmatpush.bf16.msra.mxu0 0
    %3657 = vmatpush.bf16.msra.mxu0 0
    %3658 = vmatpush.bf16.msra.mxu0 %v1220
    %3659 = vmatpush.bf16.msra.mxu0 %v1219
    %3660 = vmatmul.bf16.gmra.mxu0 %v3605
    %v3661 = vpop.f32.mrf.mxu0
    %v3662 = vadd.f32 %v3572, %v3661
    %v3663 = vpop.f32.mrf.mxu0
    %v3664 = vadd.f32 %v3573, %v3663
    %3665 = vmatmul.bf16.gmra.mxu0 %v3608
    %v3666 = vpop.f32.mrf.mxu0
    %v3667 = vadd.f32 %v3574, %v3666
    %v3668 = vpop.f32.mrf.mxu0
    %v3669 = vadd.f32 %v3575, %v3668
    %3670 = vmatmul.bf16.gmra.mxu0 %v3611
    %v3671 = vpop.f32.mrf.mxu0
    %v3672 = vadd.f32 %v3576, %v3671
    %v3673 = vpop.f32.mrf.mxu0
    %v3674 = vadd.f32 %v3577, %v3673
    %3675 = vmatmul.bf16.gmra.mxu0 %v3614
    %v3676 = vpop.f32.mrf.mxu0
    %v3677 = vadd.f32 %v3578, %v3676
    %v3678 = vpop.f32.mrf.mxu0
    %v3679 = vadd.f32 %v3579, %v3678
    %3680 = vmatmul.bf16.gmra.mxu0 %v3617
    %v3681 = vpop.f32.mrf.mxu0
    %v3682 = vadd.f32 %v3580, %v3681
    %v3683 = vpop.f32.mrf.mxu0
    %v3684 = vadd.f32 %v3581, %v3683
    %3685 = vmatmul.bf16.gmra.mxu0 %v3620
    %v3686 = vpop.f32.mrf.mxu0
    %v3687 = vadd.f32 %v3582, %v3686
    %v3688 = vpop.f32.mrf.mxu0
    %v3689 = vadd.f32 %v3583, %v3688
    %3690 = vmatmul.bf16.gmra.mxu0 %v3623
    %v3691 = vpop.f32.mrf.mxu0
    %v3692 = vadd.f32 %v3584, %v3691
    %v3693 = vpop.f32.mrf.mxu0
    %v3694 = vadd.f32 %v3585, %v3693
    %3695 = vmatmul.bf16.gmra.mxu0 %v3626
    %v3696 = vpop.f32.mrf.mxu0
    %v3697 = vadd.f32 %v3586, %v3696
    %v3698 = vpop.f32.mrf.mxu0
    %v3699 = vadd.f32 %v3587, %v3698
    %3700 = vmatmul.bf16.gmra.mxu0 %v3629
    %v3701 = vpop.f32.mrf.mxu0
    %v3702 = vadd.f32 %v3588, %v3701
    %v3703 = vpop.f32.mrf.mxu0
    %v3704 = vadd.f32 %v3589, %v3703
    %3705 = vmatmul.bf16.gmra.mxu0 %v3632
    %v3706 = vpop.f32.mrf.mxu0
    %v3707 = vadd.f32 %v3590, %v3706
    %v3708 = vpop.f32.mrf.mxu0
    %v3709 = vadd.f32 %v3591, %v3708
    %3710 = vmatmul.bf16.gmra.mxu0 %v3635
    %v3711 = vpop.f32.mrf.mxu0
    %v3712 = vadd.f32 %v3592, %v3711
    %v3713 = vpop.f32.mrf.mxu0
    %v3714 = vadd.f32 %v3593, %v3713
    %3715 = vmatmul.bf16.gmra.mxu0 %v3638
    %v3716 = vpop.f32.mrf.mxu0
    %v3717 = vadd.f32 %v3594, %v3716
    %v3718 = vpop.f32.mrf.mxu0
    %v3719 = vadd.f32 %v3595, %v3718
    %3720 = vmatmul.bf16.gmra.mxu0 %v3641
    %v3721 = vpop.f32.mrf.mxu0
    %v3722 = vadd.f32 %v3596, %v3721
    %v3723 = vpop.f32.mrf.mxu0
    %v3724 = vadd.f32 %v3597, %v3723
    %3725 = vmatmul.bf16.gmra.mxu0 %v3644
    %v3726 = vpop.f32.mrf.mxu0
    %v3727 = vadd.f32 %v3598, %v3726
    %v3728 = vpop.f32.mrf.mxu0
    %v3729 = vadd.f32 %v3599, %v3728
    %3730 = vmatmul.bf16.gmra.mxu0 %v3647
    %v3731 = vpop.f32.mrf.mxu0
    %v3732 = vadd.f32 %v3600, %v3731
    %v3733 = vpop.f32.mrf.mxu0
    %v3734 = vadd.f32 %v3601, %v3733
    %3735 = vmatmul.bf16.gmra.mxu0 %v3650
    %v3736 = vpop.f32.mrf.mxu0
    %v3737 = vadd.f32 %v3602, %v3736
    %v3738 = vpop.f32.mrf.mxu0
    %v3739 = vadd.f32 %v3603, %v3738
    %3740 = vdwg.mxu0
    %v3741 = vpack.c.bf16 %v3398, %v3396
    %v3742 = vpack.c.bf16 %v3402, %v3400
    %v3743 = vpack.c.bf16 %v3406, %v3404
    %v3744 = vpack.c.bf16 %v3410, %v3408
    %v3745 = vpack.c.bf16 %v3414, %v3412
    %v3746 = vpack.c.bf16 %v3418, %v3416
    %v3747 = vpack.c.bf16 %v3422, %v3420
    %v3748 = vpack.c.bf16 %v3426, %v3424
    %v3749 = vpack.c.bf16 %v3430, %v3428
    %v3750 = vpack.c.bf16 %v3434, %v3432
    %v3751 = vpack.c.bf16 %v3438, %v3436
    %v3752 = vpack.c.bf16 %v3442, %v3440
    %v3753 = vpack.c.bf16 %v3446, %v3444
    %v3754 = vpack.c.bf16 %v3450, %v3448
    %v3755 = vpack.c.bf16 %v3454, %v3452
    %v3756 = vpack.c.bf16 %v3458, %v3456
    %3757 = vmatpush.bf16.msra.mxu0 %v1415
    %3758 = vmatpush.bf16.msra.mxu0 %v1414
    %3759 = vmatpush.bf16.msra.mxu0 %v1413
    %3760 = vmatpush.bf16.msra.mxu0 %v1412
    %3761 = vmatpush.bf16.msra.mxu0 %v1411
    %3762 = vmatpush.bf16.msra.mxu0 %v1410
    %3763 = vmatpush.bf16.msra.mxu0 %v1409
    %3764 = vmatpush.bf16.msra.mxu0 %v1408
    %3765 = vmatmul.bf16.gmra.mxu0 %v3741
    %v3766 = vpop.f32.mrf.mxu0
    %v3767 = vadd.f32 %v184, %v3766
    %v3768 = vpop.f32.mrf.mxu0
    %v3769 = vadd.f32 %v184, %v3768
    %3770 = vmatmul.bf16.gmra.mxu0 %v3742
    %v3771 = vpop.f32.mrf.mxu0
    %v3772 = vadd.f32 %v184, %v3771
    %v3773 = vpop.f32.mrf.mxu0
    %v3774 = vadd.f32 %v184, %v3773
    %3775 = vmatmul.bf16.gmra.mxu0 %v3743
    %v3776 = vpop.f32.mrf.mxu0
    %v3777 = vadd.f32 %v184, %v3776
    %v3778 = vpop.f32.mrf.mxu0
    %v3779 = vadd.f32 %v184, %v3778
    %3780 = vmatmul.bf16.gmra.mxu0 %v3744
    %v3781 = vpop.f32.mrf.mxu0
    %v3782 = vadd.f32 %v184, %v3781
    %v3783 = vpop.f32.mrf.mxu0
    %v3784 = vadd.f32 %v184, %v3783
    %3785 = vmatmul.bf16.gmra.mxu0 %v3745
    %v3786 = vpop.f32.mrf.mxu0
    %v3787 = vadd.f32 %v184, %v3786
    %v3788 = vpop.f32.mrf.mxu0
    %v3789 = vadd.f32 %v184, %v3788
    %3790 = vmatmul.bf16.gmra.mxu0 %v3746
    %v3791 = vpop.f32.mrf.mxu0
    %v3792 = vadd.f32 %v184, %v3791
    %v3793 = vpop.f32.mrf.mxu0
    %v3794 = vadd.f32 %v184, %v3793
    %3795 = vmatmul.bf16.gmra.mxu0 %v3747
    %v3796 = vpop.f32.mrf.mxu0
    %v3797 = vadd.f32 %v184, %v3796
    %v3798 = vpop.f32.mrf.mxu0
    %v3799 = vadd.f32 %v184, %v3798
    %3800 = vmatmul.bf16.gmra.mxu0 %v3748
    %v3801 = vpop.f32.mrf.mxu0
    %v3802 = vadd.f32 %v184, %v3801
    %v3803 = vpop.f32.mrf.mxu0
    %v3804 = vadd.f32 %v184, %v3803
    %3805 = vmatmul.bf16.gmra.mxu0 %v3749
    %v3806 = vpop.f32.mrf.mxu0
    %v3807 = vadd.f32 %v184, %v3806
    %v3808 = vpop.f32.mrf.mxu0
    %v3809 = vadd.f32 %v184, %v3808
    %3810 = vmatmul.bf16.gmra.mxu0 %v3750
    %v3811 = vpop.f32.mrf.mxu0
    %v3812 = vadd.f32 %v184, %v3811
    %v3813 = vpop.f32.mrf.mxu0
    %v3814 = vadd.f32 %v184, %v3813
    %3815 = vmatmul.bf16.gmra.mxu0 %v3751
    %v3816 = vpop.f32.mrf.mxu0
    %v3817 = vadd.f32 %v184, %v3816
    %v3818 = vpop.f32.mrf.mxu0
    %v3819 = vadd.f32 %v184, %v3818
    %3820 = vmatmul.bf16.gmra.mxu0 %v3752
    %v3821 = vpop.f32.mrf.mxu0
    %v3822 = vadd.f32 %v184, %v3821
    %v3823 = vpop.f32.mrf.mxu0
    %v3824 = vadd.f32 %v184, %v3823
    %3825 = vmatmul.bf16.gmra.mxu0 %v3753
    %v3826 = vpop.f32.mrf.mxu0
    %v3827 = vadd.f32 %v184, %v3826
    %v3828 = vpop.f32.mrf.mxu0
    %v3829 = vadd.f32 %v184, %v3828
    %3830 = vmatmul.bf16.gmra.mxu0 %v3754
    %v3831 = vpop.f32.mrf.mxu0
    %v3832 = vadd.f32 %v184, %v3831
    %v3833 = vpop.f32.mrf.mxu0
    %v3834 = vadd.f32 %v184, %v3833
    %3835 = vmatmul.bf16.gmra.mxu0 %v3755
    %v3836 = vpop.f32.mrf.mxu0
    %v3837 = vadd.f32 %v184, %v3836
    %v3838 = vpop.f32.mrf.mxu0
    %v3839 = vadd.f32 %v184, %v3838
    %3840 = vmatmul.bf16.gmra.mxu0 %v3756
    %v3841 = vpop.f32.mrf.mxu0
    %v3842 = vadd.f32 %v184, %v3841
    %v3843 = vpop.f32.mrf.mxu0
    %v3844 = vadd.f32 %v184, %v3843
    %3845 = vdwg.mxu0
    %v3846 = vtanh.pop %v3767
    %v3847 = vtanh.pop %v3769
    %v3848 = vtanh.pop %v3772
    %v3849 = vtanh.pop %v3774
    %v3850 = vtanh.pop %v3777
    %v3851 = vtanh.pop %v3779
    %v3852 = vtanh.pop %v3782
    %v3853 = vtanh.pop %v3784
    %v3854 = vtanh.pop %v3787
    %v3855 = vtanh.pop %v3789
    %v3856 = vtanh.pop %v3792
    %v3857 = vtanh.pop %v3794
    %v3858 = vtanh.pop %v3797
    %v3859 = vtanh.pop %v3799
    %v3860 = vtanh.pop %v3802
    %v3861 = vtanh.pop %v3804
    %v3862 = vtanh.pop %v3807
    %v3863 = vtanh.pop %v3809
    %v3864 = vtanh.pop %v3812
    %v3865 = vtanh.pop %v3814
    %v3866 = vtanh.pop %v3817
    %v3867 = vtanh.pop %v3819
    %v3868 = vtanh.pop %v3822
    %v3869 = vtanh.pop %v3824
    %v3870 = vtanh.pop %v3827
    %v3871 = vtanh.pop %v3829
    %v3872 = vtanh.pop %v3832
    %v3873 = vtanh.pop %v3834
    %v3874 = vtanh.pop %v3837
    %v3875 = vtanh.pop %v3839
    %v3876 = vtanh.pop %v3842
    %v3877 = vtanh.pop %v3844
    %v3878 = vpack.c.bf16 %v3847, %v3846
    %v3879 = vpack.c.bf16 %v3849, %v3848
    %v3880 = vpack.c.bf16 %v3851, %v3850
    %v3881 = vpack.c.bf16 %v3853, %v3852
    %v3882 = vpack.c.bf16 %v3855, %v3854
    %v3883 = vpack.c.bf16 %v3857, %v3856
    %v3884 = vpack.c.bf16 %v3859, %v3858
    %v3885 = vpack.c.bf16 %v3861, %v3860
    %v3886 = vpack.c.bf16 %v3863, %v3862
    %v3887 = vpack.c.bf16 %v3865, %v3864
    %v3888 = vpack.c.bf16 %v3867, %v3866
    %v3889 = vpack.c.bf16 %v3869, %v3868
    %v3890 = vpack.c.bf16 %v3871, %v3870
    %v3891 = vpack.c.bf16 %v3873, %v3872
    %v3892 = vpack.c.bf16 %v3875, %v3874
    %v3893 = vpack.c.bf16 %v3877, %v3876
    %3894 = vmatpush.bf16.msra.mxu0 %v1737
    %3895 = vmatpush.bf16.msra.mxu0 %v1736
    %3896 = vmatpush.bf16.msra.mxu0 %v1735
    %3897 = vmatpush.bf16.msra.mxu0 %v1734
    %3898 = vmatpush.bf16.msra.mxu0 %v1733
    %3899 = vmatpush.bf16.msra.mxu0 %v1732
    %3900 = vmatpush.bf16.msra.mxu0 %v1731
    %3901 = vmatpush.bf16.msra.mxu0 %v1730
    %3902 = vmatmul.bf16.gmra.mxu0 %v3878
    %v3903 = vpop.f32.mrf.mxu0
    %v3904 = vadd.f32 %v186, %v3903
    %v3905 = vpop.f32.mrf.mxu0
    %v3906 = vadd.f32 %v186, %v3905
    %3907 = vmatmul.bf16.gmra.mxu0 %v3879
    %v3908 = vpop.f32.mrf.mxu0
    %v3909 = vadd.f32 %v186, %v3908
    %v3910 = vpop.f32.mrf.mxu0
    %v3911 = vadd.f32 %v186, %v3910
    %3912 = vmatmul.bf16.gmra.mxu0 %v3880
    %v3913 = vpop.f32.mrf.mxu0
    %v3914 = vadd.f32 %v186, %v3913
    %v3915 = vpop.f32.mrf.mxu0
    %v3916 = vadd.f32 %v186, %v3915
    %3917 = vmatmul.bf16.gmra.mxu0 %v3881
    %v3918 = vpop.f32.mrf.mxu0
    %v3919 = vadd.f32 %v186, %v3918
    %v3920 = vpop.f32.mrf.mxu0
    %v3921 = vadd.f32 %v186, %v3920
    %3922 = vmatmul.bf16.gmra.mxu0 %v3882
    %v3923 = vpop.f32.mrf.mxu0
    %v3924 = vadd.f32 %v186, %v3923
    %v3925 = vpop.f32.mrf.mxu0
    %v3926 = vadd.f32 %v186, %v3925
    %3927 = vmatmul.bf16.gmra.mxu0 %v3883
    %v3928 = vpop.f32.mrf.mxu0
    %v3929 = vadd.f32 %v186, %v3928
    %v3930 = vpop.f32.mrf.mxu0
    %v3931 = vadd.f32 %v186, %v3930
    %3932 = vmatmul.bf16.gmra.mxu0 %v3884
    %v3933 = vpop.f32.mrf.mxu0
    %v3934 = vadd.f32 %v186, %v3933
    %v3935 = vpop.f32.mrf.mxu0
    %v3936 = vadd.f32 %v186, %v3935
    %3937 = vmatmul.bf16.gmra.mxu0 %v3885
    %v3938 = vpop.f32.mrf.mxu0
    %v3939 = vadd.f32 %v186, %v3938
    %v3940 = vpop.f32.mrf.mxu0
    %v3941 = vadd.f32 %v186, %v3940
    %3942 = vmatmul.bf16.gmra.mxu0 %v3886
    %v3943 = vpop.f32.mrf.mxu0
    %v3944 = vadd.f32 %v186, %v3943
    %v3945 = vpop.f32.mrf.mxu0
    %v3946 = vadd.f32 %v186, %v3945
    %3947 = vmatmul.bf16.gmra.mxu0 %v3887
    %v3948 = vpop.f32.mrf.mxu0
    %v3949 = vadd.f32 %v186, %v3948
    %v3950 = vpop.f32.mrf.mxu0
    %v3951 = vadd.f32 %v186, %v3950
    %3952 = vmatmul.bf16.gmra.mxu0 %v3888
    %v3953 = vpop.f32.mrf.mxu0
    %v3954 = vadd.f32 %v186, %v3953
    %v3955 = vpop.f32.mrf.mxu0
    %v3956 = vadd.f32 %v186, %v3955
    %3957 = vmatmul.bf16.gmra.mxu0 %v3889
    %v3958 = vpop.f32.mrf.mxu0
    %v3959 = vadd.f32 %v186, %v3958
    %v3960 = vpop.f32.mrf.mxu0
    %v3961 = vadd.f32 %v186, %v3960
    %3962 = vmatmul.bf16.gmra.mxu0 %v3890
    %v3963 = vpop.f32.mrf.mxu0
    %v3964 = vadd.f32 %v186, %v3963
    %v3965 = vpop.f32.mrf.mxu0
    %v3966 = vadd.f32 %v186, %v3965
    %3967 = vmatmul.bf16.gmra.mxu0 %v3891
    %v3968 = vpop.f32.mrf.mxu0
    %v3969 = vadd.f32 %v186, %v3968
    %v3970 = vpop.f32.mrf.mxu0
    %v3971 = vadd.f32 %v186, %v3970
    %3972 = vmatmul.bf16.gmra.mxu0 %v3892
    %v3973 = vpop.f32.mrf.mxu0
    %v3974 = vadd.f32 %v186, %v3973
    %v3975 = vpop.f32.mrf.mxu0
    %v3976 = vadd.f32 %v186, %v3975
    %3977 = vmatmul.bf16.gmra.mxu0 %v3893
    %v3978 = vpop.f32.mrf.mxu0
    %v3979 = vadd.f32 %v186, %v3978
    %v3980 = vpop.f32.mrf.mxu0
    %v3981 = vadd.f32 %v186, %v3980
    %3982 = vdwg.mxu0
    %v3983 = vmul.f32 %v3904, %v3662
    %v3984 = vmul.f32 %v3906, %v3664
    %v3985 = vmul.f32 %v3909, %v3667
    %v3986 = vmul.f32 %v3911, %v3669
    %v3987 = vmul.f32 %v3914, %v3672
    %v3988 = vmul.f32 %v3916, %v3674
    %v3989 = vmul.f32 %v3919, %v3677
    %v3990 = vmul.f32 %v3921, %v3679
    %v3991 = vmul.f32 %v3924, %v3682
    %v3992 = vmul.f32 %v3926, %v3684
    %v3993 = vmul.f32 %v3929, %v3687
    %v3994 = vmul.f32 %v3931, %v3689
    %v3995 = vmul.f32 %v3934, %v3692
    %v3996 = vmul.f32 %v3936, %v3694
    %v3997 = vmul.f32 %v3939, %v3697
    %v3998 = vmul.f32 %v3941, %v3699
    %v3999 = vmul.f32 %v3944, %v3702
    %v4000 = vmul.f32 %v3946, %v3704
    %v4001 = vmul.f32 %v3949, %v3707
    %v4002 = vmul.f32 %v3951, %v3709
    %v4003 = vmul.f32 %v3954, %v3712
    %v4004 = vmul.f32 %v3956, %v3714
    %v4005 = vmul.f32 %v3959, %v3717
    %v4006 = vmul.f32 %v3961, %v3719
    %v4007 = vmul.f32 %v3964, %v3722
    %v4008 = vmul.f32 %v3966, %v3724
    %v4009 = vmul.f32 %v3969, %v3727
    %v4010 = vmul.f32 %v3971, %v3729
    %v4011 = vmul.f32 %v3974, %v3732
    %v4012 = vmul.f32 %v3976, %v3734
    %v4013 = vmul.f32 %v3979, %v3737
    %v4014 = vmul.f32 %v3981, %v3739
    %v4015 = vpack.c.bf16 %v3984, %v3983
    %v4016 = vpack.c.bf16 %v3986, %v3985
    %v4017 = vpack.c.bf16 %v3988, %v3987
    %v4018 = vpack.c.bf16 %v3990, %v3989
    %v4019 = vpack.c.bf16 %v3992, %v3991
    %v4020 = vpack.c.bf16 %v3994, %v3993
    %v4021 = vpack.c.bf16 %v3996, %v3995
    %v4022 = vpack.c.bf16 %v3998, %v3997
    %v4023 = vpack.c.bf16 %v4000, %v3999
    %v4024 = vpack.c.bf16 %v4002, %v4001
    %v4025 = vpack.c.bf16 %v4004, %v4003
    %v4026 = vpack.c.bf16 %v4006, %v4005
    %v4027 = vpack.c.bf16 %v4008, %v4007
    %v4028 = vpack.c.bf16 %v4010, %v4009
    %v4029 = vpack.c.bf16 %v4012, %v4011
    %v4030 = vpack.c.bf16 %v4014, %v4013
    %v4032 = vsel %vm769, %v4015, 0
    %v4035 = vsel %vm769, %v4016, 0
    %v4038 = vsel %vm769, %v4017, 0
    %v4041 = vsel %vm769, %v4018, 0
    %v4044 = vsel %vm769, %v4019, 0
    %v4047 = vsel %vm769, %v4020, 0
    %v4050 = vsel %vm769, %v4021, 0
    %v4053 = vsel %vm769, %v4022, 0
    %v4056 = vsel %vm769, %v4023, 0
    %v4059 = vsel %vm769, %v4024, 0
    %v4062 = vsel %vm769, %v4025, 0
    %v4065 = vsel %vm769, %v4026, 0
    %v4068 = vsel %vm769, %v4027, 0
    %v4071 = vsel %vm769, %v4028, 0
    %v4074 = vsel %vm769, %v4029, 0
    %v4077 = vsel %vm769, %v4030, 0
    %v4080 = vsel %vm818, %v178, 0
    %4082 = vmatpush.bf16.msra.mxu0 0
    %4083 = vmatpush.bf16.msra.mxu0 0
    %4084 = vmatpush.bf16.msra.mxu0 0
    %4085 = vmatpush.bf16.msra.mxu0 0
    %4086 = vmatpush.bf16.msra.mxu0 0
    %4087 = vmatpush.bf16.msra.mxu0 0
    %4088 = vmatpush.bf16.msra.mxu0 0
    %4089 = vmatpush.bf16.msra.mxu0 %v4080
    %4090 = vmatmul.bf16.gmra.mxu0 %v4032
    %v4091 = vpop.f32.mrf.mxu0
    %v4092 = vadd.f32 0.0, %v4091
    %v4093 = vpop.f32.mrf.mxu0
    %v4094 = vadd.f32 0.0, %v4093
    %4095 = vmatmul.bf16.gmra.mxu0 %v4035
    %v4096 = vpop.f32.mrf.mxu0
    %v4097 = vadd.f32 0.0, %v4096
    %v4098 = vpop.f32.mrf.mxu0
    %v4099 = vadd.f32 0.0, %v4098
    %4100 = vmatmul.bf16.gmra.mxu0 %v4038
    %v4101 = vpop.f32.mrf.mxu0
    %v4102 = vadd.f32 0.0, %v4101
    %v4103 = vpop.f32.mrf.mxu0
    %v4104 = vadd.f32 0.0, %v4103
    %4105 = vmatmul.bf16.gmra.mxu0 %v4041
    %v4106 = vpop.f32.mrf.mxu0
    %v4107 = vadd.f32 0.0, %v4106
    %v4108 = vpop.f32.mrf.mxu0
    %v4109 = vadd.f32 0.0, %v4108
    %4110 = vmatmul.bf16.gmra.mxu0 %v4044
    %v4111 = vpop.f32.mrf.mxu0
    %v4112 = vadd.f32 0.0, %v4111
    %v4113 = vpop.f32.mrf.mxu0
    %v4114 = vadd.f32 0.0, %v4113
    %4115 = vmatmul.bf16.gmra.mxu0 %v4047
    %v4116 = vpop.f32.mrf.mxu0
    %v4117 = vadd.f32 0.0, %v4116
    %v4118 = vpop.f32.mrf.mxu0
    %v4119 = vadd.f32 0.0, %v4118
    %4120 = vmatmul.bf16.gmra.mxu0 %v4050
    %v4121 = vpop.f32.mrf.mxu0
    %v4122 = vadd.f32 0.0, %v4121
    %v4123 = vpop.f32.mrf.mxu0
    %v4124 = vadd.f32 0.0, %v4123
    %4125 = vmatmul.bf16.gmra.mxu0 %v4053
    %v4126 = vpop.f32.mrf.mxu0
    %v4127 = vadd.f32 0.0, %v4126
    %v4128 = vpop.f32.mrf.mxu0
    %v4129 = vadd.f32 0.0, %v4128
    %4130 = vmatmul.bf16.gmra.mxu0 %v4056
    %v4131 = vpop.f32.mrf.mxu0
    %v4132 = vadd.f32 0.0, %v4131
    %v4133 = vpop.f32.mrf.mxu0
    %v4134 = vadd.f32 0.0, %v4133
    %4135 = vmatmul.bf16.gmra.mxu0 %v4059
    %v4136 = vpop.f32.mrf.mxu0
    %v4137 = vadd.f32 0.0, %v4136
    %v4138 = vpop.f32.mrf.mxu0
    %v4139 = vadd.f32 0.0, %v4138
    %4140 = vmatmul.bf16.gmra.mxu0 %v4062
    %v4141 = vpop.f32.mrf.mxu0
    %v4142 = vadd.f32 0.0, %v4141
    %v4143 = vpop.f32.mrf.mxu0
    %v4144 = vadd.f32 0.0, %v4143
    %4145 = vmatmul.bf16.gmra.mxu0 %v4065
    %v4146 = vpop.f32.mrf.mxu0
    %v4147 = vadd.f32 0.0, %v4146
    %v4148 = vpop.f32.mrf.mxu0
    %v4149 = vadd.f32 0.0, %v4148
    %4150 = vmatmul.bf16.gmra.mxu0 %v4068
    %v4151 = vpop.f32.mrf.mxu0
    %v4152 = vadd.f32 0.0, %v4151
    %v4153 = vpop.f32.mrf.mxu0
    %v4154 = vadd.f32 0.0, %v4153
    %4155 = vmatmul.bf16.gmra.mxu0 %v4071
    %v4156 = vpop.f32.mrf.mxu0
    %v4157 = vadd.f32 0.0, %v4156
    %v4158 = vpop.f32.mrf.mxu0
    %v4159 = vadd.f32 0.0, %v4158
    %4160 = vmatmul.bf16.gmra.mxu0 %v4074
    %v4161 = vpop.f32.mrf.mxu0
    %v4162 = vadd.f32 0.0, %v4161
    %v4163 = vpop.f32.mrf.mxu0
    %v4164 = vadd.f32 0.0, %v4163
    %4165 = vmatmul.bf16.gmra.mxu0 %v4077
    %v4166 = vpop.f32.mrf.mxu0
    %v4167 = vadd.f32 0.0, %v4166
    %v4168 = vpop.f32.mrf.mxu0
    %v4169 = vadd.f32 0.0, %v4168
    %4170 = vdwg.mxu0
    %4171 = vst [vmem:[#allocation5] sm:$0xff] %v4092
    %4172 = vst [vmem:[#allocation5 + $0x8] sm:$0xff] %v4094
    %4173 = vst [vmem:[#allocation5 + $0x10] sm:$0xff] %v4097
    %4174 = vst [vmem:[#allocation5 + $0x18] sm:$0xff] %v4099
    %4175 = vst [vmem:[#allocation5 + $0x20] sm:$0xff] %v4102
    %4176 = vst [vmem:[#allocation5 + $0x28] sm:$0xff] %v4104
    %4177 = vst [vmem:[#allocation5 + $0x30] sm:$0xff] %v4107
    %4178 = vst [vmem:[#allocation5 + $0x38] sm:$0xff] %v4109
    %4179 = vst [vmem:[#allocation5 + $0x40] sm:$0xff] %v4112
    %4180 = vst [vmem:[#allocation5 + $0x48] sm:$0xff] %v4114
    %4181 = vst [vmem:[#allocation5 + $0x50] sm:$0xff] %v4117
    %4182 = vst [vmem:[#allocation5 + $0x58] sm:$0xff] %v4119
    %4183 = vst [vmem:[#allocation5 + $0x60] sm:$0xff] %v4122
    %4184 = vst [vmem:[#allocation5 + $0x68] sm:$0xff] %v4124
    %4185 = vst [vmem:[#allocation5 + $0x70] sm:$0xff] %v4127
    %4186 = vst [vmem:[#allocation5 + $0x78] sm:$0xff] %v4129
    %4187 = vst [vmem:[#allocation5 + $0x80] sm:$0xff] %v4132
    %4188 = vst [vmem:[#allocation5 + $0x88] sm:$0xff] %v4134
    %4189 = vst [vmem:[#allocation5 + $0x90] sm:$0xff] %v4137
    %4190 = vst [vmem:[#allocation5 + $0x98] sm:$0xff] %v4139
    %4191 = vst [vmem:[#allocation5 + $0xa0] sm:$0xff] %v4142
    %4192 = vst [vmem:[#allocation5 + $0xa8] sm:$0xff] %v4144
    %4193 = vst [vmem:[#allocation5 + $0xb0] sm:$0xff] %v4147
    %4194 = vst [vmem:[#allocation5 + $0xb8] sm:$0xff] %v4149
    %4195 = vst [vmem:[#allocation5 + $0xc0] sm:$0xff] %v4152
    %4196 = vst [vmem:[#allocation5 + $0xc8] sm:$0xff] %v4154
    %4197 = vst [vmem:[#allocation5 + $0xd0] sm:$0xff] %v4157
    %4198 = vst [vmem:[#allocation5 + $0xd8] sm:$0xff] %v4159
    %4199 = vst [vmem:[#allocation5 + $0xe0] sm:$0xff] %v4162
    %4200 = vst [vmem:[#allocation5 + $0xe8] sm:$0xff] %v4164
    %4201 = vst [vmem:[#allocation5 + $0xf0] sm:$0xff] %v4167
    %4202 = vst [vmem:[#allocation5 + $0xf8] sm:$0xff] %v4169
    // Predicated region
    $region18: #{tpu_custom_call.1} parent=1 // pred_check
      _
    $region19: #{tpu_custom_call.1} parent=1 // pred_check_branch
      %4204 = sbr.rel (0) target = $region21
    $region20: #{tpu_custom_call.1} parent=1 // pred_region
      %4206 = vsyncadd [#allocation4], 0
      %s4207 = sshll.u32 [#allocation5], 4
      %s4208 = int_to_ptr.vmem [resolvable:$true] %s4207
      %s4209 = sshll.u32 %s3, 4
      %s4210 = int_to_ptr.hbm [resolvable:$true] %s4209
      %4215 = dma.vmem_to_hbm [thread:$0]  %s4208, 4096, %s4210, [#allocation4], 128, 128, 8
    $region21: #{tpu_custom_call.1} parent=1 // pred_fallthru
      _
    // Predicated region
    $region22: #{tpu_custom_call.1} parent=1 // pred_check
      _
    $region23: #{tpu_custom_call.1} parent=1 // pred_check_branch
      %4217 = sbr.rel (0) target = $region25
    $region24: #{tpu_custom_call.1} parent=1 // pred_region
      %4219 = dma.done [#allocation4], 4096
    $region25: #{tpu_custom_call.1} parent=1 // pred_fallthru
      _
    %4220 = vsyncpa [#allocation3], 1
    %4221 = vsyncpa [#allocation4], 1

</llo_original>
